<compile_context>
chip_gen: v7x
topology: tpu7x:2x2x1
jax: 0.10.0
libtpu: 0.0.40
codegen_flags: <defaults>
</compile_context>

<pallas_src>
import functools

import jax
import jax.numpy as jnp
from jax.experimental import pallas as pl
from jax.experimental.pallas import tpu as pltpu


def convblock_kernel(x_ref, w_ref, b_ref, o_ref, hmax_ref, *, K, Wo, band_p, WP):
    # x_ref:    (band_p*K + 2, Wp, Cin) bf16  padded NHWC input rows for this band
    # w_ref:    (K*K, Cin, Cp)          bf16  per-tap matmul matrices, Cout padded to Cp=128
    # b_ref:    (1, Cp)                 f32   bias (zero in padded lanes)
    # o_ref:    (band_p, WP, Cp)              pooled output block (lane-dense store)
    # hmax_ref: (band_p, Wo, Cp)        f32   scratch: h-direction pooled maxima
    R = band_p * K                       # conv rows produced by this band
    Cin = x_ref.shape[-1]
    Cp = w_ref.shape[-1]

    # Fused im2col: accumulate the K*K shifted (R*Wo, Cin) x (Cin, Cp) matmuls
    # (bf16 operands, f32 accumulation).  Offsets are static Python ints.
    acc = None
    for i in range(K):
        for j in range(K):
            lhs = x_ref[pl.ds(i, R), pl.ds(j, Wo), :].reshape(R * Wo, Cin)
            part = jnp.dot(lhs, w_ref[i * K + j],
                           preferred_element_type=jnp.float32)
            acc = part if acc is None else acc + part        # (R*Wo, Cp) f32

    # MaxPool2d(K, stride=K), floor mode.
    # h-direction: free leading-axis regroup of the accumulator + VPU max over the K rows
    # of each pool window (the full conv plane never hits VMEM scratch).
    hmax_ref[...] = jnp.max(acc.reshape(band_p, K, Wo, Cp), axis=1)

    # w-direction: K strided sublane loads + VPU maxes.
    pooled = hmax_ref[:, pl.ds(0, WP, stride=K), :]
    for j in range(1, K):
        pooled = jnp.maximum(pooled, hmax_ref[:, pl.ds(j, WP, stride=K), :])

    # Bias + ReLU commute with max-pool (monotone per-channel), so apply them to the
    # pooled block only, then one lane-dense (full 128-lane) store.
    o_ref[...] = jnp.maximum(pooled + b_ref[...], 0.0).astype(o_ref.dtype)


def conv_block_forward(x_nchw, weight, bias, *, kernel_size, band_p=None,
                       out_dtype=jnp.bfloat16):
    """x_nchw: (N, Cin, H, W); weight: (Cout, Cin, K, K); bias: (Cout,).

    Returns pooled activations in NHWC layout: (N, HP, WP, Cout), dtype out_dtype.
    Use out_dtype=jnp.float32 on v5e (no bf16 VPU path).
    """
    K = kernel_size
    pad = 1                                       # nn.Conv2d(..., padding=1)
    N, Cin, H, W = x_nchw.shape
    Cout = weight.shape[0]
    Ho = H + 2 * pad - K + 1
    Wo = W + 2 * pad - K + 1
    HP = (Ho - K) // K + 1                        # MaxPool2d(K, K): stride K, floor mode
    WP = (Wo - K) // K + 1
    Wp = W + 2 * pad
    LANES = 128
    Cp = ((Cout + LANES - 1) // LANES) * LANES    # pad channels to a full lane width

    # Spatial row-band tiling: band_p pool rows per grid step.  Target >= ~512 conv
    # positions per band (HBM-roofline sweet spot), never more than the image.  At
    # production image sizes this also bounds the double-buffered band well under VMEM
    # (re-derive the tile against 64 MiB when targeting v7x; 32 MiB limit kept below).
    if band_p is None:
        band_p = max(1, min(HP, 512 // max(1, K * Wo)))
    n_bands = -(-HP // band_p)                    # ceil; last band zero-padded if ragged
    band_rows_in = band_p * K + 2 * pad

    # --- glue: NCHW -> NHWC bf16, pad, cut into overlapping row bands.  The 2 halo rows
    # duplicated per band are the only extra HBM traffic; the 9x im2col copy is gone. ---
    x = jnp.transpose(x_nchw, (0, 2, 3, 1)).astype(jnp.bfloat16)      # (N, H, W, Cin)
    rows_needed = n_bands * band_p * K + 2 * pad
    extra = max(0, rows_needed - (H + 2 * pad))   # zero rows so the last band is full
    xp = jnp.pad(x, ((0, 0), (pad, pad + extra), (pad, pad), (0, 0)))
    xb = jnp.stack([xp[:, b * band_p * K: b * band_p * K + band_rows_in]
                    for b in range(n_bands)], axis=1)
    xb = xb.reshape(N * n_bands, band_rows_in, Wp, Cin)

    # weight (Cout, Cin, K, K) -> (K*K, Cin, Cp): one (Cin, Cp) matmul matrix per tap,
    # output channels zero-padded to 128 lanes so the matmul output / pooled stores are
    # lane-dense.  Bias stays f32 for the f32 epilogue.
    w_mat = jnp.transpose(weight, (2, 3, 1, 0)).reshape(K * K, Cin, Cout)
    w_mat = jnp.pad(w_mat, ((0, 0), (0, 0), (0, Cp - Cout))).astype(jnp.bfloat16)
    b_mat = jnp.pad(bias.reshape(1, Cout), ((0, 0), (0, Cp - Cout))).astype(jnp.float32)

    kernel = functools.partial(convblock_kernel, K=K, Wo=Wo, band_p=band_p, WP=WP)

    cost = pl.CostEstimate(
        flops=2 * N * n_bands * band_p * K * Wo * K * K * Cin * Cp,
        transcendentals=0,
        bytes_accessed=(xb.size * 2 + w_mat.size * 2 + b_mat.size * 4
                        + N * n_bands * band_p * WP * Cp
                        * jnp.dtype(out_dtype).itemsize),
    )

    out = pl.pallas_call(
        kernel,
        out_shape=jax.ShapeDtypeStruct((N, n_bands * band_p, WP, Cp), out_dtype),
        grid_spec=pltpu.PrefetchScalarGridSpec(
            num_scalar_prefetch=0,
            # (spatial bands, batch): both "parallel"; spatial axis first so v7x's two
            # TensorCores are used even for N == 1.  If xprof shows exposed input DMA at
            # production sizes, add pipeline_mode=pl.Buffered(3) on the band in_spec.
            grid=(n_bands, N),
            in_specs=[
                pl.BlockSpec((pl.Squeezed(), band_rows_in, Wp, Cin),
                             lambda b, n: (n * n_bands + b, 0, 0, 0)),
                # Constant index maps: weights/bias stay resident in VMEM across bands.
                pl.BlockSpec((K * K, Cin, Cp), lambda b, n: (0, 0, 0)),
                pl.BlockSpec((1, Cp), lambda b, n: (0, 0)),
            ],
            out_specs=pl.BlockSpec((pl.Squeezed(), band_p, WP, Cp),
                                   lambda b, n: (n, b, 0, 0)),
            scratch_shapes=[
                pltpu.VMEM((band_p, Wo, Cp), jnp.float32),   # h-pooled maxima
            ],
        ),
        compiler_params=pltpu.CompilerParams(
            dimension_semantics=("parallel", "parallel"),
            vmem_limit_bytes=32 * 1024 * 1024,
        ),
        cost_estimate=cost,
    )(xb, w_mat, b_mat)

    # Drop padded pool rows (ragged last band) and padded channel lanes.
    return out[:, :HP, :, :Cout]


def reference_forward(x_nchw, weight, bias, *, kernel_size):
    """Pure-JAX reference (conv -> ReLU -> maxpool), NCHW like PyTorch."""
    K = kernel_size
    conv = jax.lax.conv_general_dilated(
        x_nchw, weight, window_strides=(1, 1), padding=((1, 1), (1, 1)),
        dimension_numbers=("NCHW", "OIHW", "NCHW"))
    conv = conv + bias[None, :, None, None]
    act = jnp.maximum(conv, 0.0)
    pooled = jax.lax.reduce_window(
        act, -jnp.inf, jax.lax.max,
        window_dimensions=(1, 1, K, K), window_strides=(1, 1, K, K),
        padding="VALID")
    return pooled  # (N, Cout, Hp, Wp)


if __name__ == "__main__":
    # Small shapes consistent with the module: batch=2, in_channels=4,
    # out_channels=8, spatial=16x16, kernel_size=3.
    N, Cin, Cout, H, W, K = 2, 4, 8, 16, 16, 3

    key = jax.random.PRNGKey(0)
    kx, kw, kb = jax.random.split(key, 3)
    x = jax.random.normal(kx, (N, Cin, H, W), dtype=jnp.float32)
    # Deterministic parameter init (uniform, Conv2d-like fan-in scaling).
    fan_in = Cin * K * K
    bound = 1.0 / (fan_in ** 0.5)
    weight = jax.random.uniform(kw, (Cout, Cin, K, K), jnp.float32, -bound, bound)
    bias = jax.random.uniform(kb, (Cout,), jnp.float32, -bound, bound)

    ref = reference_forward(x, weight, bias, kernel_size=K)
    ref_nhwc = jnp.transpose(ref, (0, 2, 3, 1))

    # Auto band size (whole image fits one band at this toy size).
    fwd = jax.jit(functools.partial(conv_block_forward, kernel_size=K))
    out = jax.block_until_ready(fwd(x, weight, bias))
    assert out.shape == ref_nhwc.shape
    # bf16 matmul operands / bf16 output vs f32 reference -> relaxed tolerance.
    assert jnp.allclose(out.astype(jnp.float32), ref_nhwc, atol=5e-2, rtol=5e-2)

    # Forced multi-band run to exercise the halo + ragged-last-band path (3 bands of 2
    # pool rows for HP=5; the padded last band's extra row is sliced off).
    fwd_banded = jax.jit(functools.partial(conv_block_forward, kernel_size=K, band_p=2))
    out_b = jax.block_until_ready(fwd_banded(x, weight, bias))
    assert out_b.shape == ref_nhwc.shape
    assert jnp.allclose(out_b.astype(jnp.float32), ref_nhwc, atol=5e-2, rtol=5e-2)

    print("KERNEL_OK")
</pallas_src>

<mosaic_0001>
module attributes {stable_mosaic.version = 11 : i64} {
  func.func @convblock_kernel(%arg0: i32, %arg1: i32, %arg2: memref<1x17x18x4xbf16, #tpu.memory_space<vmem>>, %arg3: memref<9x4x128xbf16, #tpu.memory_space<vmem>>, %arg4: memref<1x128xf32, #tpu.memory_space<vmem>>, %arg5: memref<1x5x5x128xbf16, #tpu.memory_space<vmem>>, %arg6: memref<5x16x128xf32, #tpu.memory_space<vmem>>) attributes {dimension_semantics = [#tpu.dimension_semantics<parallel>, #tpu.dimension_semantics<parallel>], iteration_bounds = array<i64: 1, 2>, scalar_prefetch = 0 : i64, scratch_operands = 1 : i64, tpu.core_type = #tpu.core_type<tc>, window_params = [{transform_indices = @transform_0, window_bounds = array<i64: 1, 17, 18, 4>}, {pipeline_mode = #tpu.pipeline_mode<synchronous>, transform_indices = @transform_1, window_bounds = array<i64: 9, 4, 128>}, {pipeline_mode = #tpu.pipeline_mode<synchronous>, transform_indices = @transform_2, window_bounds = array<i64: 1, 128>}, {transform_indices = @transform_3, window_bounds = array<i64: 1, 5, 5, 128>}]} {
    %c0 = arith.constant 0 : index
    %c0_0 = arith.constant 0 : index
    %c0_1 = arith.constant 0 : index
    %c0_2 = arith.constant 0 : index
    %0 = vector.load %arg2[%c0, %c0_0, %c0_1, %c0_2] : memref<1x17x18x4xbf16, #tpu.memory_space<vmem>>, vector<1x15x16x4xbf16>
    %1 = vector.shape_cast %0 : vector<1x15x16x4xbf16> to vector<15x16x4xbf16>
    %2 = vector.shape_cast %1 : vector<15x16x4xbf16> to vector<240x4xbf16>
    %c0_3 = arith.constant 0 : index
    %c0_4 = arith.constant 0 : index
    %c0_5 = arith.constant 0 : index
    %3 = vector.load %arg3[%c0_3, %c0_4, %c0_5] : memref<9x4x128xbf16, #tpu.memory_space<vmem>>, vector<1x4x128xbf16>
    %4 = vector.shape_cast %3 : vector<1x4x128xbf16> to vector<4x128xbf16>
    %cst = arith.constant dense<0.000000e+00> : vector<240x128xf32>
    %5 = tpu.matmul %2, %4, %cst {dimension_numbers = #tpu.dot_dimension_numbers<[1], [0], [0], [1], [0, 0, 1, 1], [], []>} : vector<240x4xbf16>, vector<4x128xbf16>, vector<240x128xf32> -> vector<240x128xf32>
    %c0_6 = arith.constant 0 : index
    %c0_7 = arith.constant 0 : index
    %c1 = arith.constant 1 : index
    %c0_8 = arith.constant 0 : index
    %6 = vector.load %arg2[%c0_6, %c0_7, %c1, %c0_8] : memref<1x17x18x4xbf16, #tpu.memory_space<vmem>>, vector<1x15x16x4xbf16>
    %7 = vector.shape_cast %6 : vector<1x15x16x4xbf16> to vector<15x16x4xbf16>
    %8 = vector.shape_cast %7 : vector<15x16x4xbf16> to vector<240x4xbf16>
    %c1_9 = arith.constant 1 : index
    %c0_10 = arith.constant 0 : index
    %c0_11 = arith.constant 0 : index
    %9 = vector.load %arg3[%c1_9, %c0_10, %c0_11] : memref<9x4x128xbf16, #tpu.memory_space<vmem>>, vector<1x4x128xbf16>
    %10 = vector.shape_cast %9 : vector<1x4x128xbf16> to vector<4x128xbf16>
    %cst_12 = arith.constant dense<0.000000e+00> : vector<240x128xf32>
    %11 = tpu.matmul %8, %10, %cst_12 {dimension_numbers = #tpu.dot_dimension_numbers<[1], [0], [0], [1], [0, 0, 1, 1], [], []>} : vector<240x4xbf16>, vector<4x128xbf16>, vector<240x128xf32> -> vector<240x128xf32>
    %12 = arith.addf %5, %11 : vector<240x128xf32>
    %c0_13 = arith.constant 0 : index
    %c0_14 = arith.constant 0 : index
    %c2 = arith.constant 2 : index
    %c0_15 = arith.constant 0 : index
    %13 = vector.load %arg2[%c0_13, %c0_14, %c2, %c0_15] : memref<1x17x18x4xbf16, #tpu.memory_space<vmem>>, vector<1x15x16x4xbf16>
    %14 = vector.shape_cast %13 : vector<1x15x16x4xbf16> to vector<15x16x4xbf16>
    %15 = vector.shape_cast %14 : vector<15x16x4xbf16> to vector<240x4xbf16>
    %c2_16 = arith.constant 2 : index
    %c0_17 = arith.constant 0 : index
    %c0_18 = arith.constant 0 : index
    %16 = vector.load %arg3[%c2_16, %c0_17, %c0_18] : memref<9x4x128xbf16, #tpu.memory_space<vmem>>, vector<1x4x128xbf16>
    %17 = vector.shape_cast %16 : vector<1x4x128xbf16> to vector<4x128xbf16>
    %cst_19 = arith.constant dense<0.000000e+00> : vector<240x128xf32>
    %18 = tpu.matmul %15, %17, %cst_19 {dimension_numbers = #tpu.dot_dimension_numbers<[1], [0], [0], [1], [0, 0, 1, 1], [], []>} : vector<240x4xbf16>, vector<4x128xbf16>, vector<240x128xf32> -> vector<240x128xf32>
    %19 = arith.addf %12, %18 : vector<240x128xf32>
    %c0_20 = arith.constant 0 : index
    %c1_21 = arith.constant 1 : index
    %c0_22 = arith.constant 0 : index
    %c0_23 = arith.constant 0 : index
    %20 = vector.load %arg2[%c0_20, %c1_21, %c0_22, %c0_23] : memref<1x17x18x4xbf16, #tpu.memory_space<vmem>>, vector<1x15x16x4xbf16>
    %21 = vector.shape_cast %20 : vector<1x15x16x4xbf16> to vector<15x16x4xbf16>
    %22 = vector.shape_cast %21 : vector<15x16x4xbf16> to vector<240x4xbf16>
    %c3 = arith.constant 3 : index
    %c0_24 = arith.constant 0 : index
    %c0_25 = arith.constant 0 : index
    %23 = vector.load %arg3[%c3, %c0_24, %c0_25] : memref<9x4x128xbf16, #tpu.memory_space<vmem>>, vector<1x4x128xbf16>
    %24 = vector.shape_cast %23 : vector<1x4x128xbf16> to vector<4x128xbf16>
    %cst_26 = arith.constant dense<0.000000e+00> : vector<240x128xf32>
    %25 = tpu.matmul %22, %24, %cst_26 {dimension_numbers = #tpu.dot_dimension_numbers<[1], [0], [0], [1], [0, 0, 1, 1], [], []>} : vector<240x4xbf16>, vector<4x128xbf16>, vector<240x128xf32> -> vector<240x128xf32>
    %26 = arith.addf %19, %25 : vector<240x128xf32>
    %c0_27 = arith.constant 0 : index
    %c1_28 = arith.constant 1 : index
    %c1_29 = arith.constant 1 : index
    %c0_30 = arith.constant 0 : index
    %27 = vector.load %arg2[%c0_27, %c1_28, %c1_29, %c0_30] : memref<1x17x18x4xbf16, #tpu.memory_space<vmem>>, vector<1x15x16x4xbf16>
    %28 = vector.shape_cast %27 : vector<1x15x16x4xbf16> to vector<15x16x4xbf16>
    %29 = vector.shape_cast %28 : vector<15x16x4xbf16> to vector<240x4xbf16>
    %c4 = arith.constant 4 : index
    %c0_31 = arith.constant 0 : index
    %c0_32 = arith.constant 0 : index
    %30 = vector.load %arg3[%c4, %c0_31, %c0_32] : memref<9x4x128xbf16, #tpu.memory_space<vmem>>, vector<1x4x128xbf16>
    %31 = vector.shape_cast %30 : vector<1x4x128xbf16> to vector<4x128xbf16>
    %cst_33 = arith.constant dense<0.000000e+00> : vector<240x128xf32>
    %32 = tpu.matmul %29, %31, %cst_33 {dimension_numbers = #tpu.dot_dimension_numbers<[1], [0], [0], [1], [0, 0, 1, 1], [], []>} : vector<240x4xbf16>, vector<4x128xbf16>, vector<240x128xf32> -> vector<240x128xf32>
    %33 = arith.addf %26, %32 : vector<240x128xf32>
    %c0_34 = arith.constant 0 : index
    %c1_35 = arith.constant 1 : index
    %c2_36 = arith.constant 2 : index
    %c0_37 = arith.constant 0 : index
    %34 = vector.load %arg2[%c0_34, %c1_35, %c2_36, %c0_37] : memref<1x17x18x4xbf16, #tpu.memory_space<vmem>>, vector<1x15x16x4xbf16>
    %35 = vector.shape_cast %34 : vector<1x15x16x4xbf16> to vector<15x16x4xbf16>
    %36 = vector.shape_cast %35 : vector<15x16x4xbf16> to vector<240x4xbf16>
    %c5 = arith.constant 5 : index
    %c0_38 = arith.constant 0 : index
    %c0_39 = arith.constant 0 : index
    %37 = vector.load %arg3[%c5, %c0_38, %c0_39] : memref<9x4x128xbf16, #tpu.memory_space<vmem>>, vector<1x4x128xbf16>
    %38 = vector.shape_cast %37 : vector<1x4x128xbf16> to vector<4x128xbf16>
    %cst_40 = arith.constant dense<0.000000e+00> : vector<240x128xf32>
    %39 = tpu.matmul %36, %38, %cst_40 {dimension_numbers = #tpu.dot_dimension_numbers<[1], [0], [0], [1], [0, 0, 1, 1], [], []>} : vector<240x4xbf16>, vector<4x128xbf16>, vector<240x128xf32> -> vector<240x128xf32>
    %40 = arith.addf %33, %39 : vector<240x128xf32>
    %c0_41 = arith.constant 0 : index
    %c2_42 = arith.constant 2 : index
    %c0_43 = arith.constant 0 : index
    %c0_44 = arith.constant 0 : index
    %41 = vector.load %arg2[%c0_41, %c2_42, %c0_43, %c0_44] : memref<1x17x18x4xbf16, #tpu.memory_space<vmem>>, vector<1x15x16x4xbf16>
    %42 = vector.shape_cast %41 : vector<1x15x16x4xbf16> to vector<15x16x4xbf16>
    %43 = vector.shape_cast %42 : vector<15x16x4xbf16> to vector<240x4xbf16>
    %c6 = arith.constant 6 : index
    %c0_45 = arith.constant 0 : index
    %c0_46 = arith.constant 0 : index
    %44 = vector.load %arg3[%c6, %c0_45, %c0_46] : memref<9x4x128xbf16, #tpu.memory_space<vmem>>, vector<1x4x128xbf16>
    %45 = vector.shape_cast %44 : vector<1x4x128xbf16> to vector<4x128xbf16>
    %cst_47 = arith.constant dense<0.000000e+00> : vector<240x128xf32>
    %46 = tpu.matmul %43, %45, %cst_47 {dimension_numbers = #tpu.dot_dimension_numbers<[1], [0], [0], [1], [0, 0, 1, 1], [], []>} : vector<240x4xbf16>, vector<4x128xbf16>, vector<240x128xf32> -> vector<240x128xf32>
    %47 = arith.addf %40, %46 : vector<240x128xf32>
    %c0_48 = arith.constant 0 : index
    %c2_49 = arith.constant 2 : index
    %c1_50 = arith.constant 1 : index
    %c0_51 = arith.constant 0 : index
    %48 = vector.load %arg2[%c0_48, %c2_49, %c1_50, %c0_51] : memref<1x17x18x4xbf16, #tpu.memory_space<vmem>>, vector<1x15x16x4xbf16>
    %49 = vector.shape_cast %48 : vector<1x15x16x4xbf16> to vector<15x16x4xbf16>
    %50 = vector.shape_cast %49 : vector<15x16x4xbf16> to vector<240x4xbf16>
    %c7 = arith.constant 7 : index
    %c0_52 = arith.constant 0 : index
    %c0_53 = arith.constant 0 : index
    %51 = vector.load %arg3[%c7, %c0_52, %c0_53] : memref<9x4x128xbf16, #tpu.memory_space<vmem>>, vector<1x4x128xbf16>
    %52 = vector.shape_cast %51 : vector<1x4x128xbf16> to vector<4x128xbf16>
    %cst_54 = arith.constant dense<0.000000e+00> : vector<240x128xf32>
    %53 = tpu.matmul %50, %52, %cst_54 {dimension_numbers = #tpu.dot_dimension_numbers<[1], [0], [0], [1], [0, 0, 1, 1], [], []>} : vector<240x4xbf16>, vector<4x128xbf16>, vector<240x128xf32> -> vector<240x128xf32>
    %54 = arith.addf %47, %53 : vector<240x128xf32>
    %c0_55 = arith.constant 0 : index
    %c2_56 = arith.constant 2 : index
    %c2_57 = arith.constant 2 : index
    %c0_58 = arith.constant 0 : index
    %55 = vector.load %arg2[%c0_55, %c2_56, %c2_57, %c0_58] : memref<1x17x18x4xbf16, #tpu.memory_space<vmem>>, vector<1x15x16x4xbf16>
    %56 = vector.shape_cast %55 : vector<1x15x16x4xbf16> to vector<15x16x4xbf16>
    %57 = vector.shape_cast %56 : vector<15x16x4xbf16> to vector<240x4xbf16>
    %c8 = arith.constant 8 : index
    %c0_59 = arith.constant 0 : index
    %c0_60 = arith.constant 0 : index
    %58 = vector.load %arg3[%c8, %c0_59, %c0_60] : memref<9x4x128xbf16, #tpu.memory_space<vmem>>, vector<1x4x128xbf16>
    %59 = vector.shape_cast %58 : vector<1x4x128xbf16> to vector<4x128xbf16>
    %cst_61 = arith.constant dense<0.000000e+00> : vector<240x128xf32>
    %60 = tpu.matmul %57, %59, %cst_61 {dimension_numbers = #tpu.dot_dimension_numbers<[1], [0], [0], [1], [0, 0, 1, 1], [], []>} : vector<240x4xbf16>, vector<4x128xbf16>, vector<240x128xf32> -> vector<240x128xf32>
    %61 = arith.addf %54, %60 : vector<240x128xf32>
    %62 = vector.shape_cast %61 : vector<240x128xf32> to vector<5x3x16x128xf32>
    %cst_62 = arith.constant dense<0xFF800000> : vector<5x16x128xf32>
    %63 = vector.multi_reduction <maximumf>, %62, %cst_62 [1] : vector<5x3x16x128xf32> to vector<5x16x128xf32>
    %c0_63 = arith.constant 0 : index
    %c0_64 = arith.constant 0 : index
    %c0_65 = arith.constant 0 : index
    %64 = vector.load %arg6[%c0_63, %c0_64, %c0_65] : memref<5x16x128xf32, #tpu.memory_space<vmem>>, vector<5x16x128xf32>
    tpu.vector_store %arg6[%c0_63, %c0_64, %c0_65], %63 {strides = array<i32>} : memref<5x16x128xf32, #tpu.memory_space<vmem>>, vector<5x16x128xf32>,
    %c0_66 = arith.constant 0 : index
    %c0_67 = arith.constant 0 : index
    %c0_68 = arith.constant 0 : index
    %65 = tpu.strided_load %arg6[%c0_66, %c0_67, %c0_68] {strides = array<i32: 1, 3, 1>} : memref<5x16x128xf32, #tpu.memory_space<vmem>>, vector<5x5x128xf32>
    %c0_69 = arith.constant 0 : index
    %c1_70 = arith.constant 1 : index
    %c0_71 = arith.constant 0 : index
    %66 = tpu.strided_load %arg6[%c0_69, %c1_70, %c0_71] {strides = array<i32: 1, 3, 1>} : memref<5x16x128xf32, #tpu.memory_space<vmem>>, vector<5x5x128xf32>
    %67 = arith.maximumf %65, %66 : vector<5x5x128xf32>
    %c0_72 = arith.constant 0 : index
    %c2_73 = arith.constant 2 : index
    %c0_74 = arith.constant 0 : index
    %68 = tpu.strided_load %arg6[%c0_72, %c2_73, %c0_74] {strides = array<i32: 1, 3, 1>} : memref<5x16x128xf32, #tpu.memory_space<vmem>>, vector<5x5x128xf32>
    %69 = arith.maximumf %67, %68 : vector<5x5x128xf32>
    %c0_75 = arith.constant 0 : index
    %c0_76 = arith.constant 0 : index
    %70 = vector.load %arg4[%c0_75, %c0_76] : memref<1x128xf32, #tpu.memory_space<vmem>>, vector<1x128xf32>
    %71 = vector.shape_cast %70 : vector<1x128xf32> to vector<1x1x128xf32>
    %72 = vector.broadcast %71 : vector<1x1x128xf32> to vector<5x5x128xf32>
    %73 = arith.addf %69, %72 : vector<5x5x128xf32>
    %cst_77 = arith.constant 0.000000e+00 : f32
    %74 = vector.broadcast %cst_77 : f32 to vector<5x5x128xf32>
    %75 = arith.maximumf %73, %74 : vector<5x5x128xf32>
    %76 = arith.truncf %75 : vector<5x5x128xf32> to vector<5x5x128xbf16>
    %c0_78 = arith.constant 0 : index
    %c0_79 = arith.constant 0 : index
    %c0_80 = arith.constant 0 : index
    %c0_81 = arith.constant 0 : index
    %77 = vector.load %arg5[%c0_78, %c0_79, %c0_80, %c0_81] : memref<1x5x5x128xbf16, #tpu.memory_space<vmem>>, vector<1x5x5x128xbf16>
    %78 = vector.shape_cast %77 : vector<1x5x5x128xbf16> to vector<5x5x128xbf16>
    %79 = vector.shape_cast %76 : vector<5x5x128xbf16> to vector<1x5x5x128xbf16>
    tpu.vector_store %arg5[%c0_78, %c0_79, %c0_80, %c0_81], %79 {strides = array<i32>} : memref<1x5x5x128xbf16, #tpu.memory_space<vmem>>, vector<1x5x5x128xbf16>,
    return
  }
  func.func @transform_0(%arg0: i32, %arg1: i32) -> (i32, i32, i32, i32) {
    %c1_i32 = arith.constant 1 : i32
    %0 = arith.muli %arg1, %c1_i32 : i32
    %1 = arith.addi %0, %arg0 : i32
    %c0_i32 = arith.constant 0 : i32
    %c0_i32_0 = arith.constant 0 : i32
    %c0_i32_1 = arith.constant 0 : i32
    %c0_i32_2 = arith.constant 0 : i32
    return %1, %c0_i32, %c0_i32_0, %c0_i32_1 : i32, i32, i32, i32
  }
  func.func @transform_1(%arg0: i32, %arg1: i32) -> (i32, i32, i32) {
    %c0_i32 = arith.constant 0 : i32
    %c0_i32_0 = arith.constant 0 : i32
    %c0_i32_1 = arith.constant 0 : i32
    %c0_i32_2 = arith.constant 0 : i32
    return %c0_i32, %c0_i32_0, %c0_i32_1 : i32, i32, i32
  }
  func.func @transform_2(%arg0: i32, %arg1: i32) -> (i32, i32) {
    %c0_i32 = arith.constant 0 : i32
    %c0_i32_0 = arith.constant 0 : i32
    %c0_i32_1 = arith.constant 0 : i32
    return %c0_i32, %c0_i32_0 : i32, i32
  }
  func.func @transform_3(%arg0: i32, %arg1: i32) -> (i32, i32, i32, i32) {
    %c0_i32 = arith.constant 0 : i32
    %c0_i32_0 = arith.constant 0 : i32
    %c0_i32_1 = arith.constant 0 : i32
    return %arg1, %arg0, %c0_i32, %c0_i32_0 : i32, i32, i32, i32
  }
}

</mosaic_0001>

<llo_original>
// kernel: conv_block_forward.1
$region0: #{conv_block_forward.1}
  #allocation0 [shape = 'u32[]', space=smem, size = 0x4, offset = 0x4, fixed_abs, tag = 'smem constant byte address 0x4 - core index']
  #allocation1 [shape = 'u32[144,128]{1,0:T(1,128)}', space=vmem, size = 0x12000, scoped, tag = 'internal scratch']
  #allocation2 [shape = 'f32[5,16,128]{2,1,0:T(8,128)}', space=vmem, size = 0xa000, scoped, tag = 'scratch operand']
  %s0 = inlined_call_operand.vmem [shape: bf16[2,17,18,4], index: 0, kind: input, shape index: {}]
  %s1 = inlined_call_operand.vmem [shape: bf16[9,4,128], index: 1, kind: input, shape index: {}]
  %s2 = inlined_call_operand.vmem [shape: f32[1,128], index: 2, kind: input, shape index: {}]
  %s3 = inlined_call_operand.vmem [shape: bf16[2,5,5,128], index: 3, kind: output, shape index: {}]
  %s4 = sld [smem:[#allocation0]]
  $region45: #{conv_block_forward.1} parent=0
    _
  %s6 = ssub.s32 1, %s4
  %s7 = scalar_select 0, %s6, %s4
  loop: start=0, step=1, limit=4
  $region2: #{conv_block_forward.1} parent=0 // loop_pre_header
    _
  $region3: #{conv_block_forward.1} parent=0 // loop_header
    %s9 = sphi 0, %s13
    %p10 = scmp.ge.s32.totalorder %s9, 4
    %s16 = sphi 0, %s28
    %s17 = sphi 0, %s24
    %s18 = sphi 0, %s16
    %s19 = sphi 0, %s17
    %s20 = sphi 0, %s18
    %s21 = sphi 0, %s19
    %s33 = sphi 0, %s35
    %s36 = sphi 0, %s33
    %s37 = sphi 0, %s36
    %s53 = sphi 0, %s37
    %s57 = sphi 0, %s57
    %s59 = sphi 0, %s57
    %s60 = sphi 0, %s59
    %s74 = sphi 0, %s60
    %s78 = sphi 0, %s78
    %s80 = sphi 0, %s78
    %s81 = sphi 0, %s80
    %s95 = sphi 0, %s81
    %s103 = sphi 0, %s105
    %s106 = sphi 0, %s103
    %s107 = sphi 0, %s106
    %s123 = sphi 0, %s107
  $region4: #{conv_block_forward.1} parent=0 // loop_header_branch
    %12 = sbr.rel (%p10) target = $region8
  $region5: #{conv_block_forward.1} parent=0 // loop_body
    %s14 = ssub.s32 %s9, 1
    %s15 = ssub.s32 %s9, 2
    %s22 = sadd.s32 1, %s17
    %p23 = scmp.ge.s32.totalorder %s22, 2
    %s24 = scalar_select %p23, 0, %s22
    %s25 = sadd.s32 1, %s16
    %s26 = scalar_select %p23, %s25, %s16
    %p27 = scmp.ge.s32.totalorder %s26, 1
    %s28 = scalar_select %p27, 0, %s26
    %s29 = sadd.s32 %s17, %s16
    %s30 = sadd.s32 %s24, %s28
    %s31 = ssub.s32 %s29, %s30
    %p32 = scmp.eq.s32.totalorder %s31, 0
    %s34 = sadd.s32 %s33, 1
    %s35 = scalar_select %p32, %s33, %s34
    %p38 = pneg %p32
    %p39 = scmp.eq.s32.totalorder %s9, 1
    %p40 = por %p38, %p39
    %p41 = scmp.ne.s32.totalorder %s33, %s36
    %p42 = scmp.eq.s32.totalorder %s9, 0
    %p43 = por %p41, %p42
    %p44 = scmp.ne.s32.totalorder %s33, %s36
    %p45 = scmp.eq.s32.totalorder %s14, 1
    %p46 = por %p44, %p45
    %p47 = scmp.ne.s32.totalorder %s36, %s37
    %p48 = scmp.eq.s32.totalorder %s14, 0
    %p49 = por %p47, %p48
    %p50 = scmp.ne.s32.totalorder %s36, %s37
    %p51 = scmp.eq.s32.totalorder %s15, 1
    %p52 = por %p50, %p51
    %p54 = scmp.ne.s32.totalorder %s37, %s53
    %p55 = scmp.eq.s32.totalorder %s15, 0
    %p56 = por %p54, %p55
    %s58 = sadd.s32 %s57, 1
    %p61 = scmp.eq.s32.totalorder %s9, 1
    %p62 = scmp.ne.s32.totalorder %s57, %s59
    %p63 = scmp.eq.s32.totalorder %s9, 0
    %p64 = por %p62, %p63
    %p65 = scmp.ne.s32.totalorder %s57, %s59
    %p66 = scmp.eq.s32.totalorder %s14, 1
    %p67 = por %p65, %p66
    %p68 = scmp.ne.s32.totalorder %s59, %s60
    %p69 = scmp.eq.s32.totalorder %s14, 0
    %p70 = por %p68, %p69
    %p71 = scmp.ne.s32.totalorder %s59, %s60
    %p72 = scmp.eq.s32.totalorder %s15, 1
    %p73 = por %p71, %p72
    %p75 = scmp.ne.s32.totalorder %s60, %s74
    %p76 = scmp.eq.s32.totalorder %s15, 0
    %p77 = por %p75, %p76
    %s79 = sadd.s32 %s78, 1
    %p82 = scmp.eq.s32.totalorder %s9, 1
    %p83 = scmp.ne.s32.totalorder %s78, %s80
    %p84 = scmp.eq.s32.totalorder %s9, 0
    %p85 = por %p83, %p84
    %p86 = scmp.ne.s32.totalorder %s78, %s80
    %p87 = scmp.eq.s32.totalorder %s14, 1
    %p88 = por %p86, %p87
    %p89 = scmp.ne.s32.totalorder %s80, %s81
    %p90 = scmp.eq.s32.totalorder %s14, 0
    %p91 = por %p89, %p90
    %p92 = scmp.ne.s32.totalorder %s80, %s81
    %p93 = scmp.eq.s32.totalorder %s15, 1
    %p94 = por %p92, %p93
    %p96 = scmp.ne.s32.totalorder %s81, %s95
    %p97 = scmp.eq.s32.totalorder %s15, 0
    %p98 = por %p96, %p97
    %s99 = ssub.s32 %s17, %s24
    %s100 = ssub.s32 %s16, %s28
    %s101 = sor.u32 %s99, %s100
    %p102 = scmp.eq.s32.totalorder %s101, 0
    %s104 = sadd.s32 %s103, 1
    %s105 = scalar_select %p102, %s103, %s104
    %p108 = pneg %p102
    %p109 = scmp.eq.s32.totalorder %s9, 1
    %p110 = por %p108, %p109
    %p111 = scmp.ne.s32.totalorder %s103, %s106
    %p112 = scmp.eq.s32.totalorder %s9, 0
    %p113 = por %p111, %p112
    %p114 = scmp.ne.s32.totalorder %s103, %s106
    %p115 = scmp.eq.s32.totalorder %s14, 1
    %p116 = por %p114, %p115
    %p117 = scmp.ne.s32.totalorder %s106, %s107
    %p118 = scmp.eq.s32.totalorder %s14, 0
    %p119 = por %p117, %p118
    %p120 = scmp.ne.s32.totalorder %s106, %s107
    %p121 = scmp.eq.s32.totalorder %s15, 1
    %p122 = por %p120, %p121
    %p124 = scmp.ne.s32.totalorder %s107, %s123
    %p125 = scmp.eq.s32.totalorder %s15, 0
    %p126 = por %p124, %p125
    %p127 = scmp.le.s32.totalorder 1, %s9
    %p128 = scmp.lt.s32.totalorder %s9, 3
    %p129 = pnand %p127, %p128
    %p130 = pneg %p129
    // Predicated region
    $region9: #{conv_block_forward.1} parent=5 // pred_check
      _
    $region10: #{conv_block_forward.1} parent=5 // pred_check_branch
      %132 = sbr.rel (%p129) target = $region12
    $region11: #{conv_block_forward.1} parent=5 // pred_region
      %s133 = ssub.s32 %s9, 1
      // Predicated region
      $region13: #{conv_block_forward.1} parent=11 // pred_check
        %p134 = pneg %p70
      $region14: #{conv_block_forward.1} parent=11 // pred_check_branch
        %136 = sbr.rel (%p134) target = $region16
      $region15: #{conv_block_forward.1} parent=11 // pred_region
        _
      $region16: #{conv_block_forward.1} parent=11 // pred_fallthru
        _
      // Predicated region
      $region17: #{conv_block_forward.1} parent=11 // pred_check
        %p137 = pneg %p91
      $region18: #{conv_block_forward.1} parent=11 // pred_check_branch
        %139 = sbr.rel (%p137) target = $region20
      $region19: #{conv_block_forward.1} parent=11 // pred_region
        _
      $region20: #{conv_block_forward.1} parent=11 // pred_fallthru
        _
    $region12: #{conv_block_forward.1} parent=5 // pred_fallthru
      _
    %p140 = scmp.lt.s32.totalorder %s9, 2
    // Predicated region
    $region21: #{conv_block_forward.1} parent=5 // pred_check
      %p141 = pneg %p140
    $region22: #{conv_block_forward.1} parent=5 // pred_check_branch
      %143 = sbr.rel (%p141) target = $region24
    $region23: #{conv_block_forward.1} parent=5 // pred_region
      // Predicated region
      $region25: #{conv_block_forward.1} parent=23 // pred_check
        %p144 = pneg %p43
      $region26: #{conv_block_forward.1} parent=23 // pred_check_branch
        %146 = sbr.rel (%p144) target = $region28
      $region27: #{conv_block_forward.1} parent=23 // pred_region
        %s147 = sadd.s32 %s17, %s16
        %p148 = scmp.lt.s32.totalorder %s147, 1
        %s149 = scalar_select %p148, %s147, 1
        %s150 = smul.addr %s149, 51
        %s151 = smul.addr %s150, 4
        %s152 = scalar_lea.vmem %s0, %s151
        %s153 = sadd.s32 %s17, %s16
      $region28: #{conv_block_forward.1} parent=23 // pred_fallthru
        _
    $region24: #{conv_block_forward.1} parent=5 // pred_fallthru
      _
    %p154 = scmp.le.s32.totalorder 1, %s9
    %p155 = scmp.lt.s32.totalorder %s9, 3
    %p156 = pnand %p154, %p155
    %p157 = pneg %p156
    // Predicated region
    $region29: #{conv_block_forward.1} parent=5 // pred_check
      _
    $region30: #{conv_block_forward.1} parent=5 // pred_check_branch
      %159 = sbr.rel (%p156) target = $region32
    $region31: #{conv_block_forward.1} parent=5 // pred_region
      %s160 = ssub.s32 %s9, 1
      %s161 = sadd.s32 %s19, %s18
      %p162 = scmp.lt.s32.totalorder %s161, 1
      %s163 = scalar_select %p162, %s161, 1
      %s164 = smul.addr %s163, 51
      %s165 = smul.addr %s164, 4
      %s166 = scalar_lea.vmem %s0, %s165
      %p167 = pneg %p49
      %p168 = pneg %p46
      %p169 = pneg %p70
      %p170 = pneg %p67
      %p171 = pneg %p91
      %p172 = pneg %p88
      %p173 = pneg %p119
      %p174 = pneg %p116
      %s175 = smul.u32 5, %s18
      %p176 = scmp.lt.s32.totalorder %s19, 1
      %s177 = scalar_select %p176, %s19, 1
      %p178 = scmp.lt.s32.totalorder %s175, 4
      %s179 = scalar_select %p178, %s175, 4
      %s180 = smul.addr %s177, 5
      %s181 = sadd.s32 %s179, %s180
      %s182 = smul.addr %s181, 4
      %s183 = scalar_lea.vmem %s3, %s182
      %s184 = sadd.s32 %s19, %s18
      %p185 = scmp.lt.s32.totalorder %s184, 1
      %s186 = scalar_select %p185, %s184, 1
      %s187 = smul.addr %s186, 51
      %s188 = smul.addr %s187, 4
      %s189 = scalar_lea.vmem %s0, %s188
      %s190 = sadd.s32 %s19, %s18
      %s191 = smul.u32 5, %s18
      %p192 = scmp.lt.s32.totalorder %s19, 1
      %s193 = scalar_select %p192, %s19, 1
      %p194 = scmp.lt.s32.totalorder %s191, 4
      %s195 = scalar_select %p194, %s191, 4
      %s196 = smul.addr %s193, 5
      %s197 = sadd.s32 %s195, %s196
      %s198 = smul.addr %s197, 4
      %s199 = scalar_lea.vmem %s3, %s198
      %s200 = smul.u32 5, %s18
      %v202 = vld [vmem:[%s189] sm:$0xf]
      %v203 = vld [vmem:[%s189 + $0x4] sm:$0xf]
      %v204 = vld [vmem:[%s189 + $0xc] sm:$0xf]
      %v205 = vld [vmem:[%s189 + $0x10] sm:$0xf]
      %v206 = vld [vmem:[%s189 + $0x18] sm:$0xf]
      %v207 = vld [vmem:[%s189 + $0x1c] sm:$0xf]
      %v208 = vld [vmem:[%s189 + $0x24] sm:$0xf]
      %v209 = vld [vmem:[%s189 + $0x28] sm:$0xf]
      %v210 = vld [vmem:[%s189 + $0x30] sm:$0xf]
      %v211 = vld [vmem:[%s189 + $0x34] sm:$0xf]
      %v212 = vld [vmem:[%s189 + $0x3c] sm:$0xf]
      %v213 = vld [vmem:[%s189 + $0x40] sm:$0xf]
      %v214 = vld [vmem:[%s189 + $0x48] sm:$0xf]
      %v215 = vld [vmem:[%s189 + $0x4c] sm:$0xf]
      %v216 = vld [vmem:[%s189 + $0x54] sm:$0xf]
      %v217 = vld [vmem:[%s189 + $0x58] sm:$0xf]
      %v218 = vld [vmem:[%s189 + $0x60] sm:$0xf]
      %v219 = vld [vmem:[%s189 + $0x64] sm:$0xf]
      %v220 = vld [vmem:[%s189 + $0x6c] sm:$0xf]
      %v221 = vld [vmem:[%s189 + $0x70] sm:$0xf]
      %v222 = vld [vmem:[%s189 + $0x78] sm:$0xf]
      %v223 = vld [vmem:[%s189 + $0x7c] sm:$0xf]
      %v224 = vld [vmem:[%s189 + $0x84] sm:$0xf]
      %v225 = vld [vmem:[%s189 + $0x88] sm:$0xf]
      %v226 = vld [vmem:[%s189 + $0x90] sm:$0xf]
      %v227 = vld [vmem:[%s189 + $0x94] sm:$0xf]
      %v228 = vld [vmem:[%s189 + $0x9c] sm:$0xf]
      %v229 = vld [vmem:[%s189 + $0xa0] sm:$0xf]
      %v230 = vld [vmem:[%s189 + $0xa8] sm:$0xf]
      %v231 = vld [vmem:[%s189 + $0xac] sm:$0xf]
      %v232 = vld [vmem:[%s1] sm:$0x3]
      %v233 = vld [vmem:[%s189 + $0x8] sm:$0x1]
      %v234 = vld [vmem:[%s189 + $0x14] sm:$0x1]
      %v235 = vld [vmem:[%s189 + $0x20] sm:$0x1]
      %v236 = vld [vmem:[%s189 + $0x2c] sm:$0x1]
      %v237 = vld [vmem:[%s189 + $0x38] sm:$0x1]
      %v238 = vld [vmem:[%s189 + $0x44] sm:$0x1]
      %v239 = vld [vmem:[%s189 + $0x50] sm:$0x1]
      %v240 = vld [vmem:[%s189 + $0x5c] sm:$0x1]
      %v241 = vld [vmem:[%s189 + $0x68] sm:$0x1]
      %v242 = vld [vmem:[%s189 + $0x74] sm:$0x1]
      %v243 = vld [vmem:[%s189 + $0x80] sm:$0x1]
      %v244 = vld [vmem:[%s189 + $0x8c] sm:$0x1]
      %v245 = vld [vmem:[%s189 + $0x98] sm:$0x1]
      %v246 = vld [vmem:[%s189 + $0xa4] sm:$0x1]
      %v247 = vld [vmem:[%s189 + $0xb0] sm:$0x1]
      %vm248 = vsmask.f32 3328
      %vm249 = vsmask.f32 7440
      %vm250 = vmor %vm248, %vm249
      %v252 = vshrl.u32 %v202, 16
      %v254 = vrot.slane %v252, 4
      %v255 = vshll.u32 %v202, 16
      %v257 = vrot.slane %v255, 5
      %v258 = vor.u32 %v254, %v257
      %v259 = vrot.slane %v258, 4
      %v261 = vshll.u32 %v203, 16
      %v263 = vrot.slane %v261, 5
      %v264 = vsel %vm250, %v259, %v263
      %v265 = vshrl.u32 %v203, 16
      %v267 = vrot.slane %v265, 4
      %v268 = vor.u32 %v267, %v263
      %v269 = vrot.slane %v268, 4
      %v271 = vshll.u32 %v233, 16
      %v273 = vrot.slane %v271, 5
      %v274 = vsel %vm250, %v269, %v273
      %v276 = vshrl.u32 %v204, 16
      %v278 = vrot.slane %v276, 4
      %v279 = vshll.u32 %v204, 16
      %v281 = vrot.slane %v279, 5
      %v282 = vor.u32 %v278, %v281
      %v283 = vrot.slane %v282, 4
      %v285 = vshll.u32 %v205, 16
      %v287 = vrot.slane %v285, 5
      %v288 = vsel %vm250, %v283, %v287
      %v289 = vshrl.u32 %v205, 16
      %v291 = vrot.slane %v289, 4
      %v292 = vor.u32 %v291, %v287
      %v293 = vrot.slane %v292, 4
      %v295 = vshll.u32 %v234, 16
      %v297 = vrot.slane %v295, 5
      %v298 = vsel %vm250, %v293, %v297
      %v300 = vshrl.u32 %v206, 16
      %v302 = vrot.slane %v300, 4
      %v303 = vshll.u32 %v206, 16
      %v305 = vrot.slane %v303, 5
      %v306 = vor.u32 %v302, %v305
      %v307 = vrot.slane %v306, 4
      %v309 = vshll.u32 %v207, 16
      %v311 = vrot.slane %v309, 5
      %v312 = vsel %vm250, %v307, %v311
      %v313 = vshrl.u32 %v207, 16
      %v315 = vrot.slane %v313, 4
      %v316 = vor.u32 %v315, %v311
      %v317 = vrot.slane %v316, 4
      %v319 = vshll.u32 %v235, 16
      %v321 = vrot.slane %v319, 5
      %v322 = vsel %vm250, %v317, %v321
      %v324 = vshrl.u32 %v208, 16
      %v326 = vrot.slane %v324, 4
      %v327 = vshll.u32 %v208, 16
      %v329 = vrot.slane %v327, 5
      %v330 = vor.u32 %v326, %v329
      %v331 = vrot.slane %v330, 4
      %v333 = vshll.u32 %v209, 16
      %v335 = vrot.slane %v333, 5
      %v336 = vsel %vm250, %v331, %v335
      %v337 = vshrl.u32 %v209, 16
      %v339 = vrot.slane %v337, 4
      %v340 = vor.u32 %v339, %v335
      %v341 = vrot.slane %v340, 4
      %v343 = vshll.u32 %v236, 16
      %v345 = vrot.slane %v343, 5
      %v346 = vsel %vm250, %v341, %v345
      %v348 = vshrl.u32 %v210, 16
      %v350 = vrot.slane %v348, 4
      %v351 = vshll.u32 %v210, 16
      %v353 = vrot.slane %v351, 5
      %v354 = vor.u32 %v350, %v353
      %v355 = vrot.slane %v354, 4
      %v357 = vshll.u32 %v211, 16
      %v359 = vrot.slane %v357, 5
      %v360 = vsel %vm250, %v355, %v359
      %v361 = vshrl.u32 %v211, 16
      %v363 = vrot.slane %v361, 4
      %v364 = vor.u32 %v363, %v359
      %v365 = vrot.slane %v364, 4
      %v367 = vshll.u32 %v237, 16
      %v369 = vrot.slane %v367, 5
      %v370 = vsel %vm250, %v365, %v369
      %v372 = vshrl.u32 %v212, 16
      %v374 = vrot.slane %v372, 4
      %v375 = vshll.u32 %v212, 16
      %v377 = vrot.slane %v375, 5
      %v378 = vor.u32 %v374, %v377
      %v379 = vrot.slane %v378, 4
      %v381 = vshll.u32 %v213, 16
      %v383 = vrot.slane %v381, 5
      %v384 = vsel %vm250, %v379, %v383
      %v385 = vshrl.u32 %v213, 16
      %v387 = vrot.slane %v385, 4
      %v388 = vor.u32 %v387, %v383
      %v389 = vrot.slane %v388, 4
      %v391 = vshll.u32 %v238, 16
      %v393 = vrot.slane %v391, 5
      %v394 = vsel %vm250, %v389, %v393
      %v396 = vshrl.u32 %v214, 16
      %v398 = vrot.slane %v396, 4
      %v399 = vshll.u32 %v214, 16
      %v401 = vrot.slane %v399, 5
      %v402 = vor.u32 %v398, %v401
      %v403 = vrot.slane %v402, 4
      %v405 = vshll.u32 %v215, 16
      %v407 = vrot.slane %v405, 5
      %v408 = vsel %vm250, %v403, %v407
      %v409 = vshrl.u32 %v215, 16
      %v411 = vrot.slane %v409, 4
      %v412 = vor.u32 %v411, %v407
      %v413 = vrot.slane %v412, 4
      %v415 = vshll.u32 %v239, 16
      %v417 = vrot.slane %v415, 5
      %v418 = vsel %vm250, %v413, %v417
      %v420 = vshrl.u32 %v216, 16
      %v422 = vrot.slane %v420, 4
      %v423 = vshll.u32 %v216, 16
      %v425 = vrot.slane %v423, 5
      %v426 = vor.u32 %v422, %v425
      %v427 = vrot.slane %v426, 4
      %v429 = vshll.u32 %v217, 16
      %v431 = vrot.slane %v429, 5
      %v432 = vsel %vm250, %v427, %v431
      %v433 = vshrl.u32 %v217, 16
      %v435 = vrot.slane %v433, 4
      %v436 = vor.u32 %v435, %v431
      %v437 = vrot.slane %v436, 4
      %v439 = vshll.u32 %v240, 16
      %v441 = vrot.slane %v439, 5
      %v442 = vsel %vm250, %v437, %v441
      %v444 = vshrl.u32 %v218, 16
      %v446 = vrot.slane %v444, 4
      %v447 = vshll.u32 %v218, 16
      %v449 = vrot.slane %v447, 5
      %v450 = vor.u32 %v446, %v449
      %v451 = vrot.slane %v450, 4
      %v453 = vshll.u32 %v219, 16
      %v455 = vrot.slane %v453, 5
      %v456 = vsel %vm250, %v451, %v455
      %v457 = vshrl.u32 %v219, 16
      %v459 = vrot.slane %v457, 4
      %v460 = vor.u32 %v459, %v455
      %v461 = vrot.slane %v460, 4
      %v463 = vshll.u32 %v241, 16
      %v465 = vrot.slane %v463, 5
      %v466 = vsel %vm250, %v461, %v465
      %v468 = vshrl.u32 %v220, 16
      %v470 = vrot.slane %v468, 4
      %v471 = vshll.u32 %v220, 16
      %v473 = vrot.slane %v471, 5
      %v474 = vor.u32 %v470, %v473
      %v475 = vrot.slane %v474, 4
      %v477 = vshll.u32 %v221, 16
      %v479 = vrot.slane %v477, 5
      %v480 = vsel %vm250, %v475, %v479
      %v481 = vshrl.u32 %v221, 16
      %v483 = vrot.slane %v481, 4
      %v484 = vor.u32 %v483, %v479
      %v485 = vrot.slane %v484, 4
      %v487 = vshll.u32 %v242, 16
      %v489 = vrot.slane %v487, 5
      %v490 = vsel %vm250, %v485, %v489
      %v492 = vshrl.u32 %v222, 16
      %v494 = vrot.slane %v492, 4
      %v495 = vshll.u32 %v222, 16
      %v497 = vrot.slane %v495, 5
      %v498 = vor.u32 %v494, %v497
      %v499 = vrot.slane %v498, 4
      %v501 = vshll.u32 %v223, 16
      %v503 = vrot.slane %v501, 5
      %v504 = vsel %vm250, %v499, %v503
      %v505 = vshrl.u32 %v223, 16
      %v507 = vrot.slane %v505, 4
      %v508 = vor.u32 %v507, %v503
      %v509 = vrot.slane %v508, 4
      %v511 = vshll.u32 %v243, 16
      %v513 = vrot.slane %v511, 5
      %v514 = vsel %vm250, %v509, %v513
      %v516 = vshrl.u32 %v224, 16
      %v518 = vrot.slane %v516, 4
      %v519 = vshll.u32 %v224, 16
      %v521 = vrot.slane %v519, 5
      %v522 = vor.u32 %v518, %v521
      %v523 = vrot.slane %v522, 4
      %v525 = vshll.u32 %v225, 16
      %v527 = vrot.slane %v525, 5
      %v528 = vsel %vm250, %v523, %v527
      %v529 = vshrl.u32 %v225, 16
      %v531 = vrot.slane %v529, 4
      %v532 = vor.u32 %v531, %v527
      %v533 = vrot.slane %v532, 4
      %v535 = vshll.u32 %v244, 16
      %v537 = vrot.slane %v535, 5
      %v538 = vsel %vm250, %v533, %v537
      %v540 = vshrl.u32 %v226, 16
      %v542 = vrot.slane %v540, 4
      %v543 = vshll.u32 %v226, 16
      %v545 = vrot.slane %v543, 5
      %v546 = vor.u32 %v542, %v545
      %v547 = vrot.slane %v546, 4
      %v549 = vshll.u32 %v227, 16
      %v551 = vrot.slane %v549, 5
      %v552 = vsel %vm250, %v547, %v551
      %v553 = vshrl.u32 %v227, 16
      %v555 = vrot.slane %v553, 4
      %v556 = vor.u32 %v555, %v551
      %v557 = vrot.slane %v556, 4
      %v559 = vshll.u32 %v245, 16
      %v561 = vrot.slane %v559, 5
      %v562 = vsel %vm250, %v557, %v561
      %v564 = vshrl.u32 %v228, 16
      %v566 = vrot.slane %v564, 4
      %v567 = vshll.u32 %v228, 16
      %v569 = vrot.slane %v567, 5
      %v570 = vor.u32 %v566, %v569
      %v571 = vrot.slane %v570, 4
      %v573 = vshll.u32 %v229, 16
      %v575 = vrot.slane %v573, 5
      %v576 = vsel %vm250, %v571, %v575
      %v577 = vshrl.u32 %v229, 16
      %v579 = vrot.slane %v577, 4
      %v580 = vor.u32 %v579, %v575
      %v581 = vrot.slane %v580, 4
      %v583 = vshll.u32 %v246, 16
      %v585 = vrot.slane %v583, 5
      %v586 = vsel %vm250, %v581, %v585
      %v588 = vshrl.u32 %v230, 16
      %v590 = vrot.slane %v588, 4
      %v591 = vshll.u32 %v230, 16
      %v593 = vrot.slane %v591, 5
      %v594 = vor.u32 %v590, %v593
      %v595 = vrot.slane %v594, 4
      %v597 = vshll.u32 %v231, 16
      %v599 = vrot.slane %v597, 5
      %v600 = vsel %vm250, %v595, %v599
      %v601 = vshrl.u32 %v231, 16
      %v603 = vrot.slane %v601, 4
      %v604 = vor.u32 %v603, %v599
      %v605 = vrot.slane %v604, 4
      %v607 = vshll.u32 %v247, 16
      %v609 = vrot.slane %v607, 5
      %v610 = vsel %vm250, %v605, %v609
      %s611 = scalar_lea.vmem %s1, 2
      %v612 = vld [vmem:[%s611] sm:$0x3]
      %v613 = vunpack.c.l.b16 %v264
      %v614 = vunpack.c.l.b16 %v274
      %v615 = vunpack.c.l.b16 %v288
      %v616 = vunpack.c.l.b16 %v298
      %v617 = vunpack.c.l.b16 %v312
      %v618 = vunpack.c.l.b16 %v322
      %v619 = vunpack.c.l.b16 %v336
      %v620 = vunpack.c.l.b16 %v346
      %v621 = vunpack.c.l.b16 %v360
      %v622 = vunpack.c.l.b16 %v370
      %v623 = vunpack.c.l.b16 %v384
      %v624 = vunpack.c.l.b16 %v394
      %v625 = vunpack.c.l.b16 %v408
      %v626 = vunpack.c.l.b16 %v418
      %v627 = vunpack.c.l.b16 %v432
      %v628 = vunpack.c.l.b16 %v442
      %v629 = vunpack.c.l.b16 %v456
      %v630 = vunpack.c.l.b16 %v466
      %v631 = vunpack.c.l.b16 %v480
      %v632 = vunpack.c.l.b16 %v490
      %v633 = vunpack.c.l.b16 %v504
      %v634 = vunpack.c.l.b16 %v514
      %v635 = vunpack.c.l.b16 %v528
      %v636 = vunpack.c.l.b16 %v538
      %v637 = vunpack.c.l.b16 %v552
      %v638 = vunpack.c.l.b16 %v562
      %v639 = vunpack.c.l.b16 %v576
      %v640 = vunpack.c.l.b16 %v586
      %v641 = vunpack.c.l.b16 %v600
      %v642 = vunpack.c.l.b16 %v610
      %v643 = vpack.c.b16 %v614, %v613
      %v644 = vpack.c.b16 %v616, %v615
      %v645 = vpack.c.b16 %v618, %v617
      %v646 = vpack.c.b16 %v620, %v619
      %v647 = vpack.c.b16 %v622, %v621
      %v648 = vpack.c.b16 %v624, %v623
      %v649 = vpack.c.b16 %v626, %v625
      %v650 = vpack.c.b16 %v628, %v627
      %v651 = vpack.c.b16 %v630, %v629
      %v652 = vpack.c.b16 %v632, %v631
      %v653 = vpack.c.b16 %v634, %v633
      %v654 = vpack.c.b16 %v636, %v635
      %v655 = vpack.c.b16 %v638, %v637
      %v656 = vpack.c.b16 %v640, %v639
      %v657 = vpack.c.b16 %v642, %v641
      %vm658 = vcmask 31744
      %v660 = vsel %vm658, %v643, 0
      %v663 = vsel %vm658, %v644, 0
      %v666 = vsel %vm658, %v645, 0
      %v669 = vsel %vm658, %v646, 0
      %v672 = vsel %vm658, %v647, 0
      %v675 = vsel %vm658, %v648, 0
      %v678 = vsel %vm658, %v649, 0
      %v681 = vsel %vm658, %v650, 0
      %v684 = vsel %vm658, %v651, 0
      %v687 = vsel %vm658, %v652, 0
      %v690 = vsel %vm658, %v653, 0
      %v693 = vsel %vm658, %v654, 0
      %v696 = vsel %vm658, %v655, 0
      %v699 = vsel %vm658, %v656, 0
      %v702 = vsel %vm658, %v657, 0
      %vm704 = vcmask 1041408
      %v706 = vsel %vm704, %v612, 0
      %708 = vmatprep.subr.bf16.mxu0 0
      %709 = vmatpush1.bf16.msra.mxu0 %v706
      %710 = vmatprep.subr.bf16.mxu0 0
      %711 = vmatpush1.bf16.msra.mxu0 0
      %712 = vmatprep.subr.bf16.mxu0 0
      %713 = vmatpush1.bf16.msra.mxu0 0
      %714 = vmatprep.subr.bf16.mxu0 0
      %715 = vmatpush1.bf16.msra.mxu0 0
      %716 = vmatprep.subr.bf16.mxu0 0
      %717 = vmatpush1.bf16.msra.mxu0 0
      %718 = vmatprep.subr.bf16.mxu0 0
      %719 = vmatpush1.bf16.msra.mxu0 0
      %720 = vmatprep.subr.bf16.mxu0 0
      %721 = vmatpush1.bf16.msra.mxu0 0
      %722 = vmatprep.subr.bf16.mxu0 0
      %723 = vmatpush1.bf16.msra.mxu0 0
      %724 = vmatprep.subr.bf16.mxu0 0
      %725 = vmatpush1.bf16.msra.mxu0 0
      %726 = vmatprep.subr.bf16.mxu0 0
      %727 = vmatpush1.bf16.msra.mxu0 0
      %728 = vmatprep.subr.bf16.mxu0 0
      %729 = vmatpush1.bf16.msra.mxu0 0
      %730 = vmatprep.subr.bf16.mxu0 0
      %731 = vmatpush1.bf16.msra.mxu0 0
      %732 = vmatprep.subr.bf16.mxu0 0
      %733 = vmatpush1.bf16.msra.mxu0 0
      %734 = vmatprep.subr.bf16.mxu0 0
      %735 = vmatpush1.bf16.msra.mxu0 0
      %736 = vmatprep.subr.bf16.mxu0 0
      %737 = vmatpush1.bf16.msra.mxu0 0
      %738 = vmatprep.subr.bf16.mxu0 0
      %739 = vmatpush1.bf16.msra.mxu0 0
      %740 = vmatprep.mubr.bf16.mxu0 0
      %741 = vmatmul.mubr.bf16.gmra.mrb[0].mxu0 %v660
      %v742 = vpop.f32.mrb[0].mxu0
      %v743 = vadd.f32 0.0, %v742
      %v744 = vpop.f32.mrb[0].mxu0
      %v745 = vpop.f32.mrb[0].mxu0
      %v746 = vadd.f32 0.0, %v745
      %v747 = vpop.f32.mrb[0].mxu0
      %748 = vmatprep.mubr.bf16.mxu0 0
      %749 = vmatmul.mubr.bf16.gmra.mrb[0].mxu0 %v663
      %v750 = vpop.f32.mrb[0].mxu0
      %v751 = vadd.f32 0.0, %v750
      %v752 = vpop.f32.mrb[0].mxu0
      %v753 = vpop.f32.mrb[0].mxu0
      %v754 = vadd.f32 0.0, %v753
      %v755 = vpop.f32.mrb[0].mxu0
      %756 = vmatprep.mubr.bf16.mxu0 0
      %757 = vmatmul.mubr.bf16.gmra.mrb[0].mxu0 %v666
      %v758 = vpop.f32.mrb[0].mxu0
      %v759 = vadd.f32 0.0, %v758
      %v760 = vpop.f32.mrb[0].mxu0
      %v761 = vpop.f32.mrb[0].mxu0
      %v762 = vadd.f32 0.0, %v761
      %v763 = vpop.f32.mrb[0].mxu0
      %764 = vmatprep.mubr.bf16.mxu0 0
      %765 = vmatmul.mubr.bf16.gmra.mrb[0].mxu0 %v669
      %v766 = vpop.f32.mrb[0].mxu0
      %v767 = vadd.f32 0.0, %v766
      %v768 = vpop.f32.mrb[0].mxu0
      %v769 = vpop.f32.mrb[0].mxu0
      %v770 = vadd.f32 0.0, %v769
      %v771 = vpop.f32.mrb[0].mxu0
      %772 = vmatprep.mubr.bf16.mxu0 0
      %773 = vmatmul.mubr.bf16.gmra.mrb[0].mxu0 %v672
      %v774 = vpop.f32.mrb[0].mxu0
      %v775 = vadd.f32 0.0, %v774
      %v776 = vpop.f32.mrb[0].mxu0
      %v777 = vpop.f32.mrb[0].mxu0
      %v778 = vadd.f32 0.0, %v777
      %v779 = vpop.f32.mrb[0].mxu0
      %780 = vmatprep.mubr.bf16.mxu0 0
      %781 = vmatmul.mubr.bf16.gmra.mrb[0].mxu0 %v675
      %v782 = vpop.f32.mrb[0].mxu0
      %v783 = vadd.f32 0.0, %v782
      %v784 = vpop.f32.mrb[0].mxu0
      %v785 = vpop.f32.mrb[0].mxu0
      %v786 = vadd.f32 0.0, %v785
      %v787 = vpop.f32.mrb[0].mxu0
      %788 = vmatprep.mubr.bf16.mxu0 0
      %789 = vmatmul.mubr.bf16.gmra.mrb[0].mxu0 %v678
      %v790 = vpop.f32.mrb[0].mxu0
      %v791 = vadd.f32 0.0, %v790
      %v792 = vpop.f32.mrb[0].mxu0
      %v793 = vpop.f32.mrb[0].mxu0
      %v794 = vadd.f32 0.0, %v793
      %v795 = vpop.f32.mrb[0].mxu0
      %796 = vmatprep.mubr.bf16.mxu0 0
      %797 = vmatmul.mubr.bf16.gmra.mrb[0].mxu0 %v681
      %v798 = vpop.f32.mrb[0].mxu0
      %v799 = vadd.f32 0.0, %v798
      %v800 = vpop.f32.mrb[0].mxu0
      %v801 = vpop.f32.mrb[0].mxu0
      %v802 = vadd.f32 0.0, %v801
      %v803 = vpop.f32.mrb[0].mxu0
      %804 = vmatprep.mubr.bf16.mxu0 0
      %805 = vmatmul.mubr.bf16.gmra.mrb[0].mxu0 %v684
      %v806 = vpop.f32.mrb[0].mxu0
      %v807 = vadd.f32 0.0, %v806
      %v808 = vpop.f32.mrb[0].mxu0
      %v809 = vpop.f32.mrb[0].mxu0
      %v810 = vadd.f32 0.0, %v809
      %v811 = vpop.f32.mrb[0].mxu0
      %812 = vmatprep.mubr.bf16.mxu0 0
      %813 = vmatmul.mubr.bf16.gmra.mrb[0].mxu0 %v687
      %v814 = vpop.f32.mrb[0].mxu0
      %v815 = vadd.f32 0.0, %v814
      %v816 = vpop.f32.mrb[0].mxu0
      %v817 = vpop.f32.mrb[0].mxu0
      %v818 = vadd.f32 0.0, %v817
      %v819 = vpop.f32.mrb[0].mxu0
      %820 = vmatprep.mubr.bf16.mxu0 0
      %821 = vmatmul.mubr.bf16.gmra.mrb[0].mxu0 %v690
      %v822 = vpop.f32.mrb[0].mxu0
      %v823 = vadd.f32 0.0, %v822
      %v824 = vpop.f32.mrb[0].mxu0
      %v825 = vpop.f32.mrb[0].mxu0
      %v826 = vadd.f32 0.0, %v825
      %v827 = vpop.f32.mrb[0].mxu0
      %828 = vmatprep.mubr.bf16.mxu0 0
      %829 = vmatmul.mubr.bf16.gmra.mrb[0].mxu0 %v693
      %v830 = vpop.f32.mrb[0].mxu0
      %v831 = vadd.f32 0.0, %v830
      %v832 = vpop.f32.mrb[0].mxu0
      %v833 = vpop.f32.mrb[0].mxu0
      %v834 = vadd.f32 0.0, %v833
      %v835 = vpop.f32.mrb[0].mxu0
      %836 = vmatprep.mubr.bf16.mxu0 0
      %837 = vmatmul.mubr.bf16.gmra.mrb[0].mxu0 %v696
      %v838 = vpop.f32.mrb[0].mxu0
      %v839 = vadd.f32 0.0, %v838
      %v840 = vpop.f32.mrb[0].mxu0
      %v841 = vpop.f32.mrb[0].mxu0
      %v842 = vadd.f32 0.0, %v841
      %v843 = vpop.f32.mrb[0].mxu0
      %844 = vmatprep.mubr.bf16.mxu0 0
      %845 = vmatmul.mubr.bf16.gmra.mrb[0].mxu0 %v699
      %v846 = vpop.f32.mrb[0].mxu0
      %v847 = vadd.f32 0.0, %v846
      %v848 = vpop.f32.mrb[0].mxu0
      %v849 = vpop.f32.mrb[0].mxu0
      %v850 = vadd.f32 0.0, %v849
      %v851 = vpop.f32.mrb[0].mxu0
      %852 = vmatprep.mubr.bf16.mxu0 0
      %853 = vmatmul.mubr.bf16.gmra.mrb[0].mxu0 %v702
      %v854 = vpop.f32.mrb[0].mxu0
      %v855 = vadd.f32 0.0, %v854
      %v856 = vpop.f32.mrb[0].mxu0
      %v857 = vpop.f32.mrb[0].mxu0
      %v858 = vadd.f32 0.0, %v857
      %v859 = vpop.f32.mrb[0].mxu0
      %860 = vdwg.mxu0
      %v891 = vunpack.c.l.b16 %v202
      %v892 = vunpack.c.l.b16 %v203
      %v893 = vunpack.c.l.b16 %v204
      %v894 = vunpack.c.l.b16 %v205
      %v895 = vunpack.c.l.b16 %v206
      %v896 = vunpack.c.l.b16 %v207
      %v897 = vunpack.c.l.b16 %v208
      %v898 = vunpack.c.l.b16 %v209
      %v899 = vunpack.c.l.b16 %v210
      %v900 = vunpack.c.l.b16 %v211
      %v901 = vunpack.c.l.b16 %v212
      %v902 = vunpack.c.l.b16 %v213
      %v903 = vunpack.c.l.b16 %v214
      %v904 = vunpack.c.l.b16 %v215
      %v905 = vunpack.c.l.b16 %v216
      %v906 = vunpack.c.l.b16 %v217
      %v907 = vunpack.c.l.b16 %v218
      %v908 = vunpack.c.l.b16 %v219
      %v909 = vunpack.c.l.b16 %v220
      %v910 = vunpack.c.l.b16 %v221
      %v911 = vunpack.c.l.b16 %v222
      %v912 = vunpack.c.l.b16 %v223
      %v913 = vunpack.c.l.b16 %v224
      %v914 = vunpack.c.l.b16 %v225
      %v915 = vunpack.c.l.b16 %v226
      %v916 = vunpack.c.l.b16 %v227
      %v917 = vunpack.c.l.b16 %v228
      %v918 = vunpack.c.l.b16 %v229
      %v919 = vunpack.c.l.b16 %v230
      %v920 = vunpack.c.l.b16 %v231
      %v921 = vpack.c.b16 %v892, %v891
      %v922 = vpack.c.b16 %v894, %v893
      %v923 = vpack.c.b16 %v896, %v895
      %v924 = vpack.c.b16 %v898, %v897
      %v925 = vpack.c.b16 %v900, %v899
      %v926 = vpack.c.b16 %v902, %v901
      %v927 = vpack.c.b16 %v904, %v903
      %v928 = vpack.c.b16 %v906, %v905
      %v929 = vpack.c.b16 %v908, %v907
      %v930 = vpack.c.b16 %v910, %v909
      %v931 = vpack.c.b16 %v912, %v911
      %v932 = vpack.c.b16 %v914, %v913
      %v933 = vpack.c.b16 %v916, %v915
      %v934 = vpack.c.b16 %v918, %v917
      %v935 = vpack.c.b16 %v920, %v919
      %v937 = vsel %vm658, %v921, 0
      %v940 = vsel %vm658, %v922, 0
      %v943 = vsel %vm658, %v923, 0
      %v946 = vsel %vm658, %v924, 0
      %v949 = vsel %vm658, %v925, 0
      %v952 = vsel %vm658, %v926, 0
      %v955 = vsel %vm658, %v927, 0
      %v958 = vsel %vm658, %v928, 0
      %v961 = vsel %vm658, %v929, 0
      %v964 = vsel %vm658, %v930, 0
      %v967 = vsel %vm658, %v931, 0
      %v970 = vsel %vm658, %v932, 0
      %v973 = vsel %vm658, %v933, 0
      %v976 = vsel %vm658, %v934, 0
      %v979 = vsel %vm658, %v935, 0
      %v982 = vsel %vm704, %v232, 0
      %984 = vmatprep.subr.bf16.mxu0 0
      %985 = vmatpush1.bf16.msra.mxu0 %v982
      %986 = vmatprep.subr.bf16.mxu0 0
      %987 = vmatpush1.bf16.msra.mxu0 0
      %988 = vmatprep.subr.bf16.mxu0 0
      %989 = vmatpush1.bf16.msra.mxu0 0
      %990 = vmatprep.subr.bf16.mxu0 0
      %991 = vmatpush1.bf16.msra.mxu0 0
      %992 = vmatprep.subr.bf16.mxu0 0
      %993 = vmatpush1.bf16.msra.mxu0 0
      %994 = vmatprep.subr.bf16.mxu0 0
      %995 = vmatpush1.bf16.msra.mxu0 0
      %996 = vmatprep.subr.bf16.mxu0 0
      %997 = vmatpush1.bf16.msra.mxu0 0
      %998 = vmatprep.subr.bf16.mxu0 0
      %999 = vmatpush1.bf16.msra.mxu0 0
      %1000 = vmatprep.subr.bf16.mxu0 0
      %1001 = vmatpush1.bf16.msra.mxu0 0
      %1002 = vmatprep.subr.bf16.mxu0 0
      %1003 = vmatpush1.bf16.msra.mxu0 0
      %1004 = vmatprep.subr.bf16.mxu0 0
      %1005 = vmatpush1.bf16.msra.mxu0 0
      %1006 = vmatprep.subr.bf16.mxu0 0
      %1007 = vmatpush1.bf16.msra.mxu0 0
      %1008 = vmatprep.subr.bf16.mxu0 0
      %1009 = vmatpush1.bf16.msra.mxu0 0
      %1010 = vmatprep.subr.bf16.mxu0 0
      %1011 = vmatpush1.bf16.msra.mxu0 0
      %1012 = vmatprep.subr.bf16.mxu0 0
      %1013 = vmatpush1.bf16.msra.mxu0 0
      %1014 = vmatprep.subr.bf16.mxu0 0
      %1015 = vmatpush1.bf16.msra.mxu0 0
      %1016 = vmatprep.mubr.bf16.mxu0 0
      %1017 = vmatmul.mubr.bf16.gmra.mrb[0].mxu0 %v937
      %v1018 = vpop.f32.mrb[0].mxu0
      %v1019 = vadd.f32 %v743, %v1018
      %v1020 = vpop.f32.mrb[0].mxu0
      %v1021 = vpop.f32.mrb[0].mxu0
      %v1022 = vadd.f32 %v746, %v1021
      %v1023 = vpop.f32.mrb[0].mxu0
      %1024 = vmatprep.mubr.bf16.mxu0 0
      %1025 = vmatmul.mubr.bf16.gmra.mrb[0].mxu0 %v940
      %v1026 = vpop.f32.mrb[0].mxu0
      %v1027 = vadd.f32 %v751, %v1026
      %v1028 = vpop.f32.mrb[0].mxu0
      %v1029 = vpop.f32.mrb[0].mxu0
      %v1030 = vadd.f32 %v754, %v1029
      %v1031 = vpop.f32.mrb[0].mxu0
      %1032 = vmatprep.mubr.bf16.mxu0 0
      %1033 = vmatmul.mubr.bf16.gmra.mrb[0].mxu0 %v943
      %v1034 = vpop.f32.mrb[0].mxu0
      %v1035 = vadd.f32 %v759, %v1034
      %v1036 = vpop.f32.mrb[0].mxu0
      %v1037 = vpop.f32.mrb[0].mxu0
      %v1038 = vadd.f32 %v762, %v1037
      %v1039 = vpop.f32.mrb[0].mxu0
      %1040 = vmatprep.mubr.bf16.mxu0 0
      %1041 = vmatmul.mubr.bf16.gmra.mrb[0].mxu0 %v946
      %v1042 = vpop.f32.mrb[0].mxu0
      %v1043 = vadd.f32 %v767, %v1042
      %v1044 = vpop.f32.mrb[0].mxu0
      %v1045 = vpop.f32.mrb[0].mxu0
      %v1046 = vadd.f32 %v770, %v1045
      %v1047 = vpop.f32.mrb[0].mxu0
      %1048 = vmatprep.mubr.bf16.mxu0 0
      %1049 = vmatmul.mubr.bf16.gmra.mrb[0].mxu0 %v949
      %v1050 = vpop.f32.mrb[0].mxu0
      %v1051 = vadd.f32 %v775, %v1050
      %v1052 = vpop.f32.mrb[0].mxu0
      %v1053 = vpop.f32.mrb[0].mxu0
      %v1054 = vadd.f32 %v778, %v1053
      %v1055 = vpop.f32.mrb[0].mxu0
      %1056 = vmatprep.mubr.bf16.mxu0 0
      %1057 = vmatmul.mubr.bf16.gmra.mrb[0].mxu0 %v952
      %v1058 = vpop.f32.mrb[0].mxu0
      %v1059 = vadd.f32 %v783, %v1058
      %v1060 = vpop.f32.mrb[0].mxu0
      %v1061 = vpop.f32.mrb[0].mxu0
      %v1062 = vadd.f32 %v786, %v1061
      %v1063 = vpop.f32.mrb[0].mxu0
      %1064 = vmatprep.mubr.bf16.mxu0 0
      %1065 = vmatmul.mubr.bf16.gmra.mrb[0].mxu0 %v955
      %v1066 = vpop.f32.mrb[0].mxu0
      %v1067 = vadd.f32 %v791, %v1066
      %v1068 = vpop.f32.mrb[0].mxu0
      %v1069 = vpop.f32.mrb[0].mxu0
      %v1070 = vadd.f32 %v794, %v1069
      %v1071 = vpop.f32.mrb[0].mxu0
      %1072 = vmatprep.mubr.bf16.mxu0 0
      %1073 = vmatmul.mubr.bf16.gmra.mrb[0].mxu0 %v958
      %v1074 = vpop.f32.mrb[0].mxu0
      %v1075 = vadd.f32 %v799, %v1074
      %v1076 = vpop.f32.mrb[0].mxu0
      %v1077 = vpop.f32.mrb[0].mxu0
      %v1078 = vadd.f32 %v802, %v1077
      %v1079 = vpop.f32.mrb[0].mxu0
      %1080 = vmatprep.mubr.bf16.mxu0 0
      %1081 = vmatmul.mubr.bf16.gmra.mrb[0].mxu0 %v961
      %v1082 = vpop.f32.mrb[0].mxu0
      %v1083 = vadd.f32 %v807, %v1082
      %v1084 = vpop.f32.mrb[0].mxu0
      %v1085 = vpop.f32.mrb[0].mxu0
      %v1086 = vadd.f32 %v810, %v1085
      %v1087 = vpop.f32.mrb[0].mxu0
      %1088 = vmatprep.mubr.bf16.mxu0 0
      %1089 = vmatmul.mubr.bf16.gmra.mrb[0].mxu0 %v964
      %v1090 = vpop.f32.mrb[0].mxu0
      %v1091 = vadd.f32 %v815, %v1090
      %v1092 = vpop.f32.mrb[0].mxu0
      %v1093 = vpop.f32.mrb[0].mxu0
      %v1094 = vadd.f32 %v818, %v1093
      %v1095 = vpop.f32.mrb[0].mxu0
      %1096 = vmatprep.mubr.bf16.mxu0 0
      %1097 = vmatmul.mubr.bf16.gmra.mrb[0].mxu0 %v967
      %v1098 = vpop.f32.mrb[0].mxu0
      %v1099 = vadd.f32 %v823, %v1098
      %v1100 = vpop.f32.mrb[0].mxu0
      %v1101 = vpop.f32.mrb[0].mxu0
      %v1102 = vadd.f32 %v826, %v1101
      %v1103 = vpop.f32.mrb[0].mxu0
      %1104 = vmatprep.mubr.bf16.mxu0 0
      %1105 = vmatmul.mubr.bf16.gmra.mrb[0].mxu0 %v970
      %v1106 = vpop.f32.mrb[0].mxu0
      %v1107 = vadd.f32 %v831, %v1106
      %v1108 = vpop.f32.mrb[0].mxu0
      %v1109 = vpop.f32.mrb[0].mxu0
      %v1110 = vadd.f32 %v834, %v1109
      %v1111 = vpop.f32.mrb[0].mxu0
      %1112 = vmatprep.mubr.bf16.mxu0 0
      %1113 = vmatmul.mubr.bf16.gmra.mrb[0].mxu0 %v973
      %v1114 = vpop.f32.mrb[0].mxu0
      %v1115 = vadd.f32 %v839, %v1114
      %v1116 = vpop.f32.mrb[0].mxu0
      %v1117 = vpop.f32.mrb[0].mxu0
      %v1118 = vadd.f32 %v842, %v1117
      %v1119 = vpop.f32.mrb[0].mxu0
      %1120 = vmatprep.mubr.bf16.mxu0 0
      %1121 = vmatmul.mubr.bf16.gmra.mrb[0].mxu0 %v976
      %v1122 = vpop.f32.mrb[0].mxu0
      %v1123 = vadd.f32 %v847, %v1122
      %v1124 = vpop.f32.mrb[0].mxu0
      %v1125 = vpop.f32.mrb[0].mxu0
      %v1126 = vadd.f32 %v850, %v1125
      %v1127 = vpop.f32.mrb[0].mxu0
      %1128 = vmatprep.mubr.bf16.mxu0 0
      %1129 = vmatmul.mubr.bf16.gmra.mrb[0].mxu0 %v979
      %v1130 = vpop.f32.mrb[0].mxu0
      %v1131 = vadd.f32 %v855, %v1130
      %v1132 = vpop.f32.mrb[0].mxu0
      %v1133 = vpop.f32.mrb[0].mxu0
      %v1134 = vadd.f32 %v858, %v1133
      %v1135 = vpop.f32.mrb[0].mxu0
      %1136 = vdwg.mxu0
      %v1137 = vld [vmem:[%s189] sm:$0xe]
      %v1138 = vld [vmem:[%s189 + $0xc] sm:$0xe]
      %v1139 = vld [vmem:[%s189 + $0x18] sm:$0xe]
      %v1140 = vld [vmem:[%s189 + $0x24] sm:$0xe]
      %v1141 = vld [vmem:[%s189 + $0x30] sm:$0xe]
      %v1142 = vld [vmem:[%s189 + $0x3c] sm:$0xe]
      %v1143 = vld [vmem:[%s189 + $0x48] sm:$0xe]
      %v1144 = vld [vmem:[%s189 + $0x54] sm:$0xe]
      %v1145 = vld [vmem:[%s189 + $0x60] sm:$0xe]
      %v1146 = vld [vmem:[%s189 + $0x6c] sm:$0xe]
      %v1147 = vld [vmem:[%s189 + $0x78] sm:$0xe]
      %v1148 = vld [vmem:[%s189 + $0x84] sm:$0xe]
      %v1149 = vld [vmem:[%s189 + $0x90] sm:$0xe]
      %v1150 = vld [vmem:[%s189 + $0x9c] sm:$0xe]
      %v1151 = vld [vmem:[%s189 + $0xa8] sm:$0xe]
      %vm1182 = vcmask 1042432
      %vm1183 = vcmask 1046532
      %vm1184 = vmor %vm1182, %vm1183
      %v1185 = vrot.slane %v1137, 5
      %v1186 = vrot.slane %v1185, 4
      %v1187 = vrot.slane %v203, 5
      %v1188 = vsel %vm1184, %v1186, %v1187
      %v1189 = vrot.slane %v1187, 4
      %v1190 = vrot.slane %v233, 5
      %v1191 = vsel %vm1184, %v1189, %v1190
      %v1192 = vrot.slane %v1138, 5
      %v1193 = vrot.slane %v1192, 4
      %v1194 = vrot.slane %v205, 5
      %v1195 = vsel %vm1184, %v1193, %v1194
      %v1196 = vrot.slane %v1194, 4
      %v1197 = vrot.slane %v234, 5
      %v1198 = vsel %vm1184, %v1196, %v1197
      %v1199 = vrot.slane %v1139, 5
      %v1200 = vrot.slane %v1199, 4
      %v1201 = vrot.slane %v207, 5
      %v1202 = vsel %vm1184, %v1200, %v1201
      %v1203 = vrot.slane %v1201, 4
      %v1204 = vrot.slane %v235, 5
      %v1205 = vsel %vm1184, %v1203, %v1204
      %v1206 = vrot.slane %v1140, 5
      %v1207 = vrot.slane %v1206, 4
      %v1208 = vrot.slane %v209, 5
      %v1209 = vsel %vm1184, %v1207, %v1208
      %v1210 = vrot.slane %v1208, 4
      %v1211 = vrot.slane %v236, 5
      %v1212 = vsel %vm1184, %v1210, %v1211
      %v1213 = vrot.slane %v1141, 5
      %v1214 = vrot.slane %v1213, 4
      %v1215 = vrot.slane %v211, 5
      %v1216 = vsel %vm1184, %v1214, %v1215
      %v1217 = vrot.slane %v1215, 4
      %v1218 = vrot.slane %v237, 5
      %v1219 = vsel %vm1184, %v1217, %v1218
      %v1220 = vrot.slane %v1142, 5
      %v1221 = vrot.slane %v1220, 4
      %v1222 = vrot.slane %v213, 5
      %v1223 = vsel %vm1184, %v1221, %v1222
      %v1224 = vrot.slane %v1222, 4
      %v1225 = vrot.slane %v238, 5
      %v1226 = vsel %vm1184, %v1224, %v1225
      %v1227 = vrot.slane %v1143, 5
      %v1228 = vrot.slane %v1227, 4
      %v1229 = vrot.slane %v215, 5
      %v1230 = vsel %vm1184, %v1228, %v1229
      %v1231 = vrot.slane %v1229, 4
      %v1232 = vrot.slane %v239, 5
      %v1233 = vsel %vm1184, %v1231, %v1232
      %v1234 = vrot.slane %v1144, 5
      %v1235 = vrot.slane %v1234, 4
      %v1236 = vrot.slane %v217, 5
      %v1237 = vsel %vm1184, %v1235, %v1236
      %v1238 = vrot.slane %v1236, 4
      %v1239 = vrot.slane %v240, 5
      %v1240 = vsel %vm1184, %v1238, %v1239
      %v1241 = vrot.slane %v1145, 5
      %v1242 = vrot.slane %v1241, 4
      %v1243 = vrot.slane %v219, 5
      %v1244 = vsel %vm1184, %v1242, %v1243
      %v1245 = vrot.slane %v1243, 4
      %v1246 = vrot.slane %v241, 5
      %v1247 = vsel %vm1184, %v1245, %v1246
      %v1248 = vrot.slane %v1146, 5
      %v1249 = vrot.slane %v1248, 4
      %v1250 = vrot.slane %v221, 5
      %v1251 = vsel %vm1184, %v1249, %v1250
      %v1252 = vrot.slane %v1250, 4
      %v1253 = vrot.slane %v242, 5
      %v1254 = vsel %vm1184, %v1252, %v1253
      %v1255 = vrot.slane %v1147, 5
      %v1256 = vrot.slane %v1255, 4
      %v1257 = vrot.slane %v223, 5
      %v1258 = vsel %vm1184, %v1256, %v1257
      %v1259 = vrot.slane %v1257, 4
      %v1260 = vrot.slane %v243, 5
      %v1261 = vsel %vm1184, %v1259, %v1260
      %v1262 = vrot.slane %v1148, 5
      %v1263 = vrot.slane %v1262, 4
      %v1264 = vrot.slane %v225, 5
      %v1265 = vsel %vm1184, %v1263, %v1264
      %v1266 = vrot.slane %v1264, 4
      %v1267 = vrot.slane %v244, 5
      %v1268 = vsel %vm1184, %v1266, %v1267
      %v1269 = vrot.slane %v1149, 5
      %v1270 = vrot.slane %v1269, 4
      %v1271 = vrot.slane %v227, 5
      %v1272 = vsel %vm1184, %v1270, %v1271
      %v1273 = vrot.slane %v1271, 4
      %v1274 = vrot.slane %v245, 5
      %v1275 = vsel %vm1184, %v1273, %v1274
      %v1276 = vrot.slane %v1150, 5
      %v1277 = vrot.slane %v1276, 4
      %v1278 = vrot.slane %v229, 5
      %v1279 = vsel %vm1184, %v1277, %v1278
      %v1280 = vrot.slane %v1278, 4
      %v1281 = vrot.slane %v246, 5
      %v1282 = vsel %vm1184, %v1280, %v1281
      %v1283 = vrot.slane %v1151, 5
      %v1284 = vrot.slane %v1283, 4
      %v1285 = vrot.slane %v231, 5
      %v1286 = vsel %vm1184, %v1284, %v1285
      %v1287 = vrot.slane %v1285, 4
      %v1288 = vrot.slane %v247, 5
      %v1289 = vsel %vm1184, %v1287, %v1288
      %s1290 = scalar_lea.vmem %s1, 4
      %v1291 = vld [vmem:[%s1290] sm:$0x3]
      %v1292 = vunpack.c.l.b16 %v1188
      %v1293 = vunpack.c.l.b16 %v1191
      %v1294 = vunpack.c.l.b16 %v1195
      %v1295 = vunpack.c.l.b16 %v1198
      %v1296 = vunpack.c.l.b16 %v1202
      %v1297 = vunpack.c.l.b16 %v1205
      %v1298 = vunpack.c.l.b16 %v1209
      %v1299 = vunpack.c.l.b16 %v1212
      %v1300 = vunpack.c.l.b16 %v1216
      %v1301 = vunpack.c.l.b16 %v1219
      %v1302 = vunpack.c.l.b16 %v1223
      %v1303 = vunpack.c.l.b16 %v1226
      %v1304 = vunpack.c.l.b16 %v1230
      %v1305 = vunpack.c.l.b16 %v1233
      %v1306 = vunpack.c.l.b16 %v1237
      %v1307 = vunpack.c.l.b16 %v1240
      %v1308 = vunpack.c.l.b16 %v1244
      %v1309 = vunpack.c.l.b16 %v1247
      %v1310 = vunpack.c.l.b16 %v1251
      %v1311 = vunpack.c.l.b16 %v1254
      %v1312 = vunpack.c.l.b16 %v1258
      %v1313 = vunpack.c.l.b16 %v1261
      %v1314 = vunpack.c.l.b16 %v1265
      %v1315 = vunpack.c.l.b16 %v1268
      %v1316 = vunpack.c.l.b16 %v1272
      %v1317 = vunpack.c.l.b16 %v1275
      %v1318 = vunpack.c.l.b16 %v1279
      %v1319 = vunpack.c.l.b16 %v1282
      %v1320 = vunpack.c.l.b16 %v1286
      %v1321 = vunpack.c.l.b16 %v1289
      %v1322 = vpack.c.b16 %v1293, %v1292
      %v1323 = vpack.c.b16 %v1295, %v1294
      %v1324 = vpack.c.b16 %v1297, %v1296
      %v1325 = vpack.c.b16 %v1299, %v1298
      %v1326 = vpack.c.b16 %v1301, %v1300
      %v1327 = vpack.c.b16 %v1303, %v1302
      %v1328 = vpack.c.b16 %v1305, %v1304
      %v1329 = vpack.c.b16 %v1307, %v1306
      %v1330 = vpack.c.b16 %v1309, %v1308
      %v1331 = vpack.c.b16 %v1311, %v1310
      %v1332 = vpack.c.b16 %v1313, %v1312
      %v1333 = vpack.c.b16 %v1315, %v1314
      %v1334 = vpack.c.b16 %v1317, %v1316
      %v1335 = vpack.c.b16 %v1319, %v1318
      %v1336 = vpack.c.b16 %v1321, %v1320
      %v1338 = vsel %vm658, %v1322, 0
      %v1341 = vsel %vm658, %v1323, 0
      %v1344 = vsel %vm658, %v1324, 0
      %v1347 = vsel %vm658, %v1325, 0
      %v1350 = vsel %vm658, %v1326, 0
      %v1353 = vsel %vm658, %v1327, 0
      %v1356 = vsel %vm658, %v1328, 0
      %v1359 = vsel %vm658, %v1329, 0
      %v1362 = vsel %vm658, %v1330, 0
      %v1365 = vsel %vm658, %v1331, 0
      %v1368 = vsel %vm658, %v1332, 0
      %v1371 = vsel %vm658, %v1333, 0
      %v1374 = vsel %vm658, %v1334, 0
      %v1377 = vsel %vm658, %v1335, 0
      %v1380 = vsel %vm658, %v1336, 0
      %v1383 = vsel %vm704, %v1291, 0
      %1385 = vmatprep.subr.bf16.mxu0 0
      %1386 = vmatpush1.bf16.msra.mxu0 %v1383
      %1387 = vmatprep.subr.bf16.mxu0 0
      %1388 = vmatpush1.bf16.msra.mxu0 0
      %1389 = vmatprep.subr.bf16.mxu0 0
      %1390 = vmatpush1.bf16.msra.mxu0 0
      %1391 = vmatprep.subr.bf16.mxu0 0
      %1392 = vmatpush1.bf16.msra.mxu0 0
      %1393 = vmatprep.subr.bf16.mxu0 0
      %1394 = vmatpush1.bf16.msra.mxu0 0
      %1395 = vmatprep.subr.bf16.mxu0 0
      %1396 = vmatpush1.bf16.msra.mxu0 0
      %1397 = vmatprep.subr.bf16.mxu0 0
      %1398 = vmatpush1.bf16.msra.mxu0 0
      %1399 = vmatprep.subr.bf16.mxu0 0
      %1400 = vmatpush1.bf16.msra.mxu0 0
      %1401 = vmatprep.subr.bf16.mxu0 0
      %1402 = vmatpush1.bf16.msra.mxu0 0
      %1403 = vmatprep.subr.bf16.mxu0 0
      %1404 = vmatpush1.bf16.msra.mxu0 0
      %1405 = vmatprep.subr.bf16.mxu0 0
      %1406 = vmatpush1.bf16.msra.mxu0 0
      %1407 = vmatprep.subr.bf16.mxu0 0
      %1408 = vmatpush1.bf16.msra.mxu0 0
      %1409 = vmatprep.subr.bf16.mxu0 0
      %1410 = vmatpush1.bf16.msra.mxu0 0
      %1411 = vmatprep.subr.bf16.mxu0 0
      %1412 = vmatpush1.bf16.msra.mxu0 0
      %1413 = vmatprep.subr.bf16.mxu0 0
      %1414 = vmatpush1.bf16.msra.mxu0 0
      %1415 = vmatprep.subr.bf16.mxu0 0
      %1416 = vmatpush1.bf16.msra.mxu0 0
      %1417 = vmatprep.mubr.bf16.mxu0 0
      %1418 = vmatmul.mubr.bf16.gmra.mrb[0].mxu0 %v1338
      %v1419 = vpop.f32.mrb[0].mxu0
      %v1420 = vadd.f32 0.0, %v1419
      %v1421 = vpop.f32.mrb[0].mxu0
      %v1422 = vpop.f32.mrb[0].mxu0
      %v1423 = vadd.f32 0.0, %v1422
      %v1424 = vpop.f32.mrb[0].mxu0
      %1425 = vmatprep.mubr.bf16.mxu0 0
      %1426 = vmatmul.mubr.bf16.gmra.mrb[0].mxu0 %v1341
      %v1427 = vpop.f32.mrb[0].mxu0
      %v1428 = vadd.f32 0.0, %v1427
      %v1429 = vpop.f32.mrb[0].mxu0
      %v1430 = vpop.f32.mrb[0].mxu0
      %v1431 = vadd.f32 0.0, %v1430
      %v1432 = vpop.f32.mrb[0].mxu0
      %1433 = vmatprep.mubr.bf16.mxu0 0
      %1434 = vmatmul.mubr.bf16.gmra.mrb[0].mxu0 %v1344
      %v1435 = vpop.f32.mrb[0].mxu0
      %v1436 = vadd.f32 0.0, %v1435
      %v1437 = vpop.f32.mrb[0].mxu0
      %v1438 = vpop.f32.mrb[0].mxu0
      %v1439 = vadd.f32 0.0, %v1438
      %v1440 = vpop.f32.mrb[0].mxu0
      %1441 = vmatprep.mubr.bf16.mxu0 0
      %1442 = vmatmul.mubr.bf16.gmra.mrb[0].mxu0 %v1347
      %v1443 = vpop.f32.mrb[0].mxu0
      %v1444 = vadd.f32 0.0, %v1443
      %v1445 = vpop.f32.mrb[0].mxu0
      %v1446 = vpop.f32.mrb[0].mxu0
      %v1447 = vadd.f32 0.0, %v1446
      %v1448 = vpop.f32.mrb[0].mxu0
      %1449 = vmatprep.mubr.bf16.mxu0 0
      %1450 = vmatmul.mubr.bf16.gmra.mrb[0].mxu0 %v1350
      %v1451 = vpop.f32.mrb[0].mxu0
      %v1452 = vadd.f32 0.0, %v1451
      %v1453 = vpop.f32.mrb[0].mxu0
      %v1454 = vpop.f32.mrb[0].mxu0
      %v1455 = vadd.f32 0.0, %v1454
      %v1456 = vpop.f32.mrb[0].mxu0
      %1457 = vmatprep.mubr.bf16.mxu0 0
      %1458 = vmatmul.mubr.bf16.gmra.mrb[0].mxu0 %v1353
      %v1459 = vpop.f32.mrb[0].mxu0
      %v1460 = vadd.f32 0.0, %v1459
      %v1461 = vpop.f32.mrb[0].mxu0
      %v1462 = vpop.f32.mrb[0].mxu0
      %v1463 = vadd.f32 0.0, %v1462
      %v1464 = vpop.f32.mrb[0].mxu0
      %1465 = vmatprep.mubr.bf16.mxu0 0
      %1466 = vmatmul.mubr.bf16.gmra.mrb[0].mxu0 %v1356
      %v1467 = vpop.f32.mrb[0].mxu0
      %v1468 = vadd.f32 0.0, %v1467
      %v1469 = vpop.f32.mrb[0].mxu0
      %v1470 = vpop.f32.mrb[0].mxu0
      %v1471 = vadd.f32 0.0, %v1470
      %v1472 = vpop.f32.mrb[0].mxu0
      %1473 = vmatprep.mubr.bf16.mxu0 0
      %1474 = vmatmul.mubr.bf16.gmra.mrb[0].mxu0 %v1359
      %v1475 = vpop.f32.mrb[0].mxu0
      %v1476 = vadd.f32 0.0, %v1475
      %v1477 = vpop.f32.mrb[0].mxu0
      %v1478 = vpop.f32.mrb[0].mxu0
      %v1479 = vadd.f32 0.0, %v1478
      %v1480 = vpop.f32.mrb[0].mxu0
      %1481 = vmatprep.mubr.bf16.mxu0 0
      %1482 = vmatmul.mubr.bf16.gmra.mrb[0].mxu0 %v1362
      %v1483 = vpop.f32.mrb[0].mxu0
      %v1484 = vadd.f32 0.0, %v1483
      %v1485 = vpop.f32.mrb[0].mxu0
      %v1486 = vpop.f32.mrb[0].mxu0
      %v1487 = vadd.f32 0.0, %v1486
      %v1488 = vpop.f32.mrb[0].mxu0
      %1489 = vmatprep.mubr.bf16.mxu0 0
      %1490 = vmatmul.mubr.bf16.gmra.mrb[0].mxu0 %v1365
      %v1491 = vpop.f32.mrb[0].mxu0
      %v1492 = vadd.f32 0.0, %v1491
      %v1493 = vpop.f32.mrb[0].mxu0
      %v1494 = vpop.f32.mrb[0].mxu0
      %v1495 = vadd.f32 0.0, %v1494
      %v1496 = vpop.f32.mrb[0].mxu0
      %1497 = vmatprep.mubr.bf16.mxu0 0
      %1498 = vmatmul.mubr.bf16.gmra.mrb[0].mxu0 %v1368
      %v1499 = vpop.f32.mrb[0].mxu0
      %v1500 = vadd.f32 0.0, %v1499
      %v1501 = vpop.f32.mrb[0].mxu0
      %v1502 = vpop.f32.mrb[0].mxu0
      %v1503 = vadd.f32 0.0, %v1502
      %v1504 = vpop.f32.mrb[0].mxu0
      %1505 = vmatprep.mubr.bf16.mxu0 0
      %1506 = vmatmul.mubr.bf16.gmra.mrb[0].mxu0 %v1371
      %v1507 = vpop.f32.mrb[0].mxu0
      %v1508 = vadd.f32 0.0, %v1507
      %v1509 = vpop.f32.mrb[0].mxu0
      %v1510 = vpop.f32.mrb[0].mxu0
      %v1511 = vadd.f32 0.0, %v1510
      %v1512 = vpop.f32.mrb[0].mxu0
      %1513 = vmatprep.mubr.bf16.mxu0 0
      %1514 = vmatmul.mubr.bf16.gmra.mrb[0].mxu0 %v1374
      %v1515 = vpop.f32.mrb[0].mxu0
      %v1516 = vadd.f32 0.0, %v1515
      %v1517 = vpop.f32.mrb[0].mxu0
      %v1518 = vpop.f32.mrb[0].mxu0
      %v1519 = vadd.f32 0.0, %v1518
      %v1520 = vpop.f32.mrb[0].mxu0
      %1521 = vmatprep.mubr.bf16.mxu0 0
      %1522 = vmatmul.mubr.bf16.gmra.mrb[0].mxu0 %v1377
      %v1523 = vpop.f32.mrb[0].mxu0
      %v1524 = vadd.f32 0.0, %v1523
      %v1525 = vpop.f32.mrb[0].mxu0
      %v1526 = vpop.f32.mrb[0].mxu0
      %v1527 = vadd.f32 0.0, %v1526
      %v1528 = vpop.f32.mrb[0].mxu0
      %1529 = vmatprep.mubr.bf16.mxu0 0
      %1530 = vmatmul.mubr.bf16.gmra.mrb[0].mxu0 %v1380
      %v1531 = vpop.f32.mrb[0].mxu0
      %v1532 = vadd.f32 0.0, %v1531
      %v1533 = vpop.f32.mrb[0].mxu0
      %v1534 = vpop.f32.mrb[0].mxu0
      %v1535 = vadd.f32 0.0, %v1534
      %v1536 = vpop.f32.mrb[0].mxu0
      %1537 = vdwg.mxu0
      %v1538 = vadd.f32 %v1019, %v1420
      %v1539 = vadd.f32 %v1022, %v1423
      %v1540 = vadd.f32 %v1027, %v1428
      %v1541 = vadd.f32 %v1030, %v1431
      %v1542 = vadd.f32 %v1035, %v1436
      %v1543 = vadd.f32 %v1038, %v1439
      %v1544 = vadd.f32 %v1043, %v1444
      %v1545 = vadd.f32 %v1046, %v1447
      %v1546 = vadd.f32 %v1051, %v1452
      %v1547 = vadd.f32 %v1054, %v1455
      %v1548 = vadd.f32 %v1059, %v1460
      %v1549 = vadd.f32 %v1062, %v1463
      %v1550 = vadd.f32 %v1067, %v1468
      %v1551 = vadd.f32 %v1070, %v1471
      %v1552 = vadd.f32 %v1075, %v1476
      %v1553 = vadd.f32 %v1078, %v1479
      %v1554 = vadd.f32 %v1083, %v1484
      %v1555 = vadd.f32 %v1086, %v1487
      %v1556 = vadd.f32 %v1091, %v1492
      %v1557 = vadd.f32 %v1094, %v1495
      %v1558 = vadd.f32 %v1099, %v1500
      %v1559 = vadd.f32 %v1102, %v1503
      %v1560 = vadd.f32 %v1107, %v1508
      %v1561 = vadd.f32 %v1110, %v1511
      %v1562 = vadd.f32 %v1115, %v1516
      %v1563 = vadd.f32 %v1118, %v1519
      %v1564 = vadd.f32 %v1123, %v1524
      %v1565 = vadd.f32 %v1126, %v1527
      %v1566 = vadd.f32 %v1131, %v1532
      %v1567 = vadd.f32 %v1134, %v1535
      %s1568 = scalar_lea.vmem %s189, 12
      %v1569 = vld [vmem:[%s1568] sm:$0xf]
      %v1570 = vld [vmem:[%s1568 + $0x4] sm:$0xf]
      %v1571 = vld [vmem:[%s1568 + $0xc] sm:$0xf]
      %v1572 = vld [vmem:[%s1568 + $0x10] sm:$0xf]
      %v1573 = vld [vmem:[%s1568 + $0x18] sm:$0xf]
      %v1574 = vld [vmem:[%s1568 + $0x1c] sm:$0xf]
      %v1575 = vld [vmem:[%s1568 + $0x24] sm:$0xf]
      %v1576 = vld [vmem:[%s1568 + $0x28] sm:$0xf]
      %v1577 = vld [vmem:[%s1568 + $0x30] sm:$0xf]
      %v1578 = vld [vmem:[%s1568 + $0x34] sm:$0xf]
      %v1579 = vld [vmem:[%s1568 + $0x3c] sm:$0xf]
      %v1580 = vld [vmem:[%s1568 + $0x40] sm:$0xf]
      %v1581 = vld [vmem:[%s1568 + $0x48] sm:$0xf]
      %v1582 = vld [vmem:[%s1568 + $0x4c] sm:$0xf]
      %v1583 = vld [vmem:[%s1568 + $0x54] sm:$0xf]
      %v1584 = vld [vmem:[%s1568 + $0x58] sm:$0xf]
      %v1585 = vld [vmem:[%s1568 + $0x60] sm:$0xf]
      %v1586 = vld [vmem:[%s1568 + $0x64] sm:$0xf]
      %v1587 = vld [vmem:[%s1568 + $0x6c] sm:$0xf]
      %v1588 = vld [vmem:[%s1568 + $0x70] sm:$0xf]
      %v1589 = vld [vmem:[%s1568 + $0x78] sm:$0xf]
      %v1590 = vld [vmem:[%s1568 + $0x7c] sm:$0xf]
      %v1591 = vld [vmem:[%s1568 + $0x84] sm:$0xf]
      %v1592 = vld [vmem:[%s1568 + $0x88] sm:$0xf]
      %v1593 = vld [vmem:[%s1568 + $0x90] sm:$0xf]
      %v1594 = vld [vmem:[%s1568 + $0x94] sm:$0xf]
      %v1595 = vld [vmem:[%s1568 + $0x9c] sm:$0xf]
      %v1596 = vld [vmem:[%s1568 + $0xa0] sm:$0xf]
      %v1597 = vld [vmem:[%s1568 + $0xa8] sm:$0xf]
      %v1598 = vld [vmem:[%s1568 + $0xac] sm:$0xf]
      %s1599 = scalar_lea.vmem %s1, 6
      %v1600 = vld [vmem:[%s1599] sm:$0x3]
      %v1631 = vunpack.c.l.b16 %v1569
      %v1632 = vunpack.c.l.b16 %v1570
      %v1633 = vunpack.c.l.b16 %v1571
      %v1634 = vunpack.c.l.b16 %v1572
      %v1635 = vunpack.c.l.b16 %v1573
      %v1636 = vunpack.c.l.b16 %v1574
      %v1637 = vunpack.c.l.b16 %v1575
      %v1638 = vunpack.c.l.b16 %v1576
      %v1639 = vunpack.c.l.b16 %v1577
      %v1640 = vunpack.c.l.b16 %v1578
      %v1641 = vunpack.c.l.b16 %v1579
      %v1642 = vunpack.c.l.b16 %v1580
      %v1643 = vunpack.c.l.b16 %v1581
      %v1644 = vunpack.c.l.b16 %v1582
      %v1645 = vunpack.c.l.b16 %v1583
      %v1646 = vunpack.c.l.b16 %v1584
      %v1647 = vunpack.c.l.b16 %v1585
      %v1648 = vunpack.c.l.b16 %v1586
      %v1649 = vunpack.c.l.b16 %v1587
      %v1650 = vunpack.c.l.b16 %v1588
      %v1651 = vunpack.c.l.b16 %v1589
      %v1652 = vunpack.c.l.b16 %v1590
      %v1653 = vunpack.c.l.b16 %v1591
      %v1654 = vunpack.c.l.b16 %v1592
      %v1655 = vunpack.c.l.b16 %v1593
      %v1656 = vunpack.c.l.b16 %v1594
      %v1657 = vunpack.c.l.b16 %v1595
      %v1658 = vunpack.c.l.b16 %v1596
      %v1659 = vunpack.c.l.b16 %v1597
      %v1660 = vunpack.c.l.b16 %v1598
      %v1661 = vpack.c.b16 %v1632, %v1631
      %v1662 = vpack.c.b16 %v1634, %v1633
      %v1663 = vpack.c.b16 %v1636, %v1635
      %v1664 = vpack.c.b16 %v1638, %v1637
      %v1665 = vpack.c.b16 %v1640, %v1639
      %v1666 = vpack.c.b16 %v1642, %v1641
      %v1667 = vpack.c.b16 %v1644, %v1643
      %v1668 = vpack.c.b16 %v1646, %v1645
      %v1669 = vpack.c.b16 %v1648, %v1647
      %v1670 = vpack.c.b16 %v1650, %v1649
      %v1671 = vpack.c.b16 %v1652, %v1651
      %v1672 = vpack.c.b16 %v1654, %v1653
      %v1673 = vpack.c.b16 %v1656, %v1655
      %v1674 = vpack.c.b16 %v1658, %v1657
      %v1675 = vpack.c.b16 %v1660, %v1659
      %v1677 = vsel %vm658, %v1661, 0
      %v1680 = vsel %vm658, %v1662, 0
      %v1683 = vsel %vm658, %v1663, 0
      %v1686 = vsel %vm658, %v1664, 0
      %v1689 = vsel %vm658, %v1665, 0
      %v1692 = vsel %vm658, %v1666, 0
      %v1695 = vsel %vm658, %v1667, 0
      %v1698 = vsel %vm658, %v1668, 0
      %v1701 = vsel %vm658, %v1669, 0
      %v1704 = vsel %vm658, %v1670, 0
      %v1707 = vsel %vm658, %v1671, 0
      %v1710 = vsel %vm658, %v1672, 0
      %v1713 = vsel %vm658, %v1673, 0
      %v1716 = vsel %vm658, %v1674, 0
      %v1719 = vsel %vm658, %v1675, 0
      %v1722 = vsel %vm704, %v1600, 0
      %1724 = vmatprep.subr.bf16.mxu0 0
      %1725 = vmatpush1.bf16.msra.mxu0 %v1722
      %1726 = vmatprep.subr.bf16.mxu0 0
      %1727 = vmatpush1.bf16.msra.mxu0 0
      %1728 = vmatprep.subr.bf16.mxu0 0
      %1729 = vmatpush1.bf16.msra.mxu0 0
      %1730 = vmatprep.subr.bf16.mxu0 0
      %1731 = vmatpush1.bf16.msra.mxu0 0
      %1732 = vmatprep.subr.bf16.mxu0 0
      %1733 = vmatpush1.bf16.msra.mxu0 0
      %1734 = vmatprep.subr.bf16.mxu0 0
      %1735 = vmatpush1.bf16.msra.mxu0 0
      %1736 = vmatprep.subr.bf16.mxu0 0
      %1737 = vmatpush1.bf16.msra.mxu0 0
      %1738 = vmatprep.subr.bf16.mxu0 0
      %1739 = vmatpush1.bf16.msra.mxu0 0
      %1740 = vmatprep.subr.bf16.mxu0 0
      %1741 = vmatpush1.bf16.msra.mxu0 0
      %1742 = vmatprep.subr.bf16.mxu0 0
      %1743 = vmatpush1.bf16.msra.mxu0 0
      %1744 = vmatprep.subr.bf16.mxu0 0
      %1745 = vmatpush1.bf16.msra.mxu0 0
      %1746 = vmatprep.subr.bf16.mxu0 0
      %1747 = vmatpush1.bf16.msra.mxu0 0
      %1748 = vmatprep.subr.bf16.mxu0 0
      %1749 = vmatpush1.bf16.msra.mxu0 0
      %1750 = vmatprep.subr.bf16.mxu0 0
      %1751 = vmatpush1.bf16.msra.mxu0 0
      %1752 = vmatprep.subr.bf16.mxu0 0
      %1753 = vmatpush1.bf16.msra.mxu0 0
      %1754 = vmatprep.subr.bf16.mxu0 0
      %1755 = vmatpush1.bf16.msra.mxu0 0
      %1756 = vmatprep.mubr.bf16.mxu0 0
      %1757 = vmatmul.mubr.bf16.gmra.mrb[0].mxu0 %v1677
      %v1758 = vpop.f32.mrb[0].mxu0
      %v1759 = vadd.f32 0.0, %v1758
      %v1760 = vpop.f32.mrb[0].mxu0
      %v1761 = vpop.f32.mrb[0].mxu0
      %v1762 = vadd.f32 0.0, %v1761
      %v1763 = vpop.f32.mrb[0].mxu0
      %1764 = vmatprep.mubr.bf16.mxu0 0
      %1765 = vmatmul.mubr.bf16.gmra.mrb[0].mxu0 %v1680
      %v1766 = vpop.f32.mrb[0].mxu0
      %v1767 = vadd.f32 0.0, %v1766
      %v1768 = vpop.f32.mrb[0].mxu0
      %v1769 = vpop.f32.mrb[0].mxu0
      %v1770 = vadd.f32 0.0, %v1769
      %v1771 = vpop.f32.mrb[0].mxu0
      %1772 = vmatprep.mubr.bf16.mxu0 0
      %1773 = vmatmul.mubr.bf16.gmra.mrb[0].mxu0 %v1683
      %v1774 = vpop.f32.mrb[0].mxu0
      %v1775 = vadd.f32 0.0, %v1774
      %v1776 = vpop.f32.mrb[0].mxu0
      %v1777 = vpop.f32.mrb[0].mxu0
      %v1778 = vadd.f32 0.0, %v1777
      %v1779 = vpop.f32.mrb[0].mxu0
      %1780 = vmatprep.mubr.bf16.mxu0 0
      %1781 = vmatmul.mubr.bf16.gmra.mrb[0].mxu0 %v1686
      %v1782 = vpop.f32.mrb[0].mxu0
      %v1783 = vadd.f32 0.0, %v1782
      %v1784 = vpop.f32.mrb[0].mxu0
      %v1785 = vpop.f32.mrb[0].mxu0
      %v1786 = vadd.f32 0.0, %v1785
      %v1787 = vpop.f32.mrb[0].mxu0
      %1788 = vmatprep.mubr.bf16.mxu0 0
      %1789 = vmatmul.mubr.bf16.gmra.mrb[0].mxu0 %v1689
      %v1790 = vpop.f32.mrb[0].mxu0
      %v1791 = vadd.f32 0.0, %v1790
      %v1792 = vpop.f32.mrb[0].mxu0
      %v1793 = vpop.f32.mrb[0].mxu0
      %v1794 = vadd.f32 0.0, %v1793
      %v1795 = vpop.f32.mrb[0].mxu0
      %1796 = vmatprep.mubr.bf16.mxu0 0
      %1797 = vmatmul.mubr.bf16.gmra.mrb[0].mxu0 %v1692
      %v1798 = vpop.f32.mrb[0].mxu0
      %v1799 = vadd.f32 0.0, %v1798
      %v1800 = vpop.f32.mrb[0].mxu0
      %v1801 = vpop.f32.mrb[0].mxu0
      %v1802 = vadd.f32 0.0, %v1801
      %v1803 = vpop.f32.mrb[0].mxu0
      %1804 = vmatprep.mubr.bf16.mxu0 0
      %1805 = vmatmul.mubr.bf16.gmra.mrb[0].mxu0 %v1695
      %v1806 = vpop.f32.mrb[0].mxu0
      %v1807 = vadd.f32 0.0, %v1806
      %v1808 = vpop.f32.mrb[0].mxu0
      %v1809 = vpop.f32.mrb[0].mxu0
      %v1810 = vadd.f32 0.0, %v1809
      %v1811 = vpop.f32.mrb[0].mxu0
      %1812 = vmatprep.mubr.bf16.mxu0 0
      %1813 = vmatmul.mubr.bf16.gmra.mrb[0].mxu0 %v1698
      %v1814 = vpop.f32.mrb[0].mxu0
      %v1815 = vadd.f32 0.0, %v1814
      %v1816 = vpop.f32.mrb[0].mxu0
      %v1817 = vpop.f32.mrb[0].mxu0
      %v1818 = vadd.f32 0.0, %v1817
      %v1819 = vpop.f32.mrb[0].mxu0
      %1820 = vmatprep.mubr.bf16.mxu0 0
      %1821 = vmatmul.mubr.bf16.gmra.mrb[0].mxu0 %v1701
      %v1822 = vpop.f32.mrb[0].mxu0
      %v1823 = vadd.f32 0.0, %v1822
      %v1824 = vpop.f32.mrb[0].mxu0
      %v1825 = vpop.f32.mrb[0].mxu0
      %v1826 = vadd.f32 0.0, %v1825
      %v1827 = vpop.f32.mrb[0].mxu0
      %1828 = vmatprep.mubr.bf16.mxu0 0
      %1829 = vmatmul.mubr.bf16.gmra.mrb[0].mxu0 %v1704
      %v1830 = vpop.f32.mrb[0].mxu0
      %v1831 = vadd.f32 0.0, %v1830
      %v1832 = vpop.f32.mrb[0].mxu0
      %v1833 = vpop.f32.mrb[0].mxu0
      %v1834 = vadd.f32 0.0, %v1833
      %v1835 = vpop.f32.mrb[0].mxu0
      %1836 = vmatprep.mubr.bf16.mxu0 0
      %1837 = vmatmul.mubr.bf16.gmra.mrb[0].mxu0 %v1707
      %v1838 = vpop.f32.mrb[0].mxu0
      %v1839 = vadd.f32 0.0, %v1838
      %v1840 = vpop.f32.mrb[0].mxu0
      %v1841 = vpop.f32.mrb[0].mxu0
      %v1842 = vadd.f32 0.0, %v1841
      %v1843 = vpop.f32.mrb[0].mxu0
      %1844 = vmatprep.mubr.bf16.mxu0 0
      %1845 = vmatmul.mubr.bf16.gmra.mrb[0].mxu0 %v1710
      %v1846 = vpop.f32.mrb[0].mxu0
      %v1847 = vadd.f32 0.0, %v1846
      %v1848 = vpop.f32.mrb[0].mxu0
      %v1849 = vpop.f32.mrb[0].mxu0
      %v1850 = vadd.f32 0.0, %v1849
      %v1851 = vpop.f32.mrb[0].mxu0
      %1852 = vmatprep.mubr.bf16.mxu0 0
      %1853 = vmatmul.mubr.bf16.gmra.mrb[0].mxu0 %v1713
      %v1854 = vpop.f32.mrb[0].mxu0
      %v1855 = vadd.f32 0.0, %v1854
      %v1856 = vpop.f32.mrb[0].mxu0
      %v1857 = vpop.f32.mrb[0].mxu0
      %v1858 = vadd.f32 0.0, %v1857
      %v1859 = vpop.f32.mrb[0].mxu0
      %1860 = vmatprep.mubr.bf16.mxu0 0
      %1861 = vmatmul.mubr.bf16.gmra.mrb[0].mxu0 %v1716
      %v1862 = vpop.f32.mrb[0].mxu0
      %v1863 = vadd.f32 0.0, %v1862
      %v1864 = vpop.f32.mrb[0].mxu0
      %v1865 = vpop.f32.mrb[0].mxu0
      %v1866 = vadd.f32 0.0, %v1865
      %v1867 = vpop.f32.mrb[0].mxu0
      %1868 = vmatprep.mubr.bf16.mxu0 0
      %1869 = vmatmul.mubr.bf16.gmra.mrb[0].mxu0 %v1719
      %v1870 = vpop.f32.mrb[0].mxu0
      %v1871 = vadd.f32 0.0, %v1870
      %v1872 = vpop.f32.mrb[0].mxu0
      %v1873 = vpop.f32.mrb[0].mxu0
      %v1874 = vadd.f32 0.0, %v1873
      %v1875 = vpop.f32.mrb[0].mxu0
      %1876 = vdwg.mxu0
      %v1877 = vadd.f32 %v1538, %v1759
      %v1878 = vadd.f32 %v1539, %v1762
      %v1879 = vadd.f32 %v1540, %v1767
      %v1880 = vadd.f32 %v1541, %v1770
      %v1881 = vadd.f32 %v1542, %v1775
      %v1882 = vadd.f32 %v1543, %v1778
      %v1883 = vadd.f32 %v1544, %v1783
      %v1884 = vadd.f32 %v1545, %v1786
      %v1885 = vadd.f32 %v1546, %v1791
      %v1886 = vadd.f32 %v1547, %v1794
      %v1887 = vadd.f32 %v1548, %v1799
      %v1888 = vadd.f32 %v1549, %v1802
      %v1889 = vadd.f32 %v1550, %v1807
      %v1890 = vadd.f32 %v1551, %v1810
      %v1891 = vadd.f32 %v1552, %v1815
      %v1892 = vadd.f32 %v1553, %v1818
      %v1893 = vadd.f32 %v1554, %v1823
      %v1894 = vadd.f32 %v1555, %v1826
      %v1895 = vadd.f32 %v1556, %v1831
      %v1896 = vadd.f32 %v1557, %v1834
      %v1897 = vadd.f32 %v1558, %v1839
      %v1898 = vadd.f32 %v1559, %v1842
      %v1899 = vadd.f32 %v1560, %v1847
      %v1900 = vadd.f32 %v1561, %v1850
      %v1901 = vadd.f32 %v1562, %v1855
      %v1902 = vadd.f32 %v1563, %v1858
      %v1903 = vadd.f32 %v1564, %v1863
      %v1904 = vadd.f32 %v1565, %v1866
      %v1905 = vadd.f32 %v1566, %v1871
      %v1906 = vadd.f32 %v1567, %v1874
      %v1907 = vld [vmem:[%s1568] sm:$0xf]
      %v1908 = vld [vmem:[%s1568 + $0x4] sm:$0xf]
      %v1909 = vld [vmem:[%s1568 + $0x8] sm:$0x1]
      %v1910 = vld [vmem:[%s1568 + $0xc] sm:$0xf]
      %v1911 = vld [vmem:[%s1568 + $0x10] sm:$0xf]
      %v1912 = vld [vmem:[%s1568 + $0x14] sm:$0x1]
      %v1913 = vld [vmem:[%s1568 + $0x18] sm:$0xf]
      %v1914 = vld [vmem:[%s1568 + $0x1c] sm:$0xf]
      %v1915 = vld [vmem:[%s1568 + $0x20] sm:$0x1]
      %v1916 = vld [vmem:[%s1568 + $0x24] sm:$0xf]
      %v1917 = vld [vmem:[%s1568 + $0x28] sm:$0xf]
      %v1918 = vld [vmem:[%s1568 + $0x2c] sm:$0x1]
      %v1919 = vld [vmem:[%s1568 + $0x30] sm:$0xf]
      %v1920 = vld [vmem:[%s1568 + $0x34] sm:$0xf]
      %v1921 = vld [vmem:[%s1568 + $0x38] sm:$0x1]
      %v1922 = vld [vmem:[%s1568 + $0x3c] sm:$0xf]
      %v1923 = vld [vmem:[%s1568 + $0x40] sm:$0xf]
      %v1924 = vld [vmem:[%s1568 + $0x44] sm:$0x1]
      %v1925 = vld [vmem:[%s1568 + $0x48] sm:$0xf]
      %v1926 = vld [vmem:[%s1568 + $0x4c] sm:$0xf]
      %v1927 = vld [vmem:[%s1568 + $0x50] sm:$0x1]
      %v1928 = vld [vmem:[%s1568 + $0x54] sm:$0xf]
      %v1929 = vld [vmem:[%s1568 + $0x58] sm:$0xf]
      %v1930 = vld [vmem:[%s1568 + $0x5c] sm:$0x1]
      %v1931 = vld [vmem:[%s1568 + $0x60] sm:$0xf]
      %v1932 = vld [vmem:[%s1568 + $0x64] sm:$0xf]
      %v1933 = vld [vmem:[%s1568 + $0x68] sm:$0x1]
      %v1934 = vld [vmem:[%s1568 + $0x6c] sm:$0xf]
      %v1935 = vld [vmem:[%s1568 + $0x70] sm:$0xf]
      %v1936 = vld [vmem:[%s1568 + $0x74] sm:$0x1]
      %v1937 = vld [vmem:[%s1568 + $0x78] sm:$0xf]
      %v1938 = vld [vmem:[%s1568 + $0x7c] sm:$0xf]
      %v1939 = vld [vmem:[%s1568 + $0x80] sm:$0x1]
      %v1940 = vld [vmem:[%s1568 + $0x84] sm:$0xf]
      %v1941 = vld [vmem:[%s1568 + $0x88] sm:$0xf]
      %v1942 = vld [vmem:[%s1568 + $0x8c] sm:$0x1]
      %v1943 = vld [vmem:[%s1568 + $0x90] sm:$0xf]
      %v1944 = vld [vmem:[%s1568 + $0x94] sm:$0xf]
      %v1945 = vld [vmem:[%s1568 + $0x98] sm:$0x1]
      %v1946 = vld [vmem:[%s1568 + $0x9c] sm:$0xf]
      %v1947 = vld [vmem:[%s1568 + $0xa0] sm:$0xf]
      %v1948 = vld [vmem:[%s1568 + $0xa4] sm:$0x1]
      %v1949 = vld [vmem:[%s1568 + $0xa8] sm:$0xf]
      %v1950 = vld [vmem:[%s1568 + $0xac] sm:$0xf]
      %v1951 = vld [vmem:[%s1568 + $0xb0] sm:$0x1]
      %v1953 = vshrl.u32 %v1907, 16
      %v1955 = vrot.slane %v1953, 4
      %v1956 = vshll.u32 %v1907, 16
      %v1958 = vrot.slane %v1956, 5
      %v1959 = vor.u32 %v1955, %v1958
      %v1960 = vrot.slane %v1959, 4
      %v1962 = vshll.u32 %v1908, 16
      %v1964 = vrot.slane %v1962, 5
      %v1965 = vsel %vm250, %v1960, %v1964
      %v1966 = vshrl.u32 %v1908, 16
      %v1968 = vrot.slane %v1966, 4
      %v1969 = vor.u32 %v1968, %v1964
      %v1970 = vrot.slane %v1969, 4
      %v1972 = vshll.u32 %v1909, 16
      %v1974 = vrot.slane %v1972, 5
      %v1975 = vsel %vm250, %v1970, %v1974
      %v1977 = vshrl.u32 %v1910, 16
      %v1979 = vrot.slane %v1977, 4
      %v1980 = vshll.u32 %v1910, 16
      %v1982 = vrot.slane %v1980, 5
      %v1983 = vor.u32 %v1979, %v1982
      %v1984 = vrot.slane %v1983, 4
      %v1986 = vshll.u32 %v1911, 16
      %v1988 = vrot.slane %v1986, 5
      %v1989 = vsel %vm250, %v1984, %v1988
      %v1990 = vshrl.u32 %v1911, 16
      %v1992 = vrot.slane %v1990, 4
      %v1993 = vor.u32 %v1992, %v1988
      %v1994 = vrot.slane %v1993, 4
      %v1996 = vshll.u32 %v1912, 16
      %v1998 = vrot.slane %v1996, 5
      %v1999 = vsel %vm250, %v1994, %v1998
      %v2001 = vshrl.u32 %v1913, 16
      %v2003 = vrot.slane %v2001, 4
      %v2004 = vshll.u32 %v1913, 16
      %v2006 = vrot.slane %v2004, 5
      %v2007 = vor.u32 %v2003, %v2006
      %v2008 = vrot.slane %v2007, 4
      %v2010 = vshll.u32 %v1914, 16
      %v2012 = vrot.slane %v2010, 5
      %v2013 = vsel %vm250, %v2008, %v2012
      %v2014 = vshrl.u32 %v1914, 16
      %v2016 = vrot.slane %v2014, 4
      %v2017 = vor.u32 %v2016, %v2012
      %v2018 = vrot.slane %v2017, 4
      %v2020 = vshll.u32 %v1915, 16
      %v2022 = vrot.slane %v2020, 5
      %v2023 = vsel %vm250, %v2018, %v2022
      %v2025 = vshrl.u32 %v1916, 16
      %v2027 = vrot.slane %v2025, 4
      %v2028 = vshll.u32 %v1916, 16
      %v2030 = vrot.slane %v2028, 5
      %v2031 = vor.u32 %v2027, %v2030
      %v2032 = vrot.slane %v2031, 4
      %v2034 = vshll.u32 %v1917, 16
      %v2036 = vrot.slane %v2034, 5
      %v2037 = vsel %vm250, %v2032, %v2036
      %v2038 = vshrl.u32 %v1917, 16
      %v2040 = vrot.slane %v2038, 4
      %v2041 = vor.u32 %v2040, %v2036
      %v2042 = vrot.slane %v2041, 4
      %v2044 = vshll.u32 %v1918, 16
      %v2046 = vrot.slane %v2044, 5
      %v2047 = vsel %vm250, %v2042, %v2046
      %v2049 = vshrl.u32 %v1919, 16
      %v2051 = vrot.slane %v2049, 4
      %v2052 = vshll.u32 %v1919, 16
      %v2054 = vrot.slane %v2052, 5
      %v2055 = vor.u32 %v2051, %v2054
      %v2056 = vrot.slane %v2055, 4
      %v2058 = vshll.u32 %v1920, 16
      %v2060 = vrot.slane %v2058, 5
      %v2061 = vsel %vm250, %v2056, %v2060
      %v2062 = vshrl.u32 %v1920, 16
      %v2064 = vrot.slane %v2062, 4
      %v2065 = vor.u32 %v2064, %v2060
      %v2066 = vrot.slane %v2065, 4
      %v2068 = vshll.u32 %v1921, 16
      %v2070 = vrot.slane %v2068, 5
      %v2071 = vsel %vm250, %v2066, %v2070
      %v2073 = vshrl.u32 %v1922, 16
      %v2075 = vrot.slane %v2073, 4
      %v2076 = vshll.u32 %v1922, 16
      %v2078 = vrot.slane %v2076, 5
      %v2079 = vor.u32 %v2075, %v2078
      %v2080 = vrot.slane %v2079, 4
      %v2082 = vshll.u32 %v1923, 16
      %v2084 = vrot.slane %v2082, 5
      %v2085 = vsel %vm250, %v2080, %v2084
      %v2086 = vshrl.u32 %v1923, 16
      %v2088 = vrot.slane %v2086, 4
      %v2089 = vor.u32 %v2088, %v2084
      %v2090 = vrot.slane %v2089, 4
      %v2092 = vshll.u32 %v1924, 16
      %v2094 = vrot.slane %v2092, 5
      %v2095 = vsel %vm250, %v2090, %v2094
      %v2097 = vshrl.u32 %v1925, 16
      %v2099 = vrot.slane %v2097, 4
      %v2100 = vshll.u32 %v1925, 16
      %v2102 = vrot.slane %v2100, 5
      %v2103 = vor.u32 %v2099, %v2102
      %v2104 = vrot.slane %v2103, 4
      %v2106 = vshll.u32 %v1926, 16
      %v2108 = vrot.slane %v2106, 5
      %v2109 = vsel %vm250, %v2104, %v2108
      %v2110 = vshrl.u32 %v1926, 16
      %v2112 = vrot.slane %v2110, 4
      %v2113 = vor.u32 %v2112, %v2108
      %v2114 = vrot.slane %v2113, 4
      %v2116 = vshll.u32 %v1927, 16
      %v2118 = vrot.slane %v2116, 5
      %v2119 = vsel %vm250, %v2114, %v2118
      %v2121 = vshrl.u32 %v1928, 16
      %v2123 = vrot.slane %v2121, 4
      %v2124 = vshll.u32 %v1928, 16
      %v2126 = vrot.slane %v2124, 5
      %v2127 = vor.u32 %v2123, %v2126
      %v2128 = vrot.slane %v2127, 4
      %v2130 = vshll.u32 %v1929, 16
      %v2132 = vrot.slane %v2130, 5
      %v2133 = vsel %vm250, %v2128, %v2132
      %v2134 = vshrl.u32 %v1929, 16
      %v2136 = vrot.slane %v2134, 4
      %v2137 = vor.u32 %v2136, %v2132
      %v2138 = vrot.slane %v2137, 4
      %v2140 = vshll.u32 %v1930, 16
      %v2142 = vrot.slane %v2140, 5
      %v2143 = vsel %vm250, %v2138, %v2142
      %v2145 = vshrl.u32 %v1931, 16
      %v2147 = vrot.slane %v2145, 4
      %v2148 = vshll.u32 %v1931, 16
      %v2150 = vrot.slane %v2148, 5
      %v2151 = vor.u32 %v2147, %v2150
      %v2152 = vrot.slane %v2151, 4
      %v2154 = vshll.u32 %v1932, 16
      %v2156 = vrot.slane %v2154, 5
      %v2157 = vsel %vm250, %v2152, %v2156
      %v2158 = vshrl.u32 %v1932, 16
      %v2160 = vrot.slane %v2158, 4
      %v2161 = vor.u32 %v2160, %v2156
      %v2162 = vrot.slane %v2161, 4
      %v2164 = vshll.u32 %v1933, 16
      %v2166 = vrot.slane %v2164, 5
      %v2167 = vsel %vm250, %v2162, %v2166
      %v2169 = vshrl.u32 %v1934, 16
      %v2171 = vrot.slane %v2169, 4
      %v2172 = vshll.u32 %v1934, 16
      %v2174 = vrot.slane %v2172, 5
      %v2175 = vor.u32 %v2171, %v2174
      %v2176 = vrot.slane %v2175, 4
      %v2178 = vshll.u32 %v1935, 16
      %v2180 = vrot.slane %v2178, 5
      %v2181 = vsel %vm250, %v2176, %v2180
      %v2182 = vshrl.u32 %v1935, 16
      %v2184 = vrot.slane %v2182, 4
      %v2185 = vor.u32 %v2184, %v2180
      %v2186 = vrot.slane %v2185, 4
      %v2188 = vshll.u32 %v1936, 16
      %v2190 = vrot.slane %v2188, 5
      %v2191 = vsel %vm250, %v2186, %v2190
      %v2193 = vshrl.u32 %v1937, 16
      %v2195 = vrot.slane %v2193, 4
      %v2196 = vshll.u32 %v1937, 16
      %v2198 = vrot.slane %v2196, 5
      %v2199 = vor.u32 %v2195, %v2198
      %v2200 = vrot.slane %v2199, 4
      %v2202 = vshll.u32 %v1938, 16
      %v2204 = vrot.slane %v2202, 5
      %v2205 = vsel %vm250, %v2200, %v2204
      %v2206 = vshrl.u32 %v1938, 16
      %v2208 = vrot.slane %v2206, 4
      %v2209 = vor.u32 %v2208, %v2204
      %v2210 = vrot.slane %v2209, 4
      %v2212 = vshll.u32 %v1939, 16
      %v2214 = vrot.slane %v2212, 5
      %v2215 = vsel %vm250, %v2210, %v2214
      %v2217 = vshrl.u32 %v1940, 16
      %v2219 = vrot.slane %v2217, 4
      %v2220 = vshll.u32 %v1940, 16
      %v2222 = vrot.slane %v2220, 5
      %v2223 = vor.u32 %v2219, %v2222
      %v2224 = vrot.slane %v2223, 4
      %v2226 = vshll.u32 %v1941, 16
      %v2228 = vrot.slane %v2226, 5
      %v2229 = vsel %vm250, %v2224, %v2228
      %v2230 = vshrl.u32 %v1941, 16
      %v2232 = vrot.slane %v2230, 4
      %v2233 = vor.u32 %v2232, %v2228
      %v2234 = vrot.slane %v2233, 4
      %v2236 = vshll.u32 %v1942, 16
      %v2238 = vrot.slane %v2236, 5
      %v2239 = vsel %vm250, %v2234, %v2238
      %v2241 = vshrl.u32 %v1943, 16
      %v2243 = vrot.slane %v2241, 4
      %v2244 = vshll.u32 %v1943, 16
      %v2246 = vrot.slane %v2244, 5
      %v2247 = vor.u32 %v2243, %v2246
      %v2248 = vrot.slane %v2247, 4
      %v2250 = vshll.u32 %v1944, 16
      %v2252 = vrot.slane %v2250, 5
      %v2253 = vsel %vm250, %v2248, %v2252
      %v2254 = vshrl.u32 %v1944, 16
      %v2256 = vrot.slane %v2254, 4
      %v2257 = vor.u32 %v2256, %v2252
      %v2258 = vrot.slane %v2257, 4
      %v2260 = vshll.u32 %v1945, 16
      %v2262 = vrot.slane %v2260, 5
      %v2263 = vsel %vm250, %v2258, %v2262
      %v2265 = vshrl.u32 %v1946, 16
      %v2267 = vrot.slane %v2265, 4
      %v2268 = vshll.u32 %v1946, 16
      %v2270 = vrot.slane %v2268, 5
      %v2271 = vor.u32 %v2267, %v2270
      %v2272 = vrot.slane %v2271, 4
      %v2274 = vshll.u32 %v1947, 16
      %v2276 = vrot.slane %v2274, 5
      %v2277 = vsel %vm250, %v2272, %v2276
      %v2278 = vshrl.u32 %v1947, 16
      %v2280 = vrot.slane %v2278, 4
      %v2281 = vor.u32 %v2280, %v2276
      %v2282 = vrot.slane %v2281, 4
      %v2284 = vshll.u32 %v1948, 16
      %v2286 = vrot.slane %v2284, 5
      %v2287 = vsel %vm250, %v2282, %v2286
      %v2289 = vshrl.u32 %v1949, 16
      %v2291 = vrot.slane %v2289, 4
      %v2292 = vshll.u32 %v1949, 16
      %v2294 = vrot.slane %v2292, 5
      %v2295 = vor.u32 %v2291, %v2294
      %v2296 = vrot.slane %v2295, 4
      %v2298 = vshll.u32 %v1950, 16
      %v2300 = vrot.slane %v2298, 5
      %v2301 = vsel %vm250, %v2296, %v2300
      %v2302 = vshrl.u32 %v1950, 16
      %v2304 = vrot.slane %v2302, 4
      %v2305 = vor.u32 %v2304, %v2300
      %v2306 = vrot.slane %v2305, 4
      %v2308 = vshll.u32 %v1951, 16
      %v2310 = vrot.slane %v2308, 5
      %v2311 = vsel %vm250, %v2306, %v2310
      %s2312 = scalar_lea.vmem %s1, 8
      %v2313 = vld [vmem:[%s2312] sm:$0x3]
      %v2314 = vunpack.c.l.b16 %v1965
      %v2315 = vunpack.c.l.b16 %v1975
      %v2316 = vunpack.c.l.b16 %v1989
      %v2317 = vunpack.c.l.b16 %v1999
      %v2318 = vunpack.c.l.b16 %v2013
      %v2319 = vunpack.c.l.b16 %v2023
      %v2320 = vunpack.c.l.b16 %v2037
      %v2321 = vunpack.c.l.b16 %v2047
      %v2322 = vunpack.c.l.b16 %v2061
      %v2323 = vunpack.c.l.b16 %v2071
      %v2324 = vunpack.c.l.b16 %v2085
      %v2325 = vunpack.c.l.b16 %v2095
      %v2326 = vunpack.c.l.b16 %v2109
      %v2327 = vunpack.c.l.b16 %v2119
      %v2328 = vunpack.c.l.b16 %v2133
      %v2329 = vunpack.c.l.b16 %v2143
      %v2330 = vunpack.c.l.b16 %v2157
      %v2331 = vunpack.c.l.b16 %v2167
      %v2332 = vunpack.c.l.b16 %v2181
      %v2333 = vunpack.c.l.b16 %v2191
      %v2334 = vunpack.c.l.b16 %v2205
      %v2335 = vunpack.c.l.b16 %v2215
      %v2336 = vunpack.c.l.b16 %v2229
      %v2337 = vunpack.c.l.b16 %v2239
      %v2338 = vunpack.c.l.b16 %v2253
      %v2339 = vunpack.c.l.b16 %v2263
      %v2340 = vunpack.c.l.b16 %v2277
      %v2341 = vunpack.c.l.b16 %v2287
      %v2342 = vunpack.c.l.b16 %v2301
      %v2343 = vunpack.c.l.b16 %v2311
      %v2344 = vpack.c.b16 %v2315, %v2314
      %v2345 = vpack.c.b16 %v2317, %v2316
      %v2346 = vpack.c.b16 %v2319, %v2318
      %v2347 = vpack.c.b16 %v2321, %v2320
      %v2348 = vpack.c.b16 %v2323, %v2322
      %v2349 = vpack.c.b16 %v2325, %v2324
      %v2350 = vpack.c.b16 %v2327, %v2326
      %v2351 = vpack.c.b16 %v2329, %v2328
      %v2352 = vpack.c.b16 %v2331, %v2330
      %v2353 = vpack.c.b16 %v2333, %v2332
      %v2354 = vpack.c.b16 %v2335, %v2334
      %v2355 = vpack.c.b16 %v2337, %v2336
      %v2356 = vpack.c.b16 %v2339, %v2338
      %v2357 = vpack.c.b16 %v2341, %v2340
      %v2358 = vpack.c.b16 %v2343, %v2342
      %v2360 = vsel %vm658, %v2344, 0
      %v2363 = vsel %vm658, %v2345, 0
      %v2366 = vsel %vm658, %v2346, 0
      %v2369 = vsel %vm658, %v2347, 0
      %v2372 = vsel %vm658, %v2348, 0
      %v2375 = vsel %vm658, %v2349, 0
      %v2378 = vsel %vm658, %v2350, 0
      %v2381 = vsel %vm658, %v2351, 0
      %v2384 = vsel %vm658, %v2352, 0
      %v2387 = vsel %vm658, %v2353, 0
      %v2390 = vsel %vm658, %v2354, 0
      %v2393 = vsel %vm658, %v2355, 0
      %v2396 = vsel %vm658, %v2356, 0
      %v2399 = vsel %vm658, %v2357, 0
      %v2402 = vsel %vm658, %v2358, 0
      %v2405 = vsel %vm704, %v2313, 0
      %2407 = vmatprep.subr.bf16.mxu0 0
      %2408 = vmatpush1.bf16.msra.mxu0 %v2405
      %2409 = vmatprep.subr.bf16.mxu0 0
      %2410 = vmatpush1.bf16.msra.mxu0 0
      %2411 = vmatprep.subr.bf16.mxu0 0
      %2412 = vmatpush1.bf16.msra.mxu0 0
      %2413 = vmatprep.subr.bf16.mxu0 0
      %2414 = vmatpush1.bf16.msra.mxu0 0
      %2415 = vmatprep.subr.bf16.mxu0 0
      %2416 = vmatpush1.bf16.msra.mxu0 0
      %2417 = vmatprep.subr.bf16.mxu0 0
      %2418 = vmatpush1.bf16.msra.mxu0 0
      %2419 = vmatprep.subr.bf16.mxu0 0
      %2420 = vmatpush1.bf16.msra.mxu0 0
      %2421 = vmatprep.subr.bf16.mxu0 0
      %2422 = vmatpush1.bf16.msra.mxu0 0
      %2423 = vmatprep.subr.bf16.mxu0 0
      %2424 = vmatpush1.bf16.msra.mxu0 0
      %2425 = vmatprep.subr.bf16.mxu0 0
      %2426 = vmatpush1.bf16.msra.mxu0 0
      %2427 = vmatprep.subr.bf16.mxu0 0
      %2428 = vmatpush1.bf16.msra.mxu0 0
      %2429 = vmatprep.subr.bf16.mxu0 0
      %2430 = vmatpush1.bf16.msra.mxu0 0
      %2431 = vmatprep.subr.bf16.mxu0 0
      %2432 = vmatpush1.bf16.msra.mxu0 0
      %2433 = vmatprep.subr.bf16.mxu0 0
      %2434 = vmatpush1.bf16.msra.mxu0 0
      %2435 = vmatprep.subr.bf16.mxu0 0
      %2436 = vmatpush1.bf16.msra.mxu0 0
      %2437 = vmatprep.subr.bf16.mxu0 0
      %2438 = vmatpush1.bf16.msra.mxu0 0
      %2439 = vmatprep.mubr.bf16.mxu0 0
      %2440 = vmatmul.mubr.bf16.gmra.mrb[0].mxu0 %v2360
      %v2441 = vpop.f32.mrb[0].mxu0
      %v2442 = vadd.f32 0.0, %v2441
      %v2443 = vpop.f32.mrb[0].mxu0
      %v2444 = vpop.f32.mrb[0].mxu0
      %v2445 = vadd.f32 0.0, %v2444
      %v2446 = vpop.f32.mrb[0].mxu0
      %2447 = vmatprep.mubr.bf16.mxu0 0
      %2448 = vmatmul.mubr.bf16.gmra.mrb[0].mxu0 %v2363
      %v2449 = vpop.f32.mrb[0].mxu0
      %v2450 = vadd.f32 0.0, %v2449
      %v2451 = vpop.f32.mrb[0].mxu0
      %v2452 = vpop.f32.mrb[0].mxu0
      %v2453 = vadd.f32 0.0, %v2452
      %v2454 = vpop.f32.mrb[0].mxu0
      %2455 = vmatprep.mubr.bf16.mxu0 0
      %2456 = vmatmul.mubr.bf16.gmra.mrb[0].mxu0 %v2366
      %v2457 = vpop.f32.mrb[0].mxu0
      %v2458 = vadd.f32 0.0, %v2457
      %v2459 = vpop.f32.mrb[0].mxu0
      %v2460 = vpop.f32.mrb[0].mxu0
      %v2461 = vadd.f32 0.0, %v2460
      %v2462 = vpop.f32.mrb[0].mxu0
      %2463 = vmatprep.mubr.bf16.mxu0 0
      %2464 = vmatmul.mubr.bf16.gmra.mrb[0].mxu0 %v2369
      %v2465 = vpop.f32.mrb[0].mxu0
      %v2466 = vadd.f32 0.0, %v2465
      %v2467 = vpop.f32.mrb[0].mxu0
      %v2468 = vpop.f32.mrb[0].mxu0
      %v2469 = vadd.f32 0.0, %v2468
      %v2470 = vpop.f32.mrb[0].mxu0
      %2471 = vmatprep.mubr.bf16.mxu0 0
      %2472 = vmatmul.mubr.bf16.gmra.mrb[0].mxu0 %v2372
      %v2473 = vpop.f32.mrb[0].mxu0
      %v2474 = vadd.f32 0.0, %v2473
      %v2475 = vpop.f32.mrb[0].mxu0
      %v2476 = vpop.f32.mrb[0].mxu0
      %v2477 = vadd.f32 0.0, %v2476
      %v2478 = vpop.f32.mrb[0].mxu0
      %2479 = vmatprep.mubr.bf16.mxu0 0
      %2480 = vmatmul.mubr.bf16.gmra.mrb[0].mxu0 %v2375
      %v2481 = vpop.f32.mrb[0].mxu0
      %v2482 = vadd.f32 0.0, %v2481
      %v2483 = vpop.f32.mrb[0].mxu0
      %v2484 = vpop.f32.mrb[0].mxu0
      %v2485 = vadd.f32 0.0, %v2484
      %v2486 = vpop.f32.mrb[0].mxu0
      %2487 = vmatprep.mubr.bf16.mxu0 0
      %2488 = vmatmul.mubr.bf16.gmra.mrb[0].mxu0 %v2378
      %v2489 = vpop.f32.mrb[0].mxu0
      %v2490 = vadd.f32 0.0, %v2489
      %v2491 = vpop.f32.mrb[0].mxu0
      %v2492 = vpop.f32.mrb[0].mxu0
      %v2493 = vadd.f32 0.0, %v2492
      %v2494 = vpop.f32.mrb[0].mxu0
      %2495 = vmatprep.mubr.bf16.mxu0 0
      %2496 = vmatmul.mubr.bf16.gmra.mrb[0].mxu0 %v2381
      %v2497 = vpop.f32.mrb[0].mxu0
      %v2498 = vadd.f32 0.0, %v2497
      %v2499 = vpop.f32.mrb[0].mxu0
      %v2500 = vpop.f32.mrb[0].mxu0
      %v2501 = vadd.f32 0.0, %v2500
      %v2502 = vpop.f32.mrb[0].mxu0
      %2503 = vmatprep.mubr.bf16.mxu0 0
      %2504 = vmatmul.mubr.bf16.gmra.mrb[0].mxu0 %v2384
      %v2505 = vpop.f32.mrb[0].mxu0
      %v2506 = vadd.f32 0.0, %v2505
      %v2507 = vpop.f32.mrb[0].mxu0
      %v2508 = vpop.f32.mrb[0].mxu0
      %v2509 = vadd.f32 0.0, %v2508
      %v2510 = vpop.f32.mrb[0].mxu0
      %2511 = vmatprep.mubr.bf16.mxu0 0
      %2512 = vmatmul.mubr.bf16.gmra.mrb[0].mxu0 %v2387
      %v2513 = vpop.f32.mrb[0].mxu0
      %v2514 = vadd.f32 0.0, %v2513
      %v2515 = vpop.f32.mrb[0].mxu0
      %v2516 = vpop.f32.mrb[0].mxu0
      %v2517 = vadd.f32 0.0, %v2516
      %v2518 = vpop.f32.mrb[0].mxu0
      %2519 = vmatprep.mubr.bf16.mxu0 0
      %2520 = vmatmul.mubr.bf16.gmra.mrb[0].mxu0 %v2390
      %v2521 = vpop.f32.mrb[0].mxu0
      %v2522 = vadd.f32 0.0, %v2521
      %v2523 = vpop.f32.mrb[0].mxu0
      %v2524 = vpop.f32.mrb[0].mxu0
      %v2525 = vadd.f32 0.0, %v2524
      %v2526 = vpop.f32.mrb[0].mxu0
      %2527 = vmatprep.mubr.bf16.mxu0 0
      %2528 = vmatmul.mubr.bf16.gmra.mrb[0].mxu0 %v2393
      %v2529 = vpop.f32.mrb[0].mxu0
      %v2530 = vadd.f32 0.0, %v2529
      %v2531 = vpop.f32.mrb[0].mxu0
      %v2532 = vpop.f32.mrb[0].mxu0
      %v2533 = vadd.f32 0.0, %v2532
      %v2534 = vpop.f32.mrb[0].mxu0
      %2535 = vmatprep.mubr.bf16.mxu0 0
      %2536 = vmatmul.mubr.bf16.gmra.mrb[0].mxu0 %v2396
      %v2537 = vpop.f32.mrb[0].mxu0
      %v2538 = vadd.f32 0.0, %v2537
      %v2539 = vpop.f32.mrb[0].mxu0
      %v2540 = vpop.f32.mrb[0].mxu0
      %v2541 = vadd.f32 0.0, %v2540
      %v2542 = vpop.f32.mrb[0].mxu0
      %2543 = vmatprep.mubr.bf16.mxu0 0
      %2544 = vmatmul.mubr.bf16.gmra.mrb[0].mxu0 %v2399
      %v2545 = vpop.f32.mrb[0].mxu0
      %v2546 = vadd.f32 0.0, %v2545
      %v2547 = vpop.f32.mrb[0].mxu0
      %v2548 = vpop.f32.mrb[0].mxu0
      %v2549 = vadd.f32 0.0, %v2548
      %v2550 = vpop.f32.mrb[0].mxu0
      %2551 = vmatprep.mubr.bf16.mxu0 0
      %2552 = vmatmul.mubr.bf16.gmra.mrb[0].mxu0 %v2402
      %v2553 = vpop.f32.mrb[0].mxu0
      %v2554 = vadd.f32 0.0, %v2553
      %v2555 = vpop.f32.mrb[0].mxu0
      %v2556 = vpop.f32.mrb[0].mxu0
      %v2557 = vadd.f32 0.0, %v2556
      %v2558 = vpop.f32.mrb[0].mxu0
      %2559 = vdwg.mxu0
      %v2560 = vadd.f32 %v1877, %v2442
      %v2561 = vadd.f32 %v1878, %v2445
      %v2562 = vadd.f32 %v1879, %v2450
      %v2563 = vadd.f32 %v1880, %v2453
      %v2564 = vadd.f32 %v1881, %v2458
      %v2565 = vadd.f32 %v1882, %v2461
      %v2566 = vadd.f32 %v1883, %v2466
      %v2567 = vadd.f32 %v1884, %v2469
      %v2568 = vadd.f32 %v1885, %v2474
      %v2569 = vadd.f32 %v1886, %v2477
      %v2570 = vadd.f32 %v1887, %v2482
      %v2571 = vadd.f32 %v1888, %v2485
      %v2572 = vadd.f32 %v1889, %v2490
      %v2573 = vadd.f32 %v1890, %v2493
      %v2574 = vadd.f32 %v1891, %v2498
      %v2575 = vadd.f32 %v1892, %v2501
      %v2576 = vadd.f32 %v1893, %v2506
      %v2577 = vadd.f32 %v1894, %v2509
      %v2578 = vadd.f32 %v1895, %v2514
      %v2579 = vadd.f32 %v1896, %v2517
      %v2580 = vadd.f32 %v1897, %v2522
      %v2581 = vadd.f32 %v1898, %v2525
      %v2582 = vadd.f32 %v1899, %v2530
      %v2583 = vadd.f32 %v1900, %v2533
      %v2584 = vadd.f32 %v1901, %v2538
      %v2585 = vadd.f32 %v1902, %v2541
      %v2586 = vadd.f32 %v1903, %v2546
      %v2587 = vadd.f32 %v1904, %v2549
      %v2588 = vadd.f32 %v1905, %v2554
      %v2589 = vadd.f32 %v1906, %v2557
      %v2590 = vld [vmem:[%s1568] sm:$0xe]
      %v2591 = vld [vmem:[%s1568 + $0xc] sm:$0xe]
      %v2592 = vld [vmem:[%s1568 + $0x18] sm:$0xe]
      %v2593 = vld [vmem:[%s1568 + $0x24] sm:$0xe]
      %v2594 = vld [vmem:[%s1568 + $0x30] sm:$0xe]
      %v2595 = vld [vmem:[%s1568 + $0x3c] sm:$0xe]
      %v2596 = vld [vmem:[%s1568 + $0x48] sm:$0xe]
      %v2597 = vld [vmem:[%s1568 + $0x54] sm:$0xe]
      %v2598 = vld [vmem:[%s1568 + $0x60] sm:$0xe]
      %v2599 = vld [vmem:[%s1568 + $0x6c] sm:$0xe]
      %v2600 = vld [vmem:[%s1568 + $0x78] sm:$0xe]
      %v2601 = vld [vmem:[%s1568 + $0x84] sm:$0xe]
      %v2602 = vld [vmem:[%s1568 + $0x90] sm:$0xe]
      %v2603 = vld [vmem:[%s1568 + $0x9c] sm:$0xe]
      %v2604 = vld [vmem:[%s1568 + $0xa8] sm:$0xe]
      %v2650 = vrot.slane %v2590, 5
      %v2651 = vrot.slane %v2650, 4
      %v2652 = vrot.slane %v1908, 5
      %v2653 = vsel %vm1184, %v2651, %v2652
      %v2654 = vrot.slane %v2652, 4
      %v2655 = vrot.slane %v1909, 5
      %v2656 = vsel %vm1184, %v2654, %v2655
      %v2657 = vrot.slane %v2591, 5
      %v2658 = vrot.slane %v2657, 4
      %v2659 = vrot.slane %v1911, 5
      %v2660 = vsel %vm1184, %v2658, %v2659
      %v2661 = vrot.slane %v2659, 4
      %v2662 = vrot.slane %v1912, 5
      %v2663 = vsel %vm1184, %v2661, %v2662
      %v2664 = vrot.slane %v2592, 5
      %v2665 = vrot.slane %v2664, 4
      %v2666 = vrot.slane %v1914, 5
      %v2667 = vsel %vm1184, %v2665, %v2666
      %v2668 = vrot.slane %v2666, 4
      %v2669 = vrot.slane %v1915, 5
      %v2670 = vsel %vm1184, %v2668, %v2669
      %v2671 = vrot.slane %v2593, 5
      %v2672 = vrot.slane %v2671, 4
      %v2673 = vrot.slane %v1917, 5
      %v2674 = vsel %vm1184, %v2672, %v2673
      %v2675 = vrot.slane %v2673, 4
      %v2676 = vrot.slane %v1918, 5
      %v2677 = vsel %vm1184, %v2675, %v2676
      %v2678 = vrot.slane %v2594, 5
      %v2679 = vrot.slane %v2678, 4
      %v2680 = vrot.slane %v1920, 5
      %v2681 = vsel %vm1184, %v2679, %v2680
      %v2682 = vrot.slane %v2680, 4
      %v2683 = vrot.slane %v1921, 5
      %v2684 = vsel %vm1184, %v2682, %v2683
      %v2685 = vrot.slane %v2595, 5
      %v2686 = vrot.slane %v2685, 4
      %v2687 = vrot.slane %v1923, 5
      %v2688 = vsel %vm1184, %v2686, %v2687
      %v2689 = vrot.slane %v2687, 4
      %v2690 = vrot.slane %v1924, 5
      %v2691 = vsel %vm1184, %v2689, %v2690
      %v2692 = vrot.slane %v2596, 5
      %v2693 = vrot.slane %v2692, 4
      %v2694 = vrot.slane %v1926, 5
      %v2695 = vsel %vm1184, %v2693, %v2694
      %v2696 = vrot.slane %v2694, 4
      %v2697 = vrot.slane %v1927, 5
      %v2698 = vsel %vm1184, %v2696, %v2697
      %v2699 = vrot.slane %v2597, 5
      %v2700 = vrot.slane %v2699, 4
      %v2701 = vrot.slane %v1929, 5
      %v2702 = vsel %vm1184, %v2700, %v2701
      %v2703 = vrot.slane %v2701, 4
      %v2704 = vrot.slane %v1930, 5
      %v2705 = vsel %vm1184, %v2703, %v2704
      %v2706 = vrot.slane %v2598, 5
      %v2707 = vrot.slane %v2706, 4
      %v2708 = vrot.slane %v1932, 5
      %v2709 = vsel %vm1184, %v2707, %v2708
      %v2710 = vrot.slane %v2708, 4
      %v2711 = vrot.slane %v1933, 5
      %v2712 = vsel %vm1184, %v2710, %v2711
      %v2713 = vrot.slane %v2599, 5
      %v2714 = vrot.slane %v2713, 4
      %v2715 = vrot.slane %v1935, 5
      %v2716 = vsel %vm1184, %v2714, %v2715
      %v2717 = vrot.slane %v2715, 4
      %v2718 = vrot.slane %v1936, 5
      %v2719 = vsel %vm1184, %v2717, %v2718
      %v2720 = vrot.slane %v2600, 5
      %v2721 = vrot.slane %v2720, 4
      %v2722 = vrot.slane %v1938, 5
      %v2723 = vsel %vm1184, %v2721, %v2722
      %v2724 = vrot.slane %v2722, 4
      %v2725 = vrot.slane %v1939, 5
      %v2726 = vsel %vm1184, %v2724, %v2725
      %v2727 = vrot.slane %v2601, 5
      %v2728 = vrot.slane %v2727, 4
      %v2729 = vrot.slane %v1941, 5
      %v2730 = vsel %vm1184, %v2728, %v2729
      %v2731 = vrot.slane %v2729, 4
      %v2732 = vrot.slane %v1942, 5
      %v2733 = vsel %vm1184, %v2731, %v2732
      %v2734 = vrot.slane %v2602, 5
      %v2735 = vrot.slane %v2734, 4
      %v2736 = vrot.slane %v1944, 5
      %v2737 = vsel %vm1184, %v2735, %v2736
      %v2738 = vrot.slane %v2736, 4
      %v2739 = vrot.slane %v1945, 5
      %v2740 = vsel %vm1184, %v2738, %v2739
      %v2741 = vrot.slane %v2603, 5
      %v2742 = vrot.slane %v2741, 4
      %v2743 = vrot.slane %v1947, 5
      %v2744 = vsel %vm1184, %v2742, %v2743
      %v2745 = vrot.slane %v2743, 4
      %v2746 = vrot.slane %v1948, 5
      %v2747 = vsel %vm1184, %v2745, %v2746
      %v2748 = vrot.slane %v2604, 5
      %v2749 = vrot.slane %v2748, 4
      %v2750 = vrot.slane %v1950, 5
      %v2751 = vsel %vm1184, %v2749, %v2750
      %v2752 = vrot.slane %v2750, 4
      %v2753 = vrot.slane %v1951, 5
      %v2754 = vsel %vm1184, %v2752, %v2753
      %s2755 = scalar_lea.vmem %s1, 10
      %v2756 = vld [vmem:[%s2755] sm:$0x3]
      %v2757 = vunpack.c.l.b16 %v2653
      %v2758 = vunpack.c.l.b16 %v2656
      %v2759 = vunpack.c.l.b16 %v2660
      %v2760 = vunpack.c.l.b16 %v2663
      %v2761 = vunpack.c.l.b16 %v2667
      %v2762 = vunpack.c.l.b16 %v2670
      %v2763 = vunpack.c.l.b16 %v2674
      %v2764 = vunpack.c.l.b16 %v2677
      %v2765 = vunpack.c.l.b16 %v2681
      %v2766 = vunpack.c.l.b16 %v2684
      %v2767 = vunpack.c.l.b16 %v2688
      %v2768 = vunpack.c.l.b16 %v2691
      %v2769 = vunpack.c.l.b16 %v2695
      %v2770 = vunpack.c.l.b16 %v2698
      %v2771 = vunpack.c.l.b16 %v2702
      %v2772 = vunpack.c.l.b16 %v2705
      %v2773 = vunpack.c.l.b16 %v2709
      %v2774 = vunpack.c.l.b16 %v2712
      %v2775 = vunpack.c.l.b16 %v2716
      %v2776 = vunpack.c.l.b16 %v2719
      %v2777 = vunpack.c.l.b16 %v2723
      %v2778 = vunpack.c.l.b16 %v2726
      %v2779 = vunpack.c.l.b16 %v2730
      %v2780 = vunpack.c.l.b16 %v2733
      %v2781 = vunpack.c.l.b16 %v2737
      %v2782 = vunpack.c.l.b16 %v2740
      %v2783 = vunpack.c.l.b16 %v2744
      %v2784 = vunpack.c.l.b16 %v2747
      %v2785 = vunpack.c.l.b16 %v2751
      %v2786 = vunpack.c.l.b16 %v2754
      %v2787 = vpack.c.b16 %v2758, %v2757
      %v2788 = vpack.c.b16 %v2760, %v2759
      %v2789 = vpack.c.b16 %v2762, %v2761
      %v2790 = vpack.c.b16 %v2764, %v2763
      %v2791 = vpack.c.b16 %v2766, %v2765
      %v2792 = vpack.c.b16 %v2768, %v2767
      %v2793 = vpack.c.b16 %v2770, %v2769
      %v2794 = vpack.c.b16 %v2772, %v2771
      %v2795 = vpack.c.b16 %v2774, %v2773
      %v2796 = vpack.c.b16 %v2776, %v2775
      %v2797 = vpack.c.b16 %v2778, %v2777
      %v2798 = vpack.c.b16 %v2780, %v2779
      %v2799 = vpack.c.b16 %v2782, %v2781
      %v2800 = vpack.c.b16 %v2784, %v2783
      %v2801 = vpack.c.b16 %v2786, %v2785
      %v2803 = vsel %vm658, %v2787, 0
      %v2806 = vsel %vm658, %v2788, 0
      %v2809 = vsel %vm658, %v2789, 0
      %v2812 = vsel %vm658, %v2790, 0
      %v2815 = vsel %vm658, %v2791, 0
      %v2818 = vsel %vm658, %v2792, 0
      %v2821 = vsel %vm658, %v2793, 0
      %v2824 = vsel %vm658, %v2794, 0
      %v2827 = vsel %vm658, %v2795, 0
      %v2830 = vsel %vm658, %v2796, 0
      %v2833 = vsel %vm658, %v2797, 0
      %v2836 = vsel %vm658, %v2798, 0
      %v2839 = vsel %vm658, %v2799, 0
      %v2842 = vsel %vm658, %v2800, 0
      %v2845 = vsel %vm658, %v2801, 0
      %v2848 = vsel %vm704, %v2756, 0
      %2850 = vmatprep.subr.bf16.mxu0 0
      %2851 = vmatpush1.bf16.msra.mxu0 %v2848
      %2852 = vmatprep.subr.bf16.mxu0 0
      %2853 = vmatpush1.bf16.msra.mxu0 0
      %2854 = vmatprep.subr.bf16.mxu0 0
      %2855 = vmatpush1.bf16.msra.mxu0 0
      %2856 = vmatprep.subr.bf16.mxu0 0
      %2857 = vmatpush1.bf16.msra.mxu0 0
      %2858 = vmatprep.subr.bf16.mxu0 0
      %2859 = vmatpush1.bf16.msra.mxu0 0
      %2860 = vmatprep.subr.bf16.mxu0 0
      %2861 = vmatpush1.bf16.msra.mxu0 0
      %2862 = vmatprep.subr.bf16.mxu0 0
      %2863 = vmatpush1.bf16.msra.mxu0 0
      %2864 = vmatprep.subr.bf16.mxu0 0
      %2865 = vmatpush1.bf16.msra.mxu0 0
      %2866 = vmatprep.subr.bf16.mxu0 0
      %2867 = vmatpush1.bf16.msra.mxu0 0
      %2868 = vmatprep.subr.bf16.mxu0 0
      %2869 = vmatpush1.bf16.msra.mxu0 0
      %2870 = vmatprep.subr.bf16.mxu0 0
      %2871 = vmatpush1.bf16.msra.mxu0 0
      %2872 = vmatprep.subr.bf16.mxu0 0
      %2873 = vmatpush1.bf16.msra.mxu0 0
      %2874 = vmatprep.subr.bf16.mxu0 0
      %2875 = vmatpush1.bf16.msra.mxu0 0
      %2876 = vmatprep.subr.bf16.mxu0 0
      %2877 = vmatpush1.bf16.msra.mxu0 0
      %2878 = vmatprep.subr.bf16.mxu0 0
      %2879 = vmatpush1.bf16.msra.mxu0 0
      %2880 = vmatprep.subr.bf16.mxu0 0
      %2881 = vmatpush1.bf16.msra.mxu0 0
      %2882 = vmatprep.mubr.bf16.mxu0 0
      %2883 = vmatmul.mubr.bf16.gmra.mrb[0].mxu0 %v2803
      %v2884 = vpop.f32.mrb[0].mxu0
      %v2885 = vadd.f32 0.0, %v2884
      %v2886 = vpop.f32.mrb[0].mxu0
      %v2887 = vpop.f32.mrb[0].mxu0
      %v2888 = vadd.f32 0.0, %v2887
      %v2889 = vpop.f32.mrb[0].mxu0
      %2890 = vmatprep.mubr.bf16.mxu0 0
      %2891 = vmatmul.mubr.bf16.gmra.mrb[0].mxu0 %v2806
      %v2892 = vpop.f32.mrb[0].mxu0
      %v2893 = vadd.f32 0.0, %v2892
      %v2894 = vpop.f32.mrb[0].mxu0
      %v2895 = vpop.f32.mrb[0].mxu0
      %v2896 = vadd.f32 0.0, %v2895
      %v2897 = vpop.f32.mrb[0].mxu0
      %2898 = vmatprep.mubr.bf16.mxu0 0
      %2899 = vmatmul.mubr.bf16.gmra.mrb[0].mxu0 %v2809
      %v2900 = vpop.f32.mrb[0].mxu0
      %v2901 = vadd.f32 0.0, %v2900
      %v2902 = vpop.f32.mrb[0].mxu0
      %v2903 = vpop.f32.mrb[0].mxu0
      %v2904 = vadd.f32 0.0, %v2903
      %v2905 = vpop.f32.mrb[0].mxu0
      %2906 = vmatprep.mubr.bf16.mxu0 0
      %2907 = vmatmul.mubr.bf16.gmra.mrb[0].mxu0 %v2812
      %v2908 = vpop.f32.mrb[0].mxu0
      %v2909 = vadd.f32 0.0, %v2908
      %v2910 = vpop.f32.mrb[0].mxu0
      %v2911 = vpop.f32.mrb[0].mxu0
      %v2912 = vadd.f32 0.0, %v2911
      %v2913 = vpop.f32.mrb[0].mxu0
      %2914 = vmatprep.mubr.bf16.mxu0 0
      %2915 = vmatmul.mubr.bf16.gmra.mrb[0].mxu0 %v2815
      %v2916 = vpop.f32.mrb[0].mxu0
      %v2917 = vadd.f32 0.0, %v2916
      %v2918 = vpop.f32.mrb[0].mxu0
      %v2919 = vpop.f32.mrb[0].mxu0
      %v2920 = vadd.f32 0.0, %v2919
      %v2921 = vpop.f32.mrb[0].mxu0
      %2922 = vmatprep.mubr.bf16.mxu0 0
      %2923 = vmatmul.mubr.bf16.gmra.mrb[0].mxu0 %v2818
      %v2924 = vpop.f32.mrb[0].mxu0
      %v2925 = vadd.f32 0.0, %v2924
      %v2926 = vpop.f32.mrb[0].mxu0
      %v2927 = vpop.f32.mrb[0].mxu0
      %v2928 = vadd.f32 0.0, %v2927
      %v2929 = vpop.f32.mrb[0].mxu0
      %2930 = vmatprep.mubr.bf16.mxu0 0
      %2931 = vmatmul.mubr.bf16.gmra.mrb[0].mxu0 %v2821
      %v2932 = vpop.f32.mrb[0].mxu0
      %v2933 = vadd.f32 0.0, %v2932
      %v2934 = vpop.f32.mrb[0].mxu0
      %v2935 = vpop.f32.mrb[0].mxu0
      %v2936 = vadd.f32 0.0, %v2935
      %v2937 = vpop.f32.mrb[0].mxu0
      %2938 = vmatprep.mubr.bf16.mxu0 0
      %2939 = vmatmul.mubr.bf16.gmra.mrb[0].mxu0 %v2824
      %v2940 = vpop.f32.mrb[0].mxu0
      %v2941 = vadd.f32 0.0, %v2940
      %v2942 = vpop.f32.mrb[0].mxu0
      %v2943 = vpop.f32.mrb[0].mxu0
      %v2944 = vadd.f32 0.0, %v2943
      %v2945 = vpop.f32.mrb[0].mxu0
      %2946 = vmatprep.mubr.bf16.mxu0 0
      %2947 = vmatmul.mubr.bf16.gmra.mrb[0].mxu0 %v2827
      %v2948 = vpop.f32.mrb[0].mxu0
      %v2949 = vadd.f32 0.0, %v2948
      %v2950 = vpop.f32.mrb[0].mxu0
      %v2951 = vpop.f32.mrb[0].mxu0
      %v2952 = vadd.f32 0.0, %v2951
      %v2953 = vpop.f32.mrb[0].mxu0
      %2954 = vmatprep.mubr.bf16.mxu0 0
      %2955 = vmatmul.mubr.bf16.gmra.mrb[0].mxu0 %v2830
      %v2956 = vpop.f32.mrb[0].mxu0
      %v2957 = vadd.f32 0.0, %v2956
      %v2958 = vpop.f32.mrb[0].mxu0
      %v2959 = vpop.f32.mrb[0].mxu0
      %v2960 = vadd.f32 0.0, %v2959
      %v2961 = vpop.f32.mrb[0].mxu0
      %2962 = vmatprep.mubr.bf16.mxu0 0
      %2963 = vmatmul.mubr.bf16.gmra.mrb[0].mxu0 %v2833
      %v2964 = vpop.f32.mrb[0].mxu0
      %v2965 = vadd.f32 0.0, %v2964
      %v2966 = vpop.f32.mrb[0].mxu0
      %v2967 = vpop.f32.mrb[0].mxu0
      %v2968 = vadd.f32 0.0, %v2967
      %v2969 = vpop.f32.mrb[0].mxu0
      %2970 = vmatprep.mubr.bf16.mxu0 0
      %2971 = vmatmul.mubr.bf16.gmra.mrb[0].mxu0 %v2836
      %v2972 = vpop.f32.mrb[0].mxu0
      %v2973 = vadd.f32 0.0, %v2972
      %v2974 = vpop.f32.mrb[0].mxu0
      %v2975 = vpop.f32.mrb[0].mxu0
      %v2976 = vadd.f32 0.0, %v2975
      %v2977 = vpop.f32.mrb[0].mxu0
      %2978 = vmatprep.mubr.bf16.mxu0 0
      %2979 = vmatmul.mubr.bf16.gmra.mrb[0].mxu0 %v2839
      %v2980 = vpop.f32.mrb[0].mxu0
      %v2981 = vadd.f32 0.0, %v2980
      %v2982 = vpop.f32.mrb[0].mxu0
      %v2983 = vpop.f32.mrb[0].mxu0
      %v2984 = vadd.f32 0.0, %v2983
      %v2985 = vpop.f32.mrb[0].mxu0
      %2986 = vmatprep.mubr.bf16.mxu0 0
      %2987 = vmatmul.mubr.bf16.gmra.mrb[0].mxu0 %v2842
      %v2988 = vpop.f32.mrb[0].mxu0
      %v2989 = vadd.f32 0.0, %v2988
      %v2990 = vpop.f32.mrb[0].mxu0
      %v2991 = vpop.f32.mrb[0].mxu0
      %v2992 = vadd.f32 0.0, %v2991
      %v2993 = vpop.f32.mrb[0].mxu0
      %2994 = vmatprep.mubr.bf16.mxu0 0
      %2995 = vmatmul.mubr.bf16.gmra.mrb[0].mxu0 %v2845
      %v2996 = vpop.f32.mrb[0].mxu0
      %v2997 = vadd.f32 0.0, %v2996
      %v2998 = vpop.f32.mrb[0].mxu0
      %v2999 = vpop.f32.mrb[0].mxu0
      %v3000 = vadd.f32 0.0, %v2999
      %v3001 = vpop.f32.mrb[0].mxu0
      %3002 = vdwg.mxu0
      %v3003 = vadd.f32 %v2560, %v2885
      %v3004 = vadd.f32 %v2561, %v2888
      %v3005 = vadd.f32 %v2562, %v2893
      %v3006 = vadd.f32 %v2563, %v2896
      %v3007 = vadd.f32 %v2564, %v2901
      %v3008 = vadd.f32 %v2565, %v2904
      %v3009 = vadd.f32 %v2566, %v2909
      %v3010 = vadd.f32 %v2567, %v2912
      %v3011 = vadd.f32 %v2568, %v2917
      %v3012 = vadd.f32 %v2569, %v2920
      %v3013 = vadd.f32 %v2570, %v2925
      %v3014 = vadd.f32 %v2571, %v2928
      %v3015 = vadd.f32 %v2572, %v2933
      %v3016 = vadd.f32 %v2573, %v2936
      %v3017 = vadd.f32 %v2574, %v2941
      %v3018 = vadd.f32 %v2575, %v2944
      %v3019 = vadd.f32 %v2576, %v2949
      %v3020 = vadd.f32 %v2577, %v2952
      %v3021 = vadd.f32 %v2578, %v2957
      %v3022 = vadd.f32 %v2579, %v2960
      %v3023 = vadd.f32 %v2580, %v2965
      %v3024 = vadd.f32 %v2581, %v2968
      %v3025 = vadd.f32 %v2582, %v2973
      %v3026 = vadd.f32 %v2583, %v2976
      %v3027 = vadd.f32 %v2584, %v2981
      %v3028 = vadd.f32 %v2585, %v2984
      %v3029 = vadd.f32 %v2586, %v2989
      %v3030 = vadd.f32 %v2587, %v2992
      %v3031 = vadd.f32 %v2588, %v2997
      %v3032 = vadd.f32 %v2589, %v3000
      %s3033 = scalar_lea.vmem %s189, 24
      %v3034 = vld [vmem:[%s3033] sm:$0xf]
      %v3035 = vld [vmem:[%s3033 + $0x4] sm:$0xf]
      %v3036 = vld [vmem:[%s3033 + $0xc] sm:$0xf]
      %v3037 = vld [vmem:[%s3033 + $0x10] sm:$0xf]
      %v3038 = vld [vmem:[%s3033 + $0x18] sm:$0xf]
      %v3039 = vld [vmem:[%s3033 + $0x1c] sm:$0xf]
      %v3040 = vld [vmem:[%s3033 + $0x24] sm:$0xf]
      %v3041 = vld [vmem:[%s3033 + $0x28] sm:$0xf]
      %v3042 = vld [vmem:[%s3033 + $0x30] sm:$0xf]
      %v3043 = vld [vmem:[%s3033 + $0x34] sm:$0xf]
      %v3044 = vld [vmem:[%s3033 + $0x3c] sm:$0xf]
      %v3045 = vld [vmem:[%s3033 + $0x40] sm:$0xf]
      %v3046 = vld [vmem:[%s3033 + $0x48] sm:$0xf]
      %v3047 = vld [vmem:[%s3033 + $0x4c] sm:$0xf]
      %v3048 = vld [vmem:[%s3033 + $0x54] sm:$0xf]
      %v3049 = vld [vmem:[%s3033 + $0x58] sm:$0xf]
      %v3050 = vld [vmem:[%s3033 + $0x60] sm:$0xf]
      %v3051 = vld [vmem:[%s3033 + $0x64] sm:$0xf]
      %v3052 = vld [vmem:[%s3033 + $0x6c] sm:$0xf]
      %v3053 = vld [vmem:[%s3033 + $0x70] sm:$0xf]
      %v3054 = vld [vmem:[%s3033 + $0x78] sm:$0xf]
      %v3055 = vld [vmem:[%s3033 + $0x7c] sm:$0xf]
      %v3056 = vld [vmem:[%s3033 + $0x84] sm:$0xf]
      %v3057 = vld [vmem:[%s3033 + $0x88] sm:$0xf]
      %v3058 = vld [vmem:[%s3033 + $0x90] sm:$0xf]
      %v3059 = vld [vmem:[%s3033 + $0x94] sm:$0xf]
      %v3060 = vld [vmem:[%s3033 + $0x9c] sm:$0xf]
      %v3061 = vld [vmem:[%s3033 + $0xa0] sm:$0xf]
      %v3062 = vld [vmem:[%s3033 + $0xa8] sm:$0xf]
      %v3063 = vld [vmem:[%s3033 + $0xac] sm:$0xf]
      %s3064 = scalar_lea.vmem %s1, 12
      %v3065 = vld [vmem:[%s3064] sm:$0x3]
      %v3096 = vunpack.c.l.b16 %v3034
      %v3097 = vunpack.c.l.b16 %v3035
      %v3098 = vunpack.c.l.b16 %v3036
      %v3099 = vunpack.c.l.b16 %v3037
      %v3100 = vunpack.c.l.b16 %v3038
      %v3101 = vunpack.c.l.b16 %v3039
      %v3102 = vunpack.c.l.b16 %v3040
      %v3103 = vunpack.c.l.b16 %v3041
      %v3104 = vunpack.c.l.b16 %v3042
      %v3105 = vunpack.c.l.b16 %v3043
      %v3106 = vunpack.c.l.b16 %v3044
      %v3107 = vunpack.c.l.b16 %v3045
      %v3108 = vunpack.c.l.b16 %v3046
      %v3109 = vunpack.c.l.b16 %v3047
      %v3110 = vunpack.c.l.b16 %v3048
      %v3111 = vunpack.c.l.b16 %v3049
      %v3112 = vunpack.c.l.b16 %v3050
      %v3113 = vunpack.c.l.b16 %v3051
      %v3114 = vunpack.c.l.b16 %v3052
      %v3115 = vunpack.c.l.b16 %v3053
      %v3116 = vunpack.c.l.b16 %v3054
      %v3117 = vunpack.c.l.b16 %v3055
      %v3118 = vunpack.c.l.b16 %v3056
      %v3119 = vunpack.c.l.b16 %v3057
      %v3120 = vunpack.c.l.b16 %v3058
      %v3121 = vunpack.c.l.b16 %v3059
      %v3122 = vunpack.c.l.b16 %v3060
      %v3123 = vunpack.c.l.b16 %v3061
      %v3124 = vunpack.c.l.b16 %v3062
      %v3125 = vunpack.c.l.b16 %v3063
      %v3126 = vpack.c.b16 %v3097, %v3096
      %v3127 = vpack.c.b16 %v3099, %v3098
      %v3128 = vpack.c.b16 %v3101, %v3100
      %v3129 = vpack.c.b16 %v3103, %v3102
      %v3130 = vpack.c.b16 %v3105, %v3104
      %v3131 = vpack.c.b16 %v3107, %v3106
      %v3132 = vpack.c.b16 %v3109, %v3108
      %v3133 = vpack.c.b16 %v3111, %v3110
      %v3134 = vpack.c.b16 %v3113, %v3112
      %v3135 = vpack.c.b16 %v3115, %v3114
      %v3136 = vpack.c.b16 %v3117, %v3116
      %v3137 = vpack.c.b16 %v3119, %v3118
      %v3138 = vpack.c.b16 %v3121, %v3120
      %v3139 = vpack.c.b16 %v3123, %v3122
      %v3140 = vpack.c.b16 %v3125, %v3124
      %v3142 = vsel %vm658, %v3126, 0
      %v3145 = vsel %vm658, %v3127, 0
      %v3148 = vsel %vm658, %v3128, 0
      %v3151 = vsel %vm658, %v3129, 0
      %v3154 = vsel %vm658, %v3130, 0
      %v3157 = vsel %vm658, %v3131, 0
      %v3160 = vsel %vm658, %v3132, 0
      %v3163 = vsel %vm658, %v3133, 0
      %v3166 = vsel %vm658, %v3134, 0
      %v3169 = vsel %vm658, %v3135, 0
      %v3172 = vsel %vm658, %v3136, 0
      %v3175 = vsel %vm658, %v3137, 0
      %v3178 = vsel %vm658, %v3138, 0
      %v3181 = vsel %vm658, %v3139, 0
      %v3184 = vsel %vm658, %v3140, 0
      %v3187 = vsel %vm704, %v3065, 0
      %3189 = vmatprep.subr.bf16.mxu0 0
      %3190 = vmatpush1.bf16.msra.mxu0 %v3187
      %3191 = vmatprep.subr.bf16.mxu0 0
      %3192 = vmatpush1.bf16.msra.mxu0 0
      %3193 = vmatprep.subr.bf16.mxu0 0
      %3194 = vmatpush1.bf16.msra.mxu0 0
      %3195 = vmatprep.subr.bf16.mxu0 0
      %3196 = vmatpush1.bf16.msra.mxu0 0
      %3197 = vmatprep.subr.bf16.mxu0 0
      %3198 = vmatpush1.bf16.msra.mxu0 0
      %3199 = vmatprep.subr.bf16.mxu0 0
      %3200 = vmatpush1.bf16.msra.mxu0 0
      %3201 = vmatprep.subr.bf16.mxu0 0
      %3202 = vmatpush1.bf16.msra.mxu0 0
      %3203 = vmatprep.subr.bf16.mxu0 0
      %3204 = vmatpush1.bf16.msra.mxu0 0
      %3205 = vmatprep.subr.bf16.mxu0 0
      %3206 = vmatpush1.bf16.msra.mxu0 0
      %3207 = vmatprep.subr.bf16.mxu0 0
      %3208 = vmatpush1.bf16.msra.mxu0 0
      %3209 = vmatprep.subr.bf16.mxu0 0
      %3210 = vmatpush1.bf16.msra.mxu0 0
      %3211 = vmatprep.subr.bf16.mxu0 0
      %3212 = vmatpush1.bf16.msra.mxu0 0
      %3213 = vmatprep.subr.bf16.mxu0 0
      %3214 = vmatpush1.bf16.msra.mxu0 0
      %3215 = vmatprep.subr.bf16.mxu0 0
      %3216 = vmatpush1.bf16.msra.mxu0 0
      %3217 = vmatprep.subr.bf16.mxu0 0
      %3218 = vmatpush1.bf16.msra.mxu0 0
      %3219 = vmatprep.subr.bf16.mxu0 0
      %3220 = vmatpush1.bf16.msra.mxu0 0
      %3221 = vmatprep.mubr.bf16.mxu0 0
      %3222 = vmatmul.mubr.bf16.gmra.mrb[0].mxu0 %v3142
      %v3223 = vpop.f32.mrb[0].mxu0
      %v3224 = vadd.f32 0.0, %v3223
      %v3225 = vpop.f32.mrb[0].mxu0
      %v3226 = vpop.f32.mrb[0].mxu0
      %v3227 = vadd.f32 0.0, %v3226
      %v3228 = vpop.f32.mrb[0].mxu0
      %3229 = vmatprep.mubr.bf16.mxu0 0
      %3230 = vmatmul.mubr.bf16.gmra.mrb[0].mxu0 %v3145
      %v3231 = vpop.f32.mrb[0].mxu0
      %v3232 = vadd.f32 0.0, %v3231
      %v3233 = vpop.f32.mrb[0].mxu0
      %v3234 = vpop.f32.mrb[0].mxu0
      %v3235 = vadd.f32 0.0, %v3234
      %v3236 = vpop.f32.mrb[0].mxu0
      %3237 = vmatprep.mubr.bf16.mxu0 0
      %3238 = vmatmul.mubr.bf16.gmra.mrb[0].mxu0 %v3148
      %v3239 = vpop.f32.mrb[0].mxu0
      %v3240 = vadd.f32 0.0, %v3239
      %v3241 = vpop.f32.mrb[0].mxu0
      %v3242 = vpop.f32.mrb[0].mxu0
      %v3243 = vadd.f32 0.0, %v3242
      %v3244 = vpop.f32.mrb[0].mxu0
      %3245 = vmatprep.mubr.bf16.mxu0 0
      %3246 = vmatmul.mubr.bf16.gmra.mrb[0].mxu0 %v3151
      %v3247 = vpop.f32.mrb[0].mxu0
      %v3248 = vadd.f32 0.0, %v3247
      %v3249 = vpop.f32.mrb[0].mxu0
      %v3250 = vpop.f32.mrb[0].mxu0
      %v3251 = vadd.f32 0.0, %v3250
      %v3252 = vpop.f32.mrb[0].mxu0
      %3253 = vmatprep.mubr.bf16.mxu0 0
      %3254 = vmatmul.mubr.bf16.gmra.mrb[0].mxu0 %v3154
      %v3255 = vpop.f32.mrb[0].mxu0
      %v3256 = vadd.f32 0.0, %v3255
      %v3257 = vpop.f32.mrb[0].mxu0
      %v3258 = vpop.f32.mrb[0].mxu0
      %v3259 = vadd.f32 0.0, %v3258
      %v3260 = vpop.f32.mrb[0].mxu0
      %3261 = vmatprep.mubr.bf16.mxu0 0
      %3262 = vmatmul.mubr.bf16.gmra.mrb[0].mxu0 %v3157
      %v3263 = vpop.f32.mrb[0].mxu0
      %v3264 = vadd.f32 0.0, %v3263
      %v3265 = vpop.f32.mrb[0].mxu0
      %v3266 = vpop.f32.mrb[0].mxu0
      %v3267 = vadd.f32 0.0, %v3266
      %v3268 = vpop.f32.mrb[0].mxu0
      %3269 = vmatprep.mubr.bf16.mxu0 0
      %3270 = vmatmul.mubr.bf16.gmra.mrb[0].mxu0 %v3160
      %v3271 = vpop.f32.mrb[0].mxu0
      %v3272 = vadd.f32 0.0, %v3271
      %v3273 = vpop.f32.mrb[0].mxu0
      %v3274 = vpop.f32.mrb[0].mxu0
      %v3275 = vadd.f32 0.0, %v3274
      %v3276 = vpop.f32.mrb[0].mxu0
      %3277 = vmatprep.mubr.bf16.mxu0 0
      %3278 = vmatmul.mubr.bf16.gmra.mrb[0].mxu0 %v3163
      %v3279 = vpop.f32.mrb[0].mxu0
      %v3280 = vadd.f32 0.0, %v3279
      %v3281 = vpop.f32.mrb[0].mxu0
      %v3282 = vpop.f32.mrb[0].mxu0
      %v3283 = vadd.f32 0.0, %v3282
      %v3284 = vpop.f32.mrb[0].mxu0
      %3285 = vmatprep.mubr.bf16.mxu0 0
      %3286 = vmatmul.mubr.bf16.gmra.mrb[0].mxu0 %v3166
      %v3287 = vpop.f32.mrb[0].mxu0
      %v3288 = vadd.f32 0.0, %v3287
      %v3289 = vpop.f32.mrb[0].mxu0
      %v3290 = vpop.f32.mrb[0].mxu0
      %v3291 = vadd.f32 0.0, %v3290
      %v3292 = vpop.f32.mrb[0].mxu0
      %3293 = vmatprep.mubr.bf16.mxu0 0
      %3294 = vmatmul.mubr.bf16.gmra.mrb[0].mxu0 %v3169
      %v3295 = vpop.f32.mrb[0].mxu0
      %v3296 = vadd.f32 0.0, %v3295
      %v3297 = vpop.f32.mrb[0].mxu0
      %v3298 = vpop.f32.mrb[0].mxu0
      %v3299 = vadd.f32 0.0, %v3298
      %v3300 = vpop.f32.mrb[0].mxu0
      %3301 = vmatprep.mubr.bf16.mxu0 0
      %3302 = vmatmul.mubr.bf16.gmra.mrb[0].mxu0 %v3172
      %v3303 = vpop.f32.mrb[0].mxu0
      %v3304 = vadd.f32 0.0, %v3303
      %v3305 = vpop.f32.mrb[0].mxu0
      %v3306 = vpop.f32.mrb[0].mxu0
      %v3307 = vadd.f32 0.0, %v3306
      %v3308 = vpop.f32.mrb[0].mxu0
      %3309 = vmatprep.mubr.bf16.mxu0 0
      %3310 = vmatmul.mubr.bf16.gmra.mrb[0].mxu0 %v3175
      %v3311 = vpop.f32.mrb[0].mxu0
      %v3312 = vadd.f32 0.0, %v3311
      %v3313 = vpop.f32.mrb[0].mxu0
      %v3314 = vpop.f32.mrb[0].mxu0
      %v3315 = vadd.f32 0.0, %v3314
      %v3316 = vpop.f32.mrb[0].mxu0
      %3317 = vmatprep.mubr.bf16.mxu0 0
      %3318 = vmatmul.mubr.bf16.gmra.mrb[0].mxu0 %v3178
      %v3319 = vpop.f32.mrb[0].mxu0
      %v3320 = vadd.f32 0.0, %v3319
      %v3321 = vpop.f32.mrb[0].mxu0
      %v3322 = vpop.f32.mrb[0].mxu0
      %v3323 = vadd.f32 0.0, %v3322
      %v3324 = vpop.f32.mrb[0].mxu0
      %3325 = vmatprep.mubr.bf16.mxu0 0
      %3326 = vmatmul.mubr.bf16.gmra.mrb[0].mxu0 %v3181
      %v3327 = vpop.f32.mrb[0].mxu0
      %v3328 = vadd.f32 0.0, %v3327
      %v3329 = vpop.f32.mrb[0].mxu0
      %v3330 = vpop.f32.mrb[0].mxu0
      %v3331 = vadd.f32 0.0, %v3330
      %v3332 = vpop.f32.mrb[0].mxu0
      %3333 = vmatprep.mubr.bf16.mxu0 0
      %3334 = vmatmul.mubr.bf16.gmra.mrb[0].mxu0 %v3184
      %v3335 = vpop.f32.mrb[0].mxu0
      %v3336 = vadd.f32 0.0, %v3335
      %v3337 = vpop.f32.mrb[0].mxu0
      %v3338 = vpop.f32.mrb[0].mxu0
      %v3339 = vadd.f32 0.0, %v3338
      %v3340 = vpop.f32.mrb[0].mxu0
      %3341 = vdwg.mxu0
      %v3342 = vadd.f32 %v3003, %v3224
      %v3343 = vadd.f32 %v3004, %v3227
      %v3344 = vadd.f32 %v3005, %v3232
      %v3345 = vadd.f32 %v3006, %v3235
      %v3346 = vadd.f32 %v3007, %v3240
      %v3347 = vadd.f32 %v3008, %v3243
      %v3348 = vadd.f32 %v3009, %v3248
      %v3349 = vadd.f32 %v3010, %v3251
      %v3350 = vadd.f32 %v3011, %v3256
      %v3351 = vadd.f32 %v3012, %v3259
      %v3352 = vadd.f32 %v3013, %v3264
      %v3353 = vadd.f32 %v3014, %v3267
      %v3354 = vadd.f32 %v3015, %v3272
      %v3355 = vadd.f32 %v3016, %v3275
      %v3356 = vadd.f32 %v3017, %v3280
      %v3357 = vadd.f32 %v3018, %v3283
      %v3358 = vadd.f32 %v3019, %v3288
      %v3359 = vadd.f32 %v3020, %v3291
      %v3360 = vadd.f32 %v3021, %v3296
      %v3361 = vadd.f32 %v3022, %v3299
      %v3362 = vadd.f32 %v3023, %v3304
      %v3363 = vadd.f32 %v3024, %v3307
      %v3364 = vadd.f32 %v3025, %v3312
      %v3365 = vadd.f32 %v3026, %v3315
      %v3366 = vadd.f32 %v3027, %v3320
      %v3367 = vadd.f32 %v3028, %v3323
      %v3368 = vadd.f32 %v3029, %v3328
      %v3369 = vadd.f32 %v3030, %v3331
      %v3370 = vadd.f32 %v3031, %v3336
      %v3371 = vadd.f32 %v3032, %v3339
      %v3372 = vld [vmem:[%s3033] sm:$0xf]
      %v3373 = vld [vmem:[%s3033 + $0x4] sm:$0xf]
      %v3374 = vld [vmem:[%s3033 + $0x8] sm:$0x1]
      %v3375 = vld [vmem:[%s3033 + $0xc] sm:$0xf]
      %v3376 = vld [vmem:[%s3033 + $0x10] sm:$0xf]
      %v3377 = vld [vmem:[%s3033 + $0x14] sm:$0x1]
      %v3378 = vld [vmem:[%s3033 + $0x18] sm:$0xf]
      %v3379 = vld [vmem:[%s3033 + $0x1c] sm:$0xf]
      %v3380 = vld [vmem:[%s3033 + $0x20] sm:$0x1]
      %v3381 = vld [vmem:[%s3033 + $0x24] sm:$0xf]
      %v3382 = vld [vmem:[%s3033 + $0x28] sm:$0xf]
      %v3383 = vld [vmem:[%s3033 + $0x2c] sm:$0x1]
      %v3384 = vld [vmem:[%s3033 + $0x30] sm:$0xf]
      %v3385 = vld [vmem:[%s3033 + $0x34] sm:$0xf]
      %v3386 = vld [vmem:[%s3033 + $0x38] sm:$0x1]
      %v3387 = vld [vmem:[%s3033 + $0x3c] sm:$0xf]
      %v3388 = vld [vmem:[%s3033 + $0x40] sm:$0xf]
      %v3389 = vld [vmem:[%s3033 + $0x44] sm:$0x1]
      %v3390 = vld [vmem:[%s3033 + $0x48] sm:$0xf]
      %v3391 = vld [vmem:[%s3033 + $0x4c] sm:$0xf]
      %v3392 = vld [vmem:[%s3033 + $0x50] sm:$0x1]
      %v3393 = vld [vmem:[%s3033 + $0x54] sm:$0xf]
      %v3394 = vld [vmem:[%s3033 + $0x58] sm:$0xf]
      %v3395 = vld [vmem:[%s3033 + $0x5c] sm:$0x1]
      %v3396 = vld [vmem:[%s3033 + $0x60] sm:$0xf]
      %v3397 = vld [vmem:[%s3033 + $0x64] sm:$0xf]
      %v3398 = vld [vmem:[%s3033 + $0x68] sm:$0x1]
      %v3399 = vld [vmem:[%s3033 + $0x6c] sm:$0xf]
      %v3400 = vld [vmem:[%s3033 + $0x70] sm:$0xf]
      %v3401 = vld [vmem:[%s3033 + $0x74] sm:$0x1]
      %v3402 = vld [vmem:[%s3033 + $0x78] sm:$0xf]
      %v3403 = vld [vmem:[%s3033 + $0x7c] sm:$0xf]
      %v3404 = vld [vmem:[%s3033 + $0x80] sm:$0x1]
      %v3405 = vld [vmem:[%s3033 + $0x84] sm:$0xf]
      %v3406 = vld [vmem:[%s3033 + $0x88] sm:$0xf]
      %v3407 = vld [vmem:[%s3033 + $0x8c] sm:$0x1]
      %v3408 = vld [vmem:[%s3033 + $0x90] sm:$0xf]
      %v3409 = vld [vmem:[%s3033 + $0x94] sm:$0xf]
      %v3410 = vld [vmem:[%s3033 + $0x98] sm:$0x1]
      %v3411 = vld [vmem:[%s3033 + $0x9c] sm:$0xf]
      %v3412 = vld [vmem:[%s3033 + $0xa0] sm:$0xf]
      %v3413 = vld [vmem:[%s3033 + $0xa4] sm:$0x1]
      %v3414 = vld [vmem:[%s3033 + $0xa8] sm:$0xf]
      %v3415 = vld [vmem:[%s3033 + $0xac] sm:$0xf]
      %v3416 = vld [vmem:[%s3033 + $0xb0] sm:$0x1]
      %v3418 = vshrl.u32 %v3372, 16
      %v3420 = vrot.slane %v3418, 4
      %v3421 = vshll.u32 %v3372, 16
      %v3423 = vrot.slane %v3421, 5
      %v3424 = vor.u32 %v3420, %v3423
      %v3425 = vrot.slane %v3424, 4
      %v3427 = vshll.u32 %v3373, 16
      %v3429 = vrot.slane %v3427, 5
      %v3430 = vsel %vm250, %v3425, %v3429
      %v3431 = vshrl.u32 %v3373, 16
      %v3433 = vrot.slane %v3431, 4
      %v3434 = vor.u32 %v3433, %v3429
      %v3435 = vrot.slane %v3434, 4
      %v3437 = vshll.u32 %v3374, 16
      %v3439 = vrot.slane %v3437, 5
      %v3440 = vsel %vm250, %v3435, %v3439
      %v3442 = vshrl.u32 %v3375, 16
      %v3444 = vrot.slane %v3442, 4
      %v3445 = vshll.u32 %v3375, 16
      %v3447 = vrot.slane %v3445, 5
      %v3448 = vor.u32 %v3444, %v3447
      %v3449 = vrot.slane %v3448, 4
      %v3451 = vshll.u32 %v3376, 16
      %v3453 = vrot.slane %v3451, 5
      %v3454 = vsel %vm250, %v3449, %v3453
      %v3455 = vshrl.u32 %v3376, 16
      %v3457 = vrot.slane %v3455, 4
      %v3458 = vor.u32 %v3457, %v3453
      %v3459 = vrot.slane %v3458, 4
      %v3461 = vshll.u32 %v3377, 16
      %v3463 = vrot.slane %v3461, 5
      %v3464 = vsel %vm250, %v3459, %v3463
      %v3466 = vshrl.u32 %v3378, 16
      %v3468 = vrot.slane %v3466, 4
      %v3469 = vshll.u32 %v3378, 16
      %v3471 = vrot.slane %v3469, 5
      %v3472 = vor.u32 %v3468, %v3471
      %v3473 = vrot.slane %v3472, 4
      %v3475 = vshll.u32 %v3379, 16
      %v3477 = vrot.slane %v3475, 5
      %v3478 = vsel %vm250, %v3473, %v3477
      %v3479 = vshrl.u32 %v3379, 16
      %v3481 = vrot.slane %v3479, 4
      %v3482 = vor.u32 %v3481, %v3477
      %v3483 = vrot.slane %v3482, 4
      %v3485 = vshll.u32 %v3380, 16
      %v3487 = vrot.slane %v3485, 5
      %v3488 = vsel %vm250, %v3483, %v3487
      %v3490 = vshrl.u32 %v3381, 16
      %v3492 = vrot.slane %v3490, 4
      %v3493 = vshll.u32 %v3381, 16
      %v3495 = vrot.slane %v3493, 5
      %v3496 = vor.u32 %v3492, %v3495
      %v3497 = vrot.slane %v3496, 4
      %v3499 = vshll.u32 %v3382, 16
      %v3501 = vrot.slane %v3499, 5
      %v3502 = vsel %vm250, %v3497, %v3501
      %v3503 = vshrl.u32 %v3382, 16
      %v3505 = vrot.slane %v3503, 4
      %v3506 = vor.u32 %v3505, %v3501
      %v3507 = vrot.slane %v3506, 4
      %v3509 = vshll.u32 %v3383, 16
      %v3511 = vrot.slane %v3509, 5
      %v3512 = vsel %vm250, %v3507, %v3511
      %v3514 = vshrl.u32 %v3384, 16
      %v3516 = vrot.slane %v3514, 4
      %v3517 = vshll.u32 %v3384, 16
      %v3519 = vrot.slane %v3517, 5
      %v3520 = vor.u32 %v3516, %v3519
      %v3521 = vrot.slane %v3520, 4
      %v3523 = vshll.u32 %v3385, 16
      %v3525 = vrot.slane %v3523, 5
      %v3526 = vsel %vm250, %v3521, %v3525
      %v3527 = vshrl.u32 %v3385, 16
      %v3529 = vrot.slane %v3527, 4
      %v3530 = vor.u32 %v3529, %v3525
      %v3531 = vrot.slane %v3530, 4
      %v3533 = vshll.u32 %v3386, 16
      %v3535 = vrot.slane %v3533, 5
      %v3536 = vsel %vm250, %v3531, %v3535
      %v3538 = vshrl.u32 %v3387, 16
      %v3540 = vrot.slane %v3538, 4
      %v3541 = vshll.u32 %v3387, 16
      %v3543 = vrot.slane %v3541, 5
      %v3544 = vor.u32 %v3540, %v3543
      %v3545 = vrot.slane %v3544, 4
      %v3547 = vshll.u32 %v3388, 16
      %v3549 = vrot.slane %v3547, 5
      %v3550 = vsel %vm250, %v3545, %v3549
      %v3551 = vshrl.u32 %v3388, 16
      %v3553 = vrot.slane %v3551, 4
      %v3554 = vor.u32 %v3553, %v3549
      %v3555 = vrot.slane %v3554, 4
      %v3557 = vshll.u32 %v3389, 16
      %v3559 = vrot.slane %v3557, 5
      %v3560 = vsel %vm250, %v3555, %v3559
      %v3562 = vshrl.u32 %v3390, 16
      %v3564 = vrot.slane %v3562, 4
      %v3565 = vshll.u32 %v3390, 16
      %v3567 = vrot.slane %v3565, 5
      %v3568 = vor.u32 %v3564, %v3567
      %v3569 = vrot.slane %v3568, 4
      %v3571 = vshll.u32 %v3391, 16
      %v3573 = vrot.slane %v3571, 5
      %v3574 = vsel %vm250, %v3569, %v3573
      %v3575 = vshrl.u32 %v3391, 16
      %v3577 = vrot.slane %v3575, 4
      %v3578 = vor.u32 %v3577, %v3573
      %v3579 = vrot.slane %v3578, 4
      %v3581 = vshll.u32 %v3392, 16
      %v3583 = vrot.slane %v3581, 5
      %v3584 = vsel %vm250, %v3579, %v3583
      %v3586 = vshrl.u32 %v3393, 16
      %v3588 = vrot.slane %v3586, 4
      %v3589 = vshll.u32 %v3393, 16
      %v3591 = vrot.slane %v3589, 5
      %v3592 = vor.u32 %v3588, %v3591
      %v3593 = vrot.slane %v3592, 4
      %v3595 = vshll.u32 %v3394, 16
      %v3597 = vrot.slane %v3595, 5
      %v3598 = vsel %vm250, %v3593, %v3597
      %v3599 = vshrl.u32 %v3394, 16
      %v3601 = vrot.slane %v3599, 4
      %v3602 = vor.u32 %v3601, %v3597
      %v3603 = vrot.slane %v3602, 4
      %v3605 = vshll.u32 %v3395, 16
      %v3607 = vrot.slane %v3605, 5
      %v3608 = vsel %vm250, %v3603, %v3607
      %v3610 = vshrl.u32 %v3396, 16
      %v3612 = vrot.slane %v3610, 4
      %v3613 = vshll.u32 %v3396, 16
      %v3615 = vrot.slane %v3613, 5
      %v3616 = vor.u32 %v3612, %v3615
      %v3617 = vrot.slane %v3616, 4
      %v3619 = vshll.u32 %v3397, 16
      %v3621 = vrot.slane %v3619, 5
      %v3622 = vsel %vm250, %v3617, %v3621
      %v3623 = vshrl.u32 %v3397, 16
      %v3625 = vrot.slane %v3623, 4
      %v3626 = vor.u32 %v3625, %v3621
      %v3627 = vrot.slane %v3626, 4
      %v3629 = vshll.u32 %v3398, 16
      %v3631 = vrot.slane %v3629, 5
      %v3632 = vsel %vm250, %v3627, %v3631
      %v3634 = vshrl.u32 %v3399, 16
      %v3636 = vrot.slane %v3634, 4
      %v3637 = vshll.u32 %v3399, 16
      %v3639 = vrot.slane %v3637, 5
      %v3640 = vor.u32 %v3636, %v3639
      %v3641 = vrot.slane %v3640, 4
      %v3643 = vshll.u32 %v3400, 16
      %v3645 = vrot.slane %v3643, 5
      %v3646 = vsel %vm250, %v3641, %v3645
      %v3647 = vshrl.u32 %v3400, 16
      %v3649 = vrot.slane %v3647, 4
      %v3650 = vor.u32 %v3649, %v3645
      %v3651 = vrot.slane %v3650, 4
      %v3653 = vshll.u32 %v3401, 16
      %v3655 = vrot.slane %v3653, 5
      %v3656 = vsel %vm250, %v3651, %v3655
      %v3658 = vshrl.u32 %v3402, 16
      %v3660 = vrot.slane %v3658, 4
      %v3661 = vshll.u32 %v3402, 16
      %v3663 = vrot.slane %v3661, 5
      %v3664 = vor.u32 %v3660, %v3663
      %v3665 = vrot.slane %v3664, 4
      %v3667 = vshll.u32 %v3403, 16
      %v3669 = vrot.slane %v3667, 5
      %v3670 = vsel %vm250, %v3665, %v3669
      %v3671 = vshrl.u32 %v3403, 16
      %v3673 = vrot.slane %v3671, 4
      %v3674 = vor.u32 %v3673, %v3669
      %v3675 = vrot.slane %v3674, 4
      %v3677 = vshll.u32 %v3404, 16
      %v3679 = vrot.slane %v3677, 5
      %v3680 = vsel %vm250, %v3675, %v3679
      %v3682 = vshrl.u32 %v3405, 16
      %v3684 = vrot.slane %v3682, 4
      %v3685 = vshll.u32 %v3405, 16
      %v3687 = vrot.slane %v3685, 5
      %v3688 = vor.u32 %v3684, %v3687
      %v3689 = vrot.slane %v3688, 4
      %v3691 = vshll.u32 %v3406, 16
      %v3693 = vrot.slane %v3691, 5
      %v3694 = vsel %vm250, %v3689, %v3693
      %v3695 = vshrl.u32 %v3406, 16
      %v3697 = vrot.slane %v3695, 4
      %v3698 = vor.u32 %v3697, %v3693
      %v3699 = vrot.slane %v3698, 4
      %v3701 = vshll.u32 %v3407, 16
      %v3703 = vrot.slane %v3701, 5
      %v3704 = vsel %vm250, %v3699, %v3703
      %v3706 = vshrl.u32 %v3408, 16
      %v3708 = vrot.slane %v3706, 4
      %v3709 = vshll.u32 %v3408, 16
      %v3711 = vrot.slane %v3709, 5
      %v3712 = vor.u32 %v3708, %v3711
      %v3713 = vrot.slane %v3712, 4
      %v3715 = vshll.u32 %v3409, 16
      %v3717 = vrot.slane %v3715, 5
      %v3718 = vsel %vm250, %v3713, %v3717
      %v3719 = vshrl.u32 %v3409, 16
      %v3721 = vrot.slane %v3719, 4
      %v3722 = vor.u32 %v3721, %v3717
      %v3723 = vrot.slane %v3722, 4
      %v3725 = vshll.u32 %v3410, 16
      %v3727 = vrot.slane %v3725, 5
      %v3728 = vsel %vm250, %v3723, %v3727
      %v3730 = vshrl.u32 %v3411, 16
      %v3732 = vrot.slane %v3730, 4
      %v3733 = vshll.u32 %v3411, 16
      %v3735 = vrot.slane %v3733, 5
      %v3736 = vor.u32 %v3732, %v3735
      %v3737 = vrot.slane %v3736, 4
      %v3739 = vshll.u32 %v3412, 16
      %v3741 = vrot.slane %v3739, 5
      %v3742 = vsel %vm250, %v3737, %v3741
      %v3743 = vshrl.u32 %v3412, 16
      %v3745 = vrot.slane %v3743, 4
      %v3746 = vor.u32 %v3745, %v3741
      %v3747 = vrot.slane %v3746, 4
      %v3749 = vshll.u32 %v3413, 16
      %v3751 = vrot.slane %v3749, 5
      %v3752 = vsel %vm250, %v3747, %v3751
      %v3754 = vshrl.u32 %v3414, 16
      %v3756 = vrot.slane %v3754, 4
      %v3757 = vshll.u32 %v3414, 16
      %v3759 = vrot.slane %v3757, 5
      %v3760 = vor.u32 %v3756, %v3759
      %v3761 = vrot.slane %v3760, 4
      %v3763 = vshll.u32 %v3415, 16
      %v3765 = vrot.slane %v3763, 5
      %v3766 = vsel %vm250, %v3761, %v3765
      %v3767 = vshrl.u32 %v3415, 16
      %v3769 = vrot.slane %v3767, 4
      %v3770 = vor.u32 %v3769, %v3765
      %v3771 = vrot.slane %v3770, 4
      %v3773 = vshll.u32 %v3416, 16
      %v3775 = vrot.slane %v3773, 5
      %v3776 = vsel %vm250, %v3771, %v3775
      %s3777 = scalar_lea.vmem %s1, 14
      %v3778 = vld [vmem:[%s3777] sm:$0x3]
      %v3779 = vunpack.c.l.b16 %v3430
      %v3780 = vunpack.c.l.b16 %v3440
      %v3781 = vunpack.c.l.b16 %v3454
      %v3782 = vunpack.c.l.b16 %v3464
      %v3783 = vunpack.c.l.b16 %v3478
      %v3784 = vunpack.c.l.b16 %v3488
      %v3785 = vunpack.c.l.b16 %v3502
      %v3786 = vunpack.c.l.b16 %v3512
      %v3787 = vunpack.c.l.b16 %v3526
      %v3788 = vunpack.c.l.b16 %v3536
      %v3789 = vunpack.c.l.b16 %v3550
      %v3790 = vunpack.c.l.b16 %v3560
      %v3791 = vunpack.c.l.b16 %v3574
      %v3792 = vunpack.c.l.b16 %v3584
      %v3793 = vunpack.c.l.b16 %v3598
      %v3794 = vunpack.c.l.b16 %v3608
      %v3795 = vunpack.c.l.b16 %v3622
      %v3796 = vunpack.c.l.b16 %v3632
      %v3797 = vunpack.c.l.b16 %v3646
      %v3798 = vunpack.c.l.b16 %v3656
      %v3799 = vunpack.c.l.b16 %v3670
      %v3800 = vunpack.c.l.b16 %v3680
      %v3801 = vunpack.c.l.b16 %v3694
      %v3802 = vunpack.c.l.b16 %v3704
      %v3803 = vunpack.c.l.b16 %v3718
      %v3804 = vunpack.c.l.b16 %v3728
      %v3805 = vunpack.c.l.b16 %v3742
      %v3806 = vunpack.c.l.b16 %v3752
      %v3807 = vunpack.c.l.b16 %v3766
      %v3808 = vunpack.c.l.b16 %v3776
      %v3809 = vpack.c.b16 %v3780, %v3779
      %v3810 = vpack.c.b16 %v3782, %v3781
      %v3811 = vpack.c.b16 %v3784, %v3783
      %v3812 = vpack.c.b16 %v3786, %v3785
      %v3813 = vpack.c.b16 %v3788, %v3787
      %v3814 = vpack.c.b16 %v3790, %v3789
      %v3815 = vpack.c.b16 %v3792, %v3791
      %v3816 = vpack.c.b16 %v3794, %v3793
      %v3817 = vpack.c.b16 %v3796, %v3795
      %v3818 = vpack.c.b16 %v3798, %v3797
      %v3819 = vpack.c.b16 %v3800, %v3799
      %v3820 = vpack.c.b16 %v3802, %v3801
      %v3821 = vpack.c.b16 %v3804, %v3803
      %v3822 = vpack.c.b16 %v3806, %v3805
      %v3823 = vpack.c.b16 %v3808, %v3807
      %v3825 = vsel %vm658, %v3809, 0
      %v3828 = vsel %vm658, %v3810, 0
      %v3831 = vsel %vm658, %v3811, 0
      %v3834 = vsel %vm658, %v3812, 0
      %v3837 = vsel %vm658, %v3813, 0
      %v3840 = vsel %vm658, %v3814, 0
      %v3843 = vsel %vm658, %v3815, 0
      %v3846 = vsel %vm658, %v3816, 0
      %v3849 = vsel %vm658, %v3817, 0
      %v3852 = vsel %vm658, %v3818, 0
      %v3855 = vsel %vm658, %v3819, 0
      %v3858 = vsel %vm658, %v3820, 0
      %v3861 = vsel %vm658, %v3821, 0
      %v3864 = vsel %vm658, %v3822, 0
      %v3867 = vsel %vm658, %v3823, 0
      %v3870 = vsel %vm704, %v3778, 0
      %3872 = vmatprep.subr.bf16.mxu0 0
      %3873 = vmatpush1.bf16.msra.mxu0 %v3870
      %3874 = vmatprep.subr.bf16.mxu0 0
      %3875 = vmatpush1.bf16.msra.mxu0 0
      %3876 = vmatprep.subr.bf16.mxu0 0
      %3877 = vmatpush1.bf16.msra.mxu0 0
      %3878 = vmatprep.subr.bf16.mxu0 0
      %3879 = vmatpush1.bf16.msra.mxu0 0
      %3880 = vmatprep.subr.bf16.mxu0 0
      %3881 = vmatpush1.bf16.msra.mxu0 0
      %3882 = vmatprep.subr.bf16.mxu0 0
      %3883 = vmatpush1.bf16.msra.mxu0 0
      %3884 = vmatprep.subr.bf16.mxu0 0
      %3885 = vmatpush1.bf16.msra.mxu0 0
      %3886 = vmatprep.subr.bf16.mxu0 0
      %3887 = vmatpush1.bf16.msra.mxu0 0
      %3888 = vmatprep.subr.bf16.mxu0 0
      %3889 = vmatpush1.bf16.msra.mxu0 0
      %3890 = vmatprep.subr.bf16.mxu0 0
      %3891 = vmatpush1.bf16.msra.mxu0 0
      %3892 = vmatprep.subr.bf16.mxu0 0
      %3893 = vmatpush1.bf16.msra.mxu0 0
      %3894 = vmatprep.subr.bf16.mxu0 0
      %3895 = vmatpush1.bf16.msra.mxu0 0
      %3896 = vmatprep.subr.bf16.mxu0 0
      %3897 = vmatpush1.bf16.msra.mxu0 0
      %3898 = vmatprep.subr.bf16.mxu0 0
      %3899 = vmatpush1.bf16.msra.mxu0 0
      %3900 = vmatprep.subr.bf16.mxu0 0
      %3901 = vmatpush1.bf16.msra.mxu0 0
      %3902 = vmatprep.subr.bf16.mxu0 0
      %3903 = vmatpush1.bf16.msra.mxu0 0
      %3904 = vmatprep.mubr.bf16.mxu0 0
      %3905 = vmatmul.mubr.bf16.gmra.mrb[0].mxu0 %v3825
      %v3906 = vpop.f32.mrb[0].mxu0
      %v3907 = vadd.f32 0.0, %v3906
      %v3908 = vpop.f32.mrb[0].mxu0
      %v3909 = vpop.f32.mrb[0].mxu0
      %v3910 = vadd.f32 0.0, %v3909
      %v3911 = vpop.f32.mrb[0].mxu0
      %3912 = vmatprep.mubr.bf16.mxu0 0
      %3913 = vmatmul.mubr.bf16.gmra.mrb[0].mxu0 %v3828
      %v3914 = vpop.f32.mrb[0].mxu0
      %v3915 = vadd.f32 0.0, %v3914
      %v3916 = vpop.f32.mrb[0].mxu0
      %v3917 = vpop.f32.mrb[0].mxu0
      %v3918 = vadd.f32 0.0, %v3917
      %v3919 = vpop.f32.mrb[0].mxu0
      %3920 = vmatprep.mubr.bf16.mxu0 0
      %3921 = vmatmul.mubr.bf16.gmra.mrb[0].mxu0 %v3831
      %v3922 = vpop.f32.mrb[0].mxu0
      %v3923 = vadd.f32 0.0, %v3922
      %v3924 = vpop.f32.mrb[0].mxu0
      %v3925 = vpop.f32.mrb[0].mxu0
      %v3926 = vadd.f32 0.0, %v3925
      %v3927 = vpop.f32.mrb[0].mxu0
      %3928 = vmatprep.mubr.bf16.mxu0 0
      %3929 = vmatmul.mubr.bf16.gmra.mrb[0].mxu0 %v3834
      %v3930 = vpop.f32.mrb[0].mxu0
      %v3931 = vadd.f32 0.0, %v3930
      %v3932 = vpop.f32.mrb[0].mxu0
      %v3933 = vpop.f32.mrb[0].mxu0
      %v3934 = vadd.f32 0.0, %v3933
      %v3935 = vpop.f32.mrb[0].mxu0
      %3936 = vmatprep.mubr.bf16.mxu0 0
      %3937 = vmatmul.mubr.bf16.gmra.mrb[0].mxu0 %v3837
      %v3938 = vpop.f32.mrb[0].mxu0
      %v3939 = vadd.f32 0.0, %v3938
      %v3940 = vpop.f32.mrb[0].mxu0
      %v3941 = vpop.f32.mrb[0].mxu0
      %v3942 = vadd.f32 0.0, %v3941
      %v3943 = vpop.f32.mrb[0].mxu0
      %3944 = vmatprep.mubr.bf16.mxu0 0
      %3945 = vmatmul.mubr.bf16.gmra.mrb[0].mxu0 %v3840
      %v3946 = vpop.f32.mrb[0].mxu0
      %v3947 = vadd.f32 0.0, %v3946
      %v3948 = vpop.f32.mrb[0].mxu0
      %v3949 = vpop.f32.mrb[0].mxu0
      %v3950 = vadd.f32 0.0, %v3949
      %v3951 = vpop.f32.mrb[0].mxu0
      %3952 = vmatprep.mubr.bf16.mxu0 0
      %3953 = vmatmul.mubr.bf16.gmra.mrb[0].mxu0 %v3843
      %v3954 = vpop.f32.mrb[0].mxu0
      %v3955 = vadd.f32 0.0, %v3954
      %v3956 = vpop.f32.mrb[0].mxu0
      %v3957 = vpop.f32.mrb[0].mxu0
      %v3958 = vadd.f32 0.0, %v3957
      %v3959 = vpop.f32.mrb[0].mxu0
      %3960 = vmatprep.mubr.bf16.mxu0 0
      %3961 = vmatmul.mubr.bf16.gmra.mrb[0].mxu0 %v3846
      %v3962 = vpop.f32.mrb[0].mxu0
      %v3963 = vadd.f32 0.0, %v3962
      %v3964 = vpop.f32.mrb[0].mxu0
      %v3965 = vpop.f32.mrb[0].mxu0
      %v3966 = vadd.f32 0.0, %v3965
      %v3967 = vpop.f32.mrb[0].mxu0
      %3968 = vmatprep.mubr.bf16.mxu0 0
      %3969 = vmatmul.mubr.bf16.gmra.mrb[0].mxu0 %v3849
      %v3970 = vpop.f32.mrb[0].mxu0
      %v3971 = vadd.f32 0.0, %v3970
      %v3972 = vpop.f32.mrb[0].mxu0
      %v3973 = vpop.f32.mrb[0].mxu0
      %v3974 = vadd.f32 0.0, %v3973
      %v3975 = vpop.f32.mrb[0].mxu0
      %3976 = vmatprep.mubr.bf16.mxu0 0
      %3977 = vmatmul.mubr.bf16.gmra.mrb[0].mxu0 %v3852
      %v3978 = vpop.f32.mrb[0].mxu0
      %v3979 = vadd.f32 0.0, %v3978
      %v3980 = vpop.f32.mrb[0].mxu0
      %v3981 = vpop.f32.mrb[0].mxu0
      %v3982 = vadd.f32 0.0, %v3981
      %v3983 = vpop.f32.mrb[0].mxu0
      %3984 = vmatprep.mubr.bf16.mxu0 0
      %3985 = vmatmul.mubr.bf16.gmra.mrb[0].mxu0 %v3855
      %v3986 = vpop.f32.mrb[0].mxu0
      %v3987 = vadd.f32 0.0, %v3986
      %v3988 = vpop.f32.mrb[0].mxu0
      %v3989 = vpop.f32.mrb[0].mxu0
      %v3990 = vadd.f32 0.0, %v3989
      %v3991 = vpop.f32.mrb[0].mxu0
      %3992 = vmatprep.mubr.bf16.mxu0 0
      %3993 = vmatmul.mubr.bf16.gmra.mrb[0].mxu0 %v3858
      %v3994 = vpop.f32.mrb[0].mxu0
      %v3995 = vadd.f32 0.0, %v3994
      %v3996 = vpop.f32.mrb[0].mxu0
      %v3997 = vpop.f32.mrb[0].mxu0
      %v3998 = vadd.f32 0.0, %v3997
      %v3999 = vpop.f32.mrb[0].mxu0
      %4000 = vmatprep.mubr.bf16.mxu0 0
      %4001 = vmatmul.mubr.bf16.gmra.mrb[0].mxu0 %v3861
      %v4002 = vpop.f32.mrb[0].mxu0
      %v4003 = vadd.f32 0.0, %v4002
      %v4004 = vpop.f32.mrb[0].mxu0
      %v4005 = vpop.f32.mrb[0].mxu0
      %v4006 = vadd.f32 0.0, %v4005
      %v4007 = vpop.f32.mrb[0].mxu0
      %4008 = vmatprep.mubr.bf16.mxu0 0
      %4009 = vmatmul.mubr.bf16.gmra.mrb[0].mxu0 %v3864
      %v4010 = vpop.f32.mrb[0].mxu0
      %v4011 = vadd.f32 0.0, %v4010
      %v4012 = vpop.f32.mrb[0].mxu0
      %v4013 = vpop.f32.mrb[0].mxu0
      %v4014 = vadd.f32 0.0, %v4013
      %v4015 = vpop.f32.mrb[0].mxu0
      %4016 = vmatprep.mubr.bf16.mxu0 0
      %4017 = vmatmul.mubr.bf16.gmra.mrb[0].mxu0 %v3867
      %v4018 = vpop.f32.mrb[0].mxu0
      %v4019 = vadd.f32 0.0, %v4018
      %v4020 = vpop.f32.mrb[0].mxu0
      %v4021 = vpop.f32.mrb[0].mxu0
      %v4022 = vadd.f32 0.0, %v4021
      %v4023 = vpop.f32.mrb[0].mxu0
      %4024 = vdwg.mxu0
      %v4025 = vadd.f32 %v3342, %v3907
      %v4026 = vadd.f32 %v3343, %v3910
      %v4027 = vadd.f32 %v3344, %v3915
      %v4028 = vadd.f32 %v3345, %v3918
      %v4029 = vadd.f32 %v3346, %v3923
      %v4030 = vadd.f32 %v3347, %v3926
      %v4031 = vadd.f32 %v3348, %v3931
      %v4032 = vadd.f32 %v3349, %v3934
      %v4033 = vadd.f32 %v3350, %v3939
      %v4034 = vadd.f32 %v3351, %v3942
      %v4035 = vadd.f32 %v3352, %v3947
      %v4036 = vadd.f32 %v3353, %v3950
      %v4037 = vadd.f32 %v3354, %v3955
      %v4038 = vadd.f32 %v3355, %v3958
      %v4039 = vadd.f32 %v3356, %v3963
      %v4040 = vadd.f32 %v3357, %v3966
      %v4041 = vadd.f32 %v3358, %v3971
      %v4042 = vadd.f32 %v3359, %v3974
      %v4043 = vadd.f32 %v3360, %v3979
      %v4044 = vadd.f32 %v3361, %v3982
      %v4045 = vadd.f32 %v3362, %v3987
      %v4046 = vadd.f32 %v3363, %v3990
      %v4047 = vadd.f32 %v3364, %v3995
      %v4048 = vadd.f32 %v3365, %v3998
      %v4049 = vadd.f32 %v3366, %v4003
      %v4050 = vadd.f32 %v3367, %v4006
      %v4051 = vadd.f32 %v3368, %v4011
      %v4052 = vadd.f32 %v3369, %v4014
      %v4053 = vadd.f32 %v3370, %v4019
      %v4054 = vadd.f32 %v3371, %v4022
      %v4055 = vld [vmem:[%s3033] sm:$0xe]
      %v4056 = vld [vmem:[%s3033 + $0xc] sm:$0xe]
      %v4057 = vld [vmem:[%s3033 + $0x18] sm:$0xe]
      %v4058 = vld [vmem:[%s3033 + $0x24] sm:$0xe]
      %v4059 = vld [vmem:[%s3033 + $0x30] sm:$0xe]
      %v4060 = vld [vmem:[%s3033 + $0x3c] sm:$0xe]
      %v4061 = vld [vmem:[%s3033 + $0x48] sm:$0xe]
      %v4062 = vld [vmem:[%s3033 + $0x54] sm:$0xe]
      %v4063 = vld [vmem:[%s3033 + $0x60] sm:$0xe]
      %v4064 = vld [vmem:[%s3033 + $0x6c] sm:$0xe]
      %v4065 = vld [vmem:[%s3033 + $0x78] sm:$0xe]
      %v4066 = vld [vmem:[%s3033 + $0x84] sm:$0xe]
      %v4067 = vld [vmem:[%s3033 + $0x90] sm:$0xe]
      %v4068 = vld [vmem:[%s3033 + $0x9c] sm:$0xe]
      %v4069 = vld [vmem:[%s3033 + $0xa8] sm:$0xe]
      %v4115 = vrot.slane %v4055, 5
      %v4116 = vrot.slane %v4115, 4
      %v4117 = vrot.slane %v3373, 5
      %v4118 = vsel %vm1184, %v4116, %v4117
      %v4119 = vrot.slane %v4117, 4
      %v4120 = vrot.slane %v3374, 5
      %v4121 = vsel %vm1184, %v4119, %v4120
      %v4122 = vrot.slane %v4056, 5
      %v4123 = vrot.slane %v4122, 4
      %v4124 = vrot.slane %v3376, 5
      %v4125 = vsel %vm1184, %v4123, %v4124
      %v4126 = vrot.slane %v4124, 4
      %v4127 = vrot.slane %v3377, 5
      %v4128 = vsel %vm1184, %v4126, %v4127
      %v4129 = vrot.slane %v4057, 5
      %v4130 = vrot.slane %v4129, 4
      %v4131 = vrot.slane %v3379, 5
      %v4132 = vsel %vm1184, %v4130, %v4131
      %v4133 = vrot.slane %v4131, 4
      %v4134 = vrot.slane %v3380, 5
      %v4135 = vsel %vm1184, %v4133, %v4134
      %v4136 = vrot.slane %v4058, 5
      %v4137 = vrot.slane %v4136, 4
      %v4138 = vrot.slane %v3382, 5
      %v4139 = vsel %vm1184, %v4137, %v4138
      %v4140 = vrot.slane %v4138, 4
      %v4141 = vrot.slane %v3383, 5
      %v4142 = vsel %vm1184, %v4140, %v4141
      %v4143 = vrot.slane %v4059, 5
      %v4144 = vrot.slane %v4143, 4
      %v4145 = vrot.slane %v3385, 5
      %v4146 = vsel %vm1184, %v4144, %v4145
      %v4147 = vrot.slane %v4145, 4
      %v4148 = vrot.slane %v3386, 5
      %v4149 = vsel %vm1184, %v4147, %v4148
      %v4150 = vrot.slane %v4060, 5
      %v4151 = vrot.slane %v4150, 4
      %v4152 = vrot.slane %v3388, 5
      %v4153 = vsel %vm1184, %v4151, %v4152
      %v4154 = vrot.slane %v4152, 4
      %v4155 = vrot.slane %v3389, 5
      %v4156 = vsel %vm1184, %v4154, %v4155
      %v4157 = vrot.slane %v4061, 5
      %v4158 = vrot.slane %v4157, 4
      %v4159 = vrot.slane %v3391, 5
      %v4160 = vsel %vm1184, %v4158, %v4159
      %v4161 = vrot.slane %v4159, 4
      %v4162 = vrot.slane %v3392, 5
      %v4163 = vsel %vm1184, %v4161, %v4162
      %v4164 = vrot.slane %v4062, 5
      %v4165 = vrot.slane %v4164, 4
      %v4166 = vrot.slane %v3394, 5
      %v4167 = vsel %vm1184, %v4165, %v4166
      %v4168 = vrot.slane %v4166, 4
      %v4169 = vrot.slane %v3395, 5
      %v4170 = vsel %vm1184, %v4168, %v4169
      %v4171 = vrot.slane %v4063, 5
      %v4172 = vrot.slane %v4171, 4
      %v4173 = vrot.slane %v3397, 5
      %v4174 = vsel %vm1184, %v4172, %v4173
      %v4175 = vrot.slane %v4173, 4
      %v4176 = vrot.slane %v3398, 5
      %v4177 = vsel %vm1184, %v4175, %v4176
      %v4178 = vrot.slane %v4064, 5
      %v4179 = vrot.slane %v4178, 4
      %v4180 = vrot.slane %v3400, 5
      %v4181 = vsel %vm1184, %v4179, %v4180
      %v4182 = vrot.slane %v4180, 4
      %v4183 = vrot.slane %v3401, 5
      %v4184 = vsel %vm1184, %v4182, %v4183
      %v4185 = vrot.slane %v4065, 5
      %v4186 = vrot.slane %v4185, 4
      %v4187 = vrot.slane %v3403, 5
      %v4188 = vsel %vm1184, %v4186, %v4187
      %v4189 = vrot.slane %v4187, 4
      %v4190 = vrot.slane %v3404, 5
      %v4191 = vsel %vm1184, %v4189, %v4190
      %v4192 = vrot.slane %v4066, 5
      %v4193 = vrot.slane %v4192, 4
      %v4194 = vrot.slane %v3406, 5
      %v4195 = vsel %vm1184, %v4193, %v4194
      %v4196 = vrot.slane %v4194, 4
      %v4197 = vrot.slane %v3407, 5
      %v4198 = vsel %vm1184, %v4196, %v4197
      %v4199 = vrot.slane %v4067, 5
      %v4200 = vrot.slane %v4199, 4
      %v4201 = vrot.slane %v3409, 5
      %v4202 = vsel %vm1184, %v4200, %v4201
      %v4203 = vrot.slane %v4201, 4
      %v4204 = vrot.slane %v3410, 5
      %v4205 = vsel %vm1184, %v4203, %v4204
      %v4206 = vrot.slane %v4068, 5
      %v4207 = vrot.slane %v4206, 4
      %v4208 = vrot.slane %v3412, 5
      %v4209 = vsel %vm1184, %v4207, %v4208
      %v4210 = vrot.slane %v4208, 4
      %v4211 = vrot.slane %v3413, 5
      %v4212 = vsel %vm1184, %v4210, %v4211
      %v4213 = vrot.slane %v4069, 5
      %v4214 = vrot.slane %v4213, 4
      %v4215 = vrot.slane %v3415, 5
      %v4216 = vsel %vm1184, %v4214, %v4215
      %v4217 = vrot.slane %v4215, 4
      %v4218 = vrot.slane %v3416, 5
      %v4219 = vsel %vm1184, %v4217, %v4218
      %s4220 = scalar_lea.vmem %s1, 16
      %v4221 = vld [vmem:[%s4220] sm:$0x3]
      %v4222 = vunpack.c.l.b16 %v4118
      %v4223 = vunpack.c.l.b16 %v4121
      %v4224 = vunpack.c.l.b16 %v4125
      %v4225 = vunpack.c.l.b16 %v4128
      %v4226 = vunpack.c.l.b16 %v4132
      %v4227 = vunpack.c.l.b16 %v4135
      %v4228 = vunpack.c.l.b16 %v4139
      %v4229 = vunpack.c.l.b16 %v4142
      %v4230 = vunpack.c.l.b16 %v4146
      %v4231 = vunpack.c.l.b16 %v4149
      %v4232 = vunpack.c.l.b16 %v4153
      %v4233 = vunpack.c.l.b16 %v4156
      %v4234 = vunpack.c.l.b16 %v4160
      %v4235 = vunpack.c.l.b16 %v4163
      %v4236 = vunpack.c.l.b16 %v4167
      %v4237 = vunpack.c.l.b16 %v4170
      %v4238 = vunpack.c.l.b16 %v4174
      %v4239 = vunpack.c.l.b16 %v4177
      %v4240 = vunpack.c.l.b16 %v4181
      %v4241 = vunpack.c.l.b16 %v4184
      %v4242 = vunpack.c.l.b16 %v4188
      %v4243 = vunpack.c.l.b16 %v4191
      %v4244 = vunpack.c.l.b16 %v4195
      %v4245 = vunpack.c.l.b16 %v4198
      %v4246 = vunpack.c.l.b16 %v4202
      %v4247 = vunpack.c.l.b16 %v4205
      %v4248 = vunpack.c.l.b16 %v4209
      %v4249 = vunpack.c.l.b16 %v4212
      %v4250 = vunpack.c.l.b16 %v4216
      %v4251 = vunpack.c.l.b16 %v4219
      %v4252 = vpack.c.b16 %v4223, %v4222
      %v4253 = vpack.c.b16 %v4225, %v4224
      %v4254 = vpack.c.b16 %v4227, %v4226
      %v4255 = vpack.c.b16 %v4229, %v4228
      %v4256 = vpack.c.b16 %v4231, %v4230
      %v4257 = vpack.c.b16 %v4233, %v4232
      %v4258 = vpack.c.b16 %v4235, %v4234
      %v4259 = vpack.c.b16 %v4237, %v4236
      %v4260 = vpack.c.b16 %v4239, %v4238
      %v4261 = vpack.c.b16 %v4241, %v4240
      %v4262 = vpack.c.b16 %v4243, %v4242
      %v4263 = vpack.c.b16 %v4245, %v4244
      %v4264 = vpack.c.b16 %v4247, %v4246
      %v4265 = vpack.c.b16 %v4249, %v4248
      %v4266 = vpack.c.b16 %v4251, %v4250
      %v4268 = vsel %vm658, %v4252, 0
      %v4271 = vsel %vm658, %v4253, 0
      %v4274 = vsel %vm658, %v4254, 0
      %v4277 = vsel %vm658, %v4255, 0
      %v4280 = vsel %vm658, %v4256, 0
      %v4283 = vsel %vm658, %v4257, 0
      %v4286 = vsel %vm658, %v4258, 0
      %v4289 = vsel %vm658, %v4259, 0
      %v4292 = vsel %vm658, %v4260, 0
      %v4295 = vsel %vm658, %v4261, 0
      %v4298 = vsel %vm658, %v4262, 0
      %v4301 = vsel %vm658, %v4263, 0
      %v4304 = vsel %vm658, %v4264, 0
      %v4307 = vsel %vm658, %v4265, 0
      %v4310 = vsel %vm658, %v4266, 0
      %v4313 = vsel %vm704, %v4221, 0
      %4315 = vmatprep.subr.bf16.mxu0 0
      %4316 = vmatpush1.bf16.msra.mxu0 %v4313
      %4317 = vmatprep.subr.bf16.mxu0 0
      %4318 = vmatpush1.bf16.msra.mxu0 0
      %4319 = vmatprep.subr.bf16.mxu0 0
      %4320 = vmatpush1.bf16.msra.mxu0 0
      %4321 = vmatprep.subr.bf16.mxu0 0
      %4322 = vmatpush1.bf16.msra.mxu0 0
      %4323 = vmatprep.subr.bf16.mxu0 0
      %4324 = vmatpush1.bf16.msra.mxu0 0
      %4325 = vmatprep.subr.bf16.mxu0 0
      %4326 = vmatpush1.bf16.msra.mxu0 0
      %4327 = vmatprep.subr.bf16.mxu0 0
      %4328 = vmatpush1.bf16.msra.mxu0 0
      %4329 = vmatprep.subr.bf16.mxu0 0
      %4330 = vmatpush1.bf16.msra.mxu0 0
      %4331 = vmatprep.subr.bf16.mxu0 0
      %4332 = vmatpush1.bf16.msra.mxu0 0
      %4333 = vmatprep.subr.bf16.mxu0 0
      %4334 = vmatpush1.bf16.msra.mxu0 0
      %4335 = vmatprep.subr.bf16.mxu0 0
      %4336 = vmatpush1.bf16.msra.mxu0 0
      %4337 = vmatprep.subr.bf16.mxu0 0
      %4338 = vmatpush1.bf16.msra.mxu0 0
      %4339 = vmatprep.subr.bf16.mxu0 0
      %4340 = vmatpush1.bf16.msra.mxu0 0
      %4341 = vmatprep.subr.bf16.mxu0 0
      %4342 = vmatpush1.bf16.msra.mxu0 0
      %4343 = vmatprep.subr.bf16.mxu0 0
      %4344 = vmatpush1.bf16.msra.mxu0 0
      %4345 = vmatprep.subr.bf16.mxu0 0
      %4346 = vmatpush1.bf16.msra.mxu0 0
      %4347 = vmatprep.mubr.bf16.mxu0 0
      %4348 = vmatmul.mubr.bf16.gmra.mrb[0].mxu0 %v4268
      %v4349 = vpop.f32.mrb[0].mxu0
      %v4350 = vadd.f32 0.0, %v4349
      %v4351 = vpop.f32.mrb[0].mxu0
      %v4352 = vpop.f32.mrb[0].mxu0
      %v4353 = vadd.f32 0.0, %v4352
      %v4354 = vpop.f32.mrb[0].mxu0
      %4355 = vmatprep.mubr.bf16.mxu0 0
      %4356 = vmatmul.mubr.bf16.gmra.mrb[0].mxu0 %v4271
      %v4357 = vpop.f32.mrb[0].mxu0
      %v4358 = vadd.f32 0.0, %v4357
      %v4359 = vpop.f32.mrb[0].mxu0
      %v4360 = vpop.f32.mrb[0].mxu0
      %v4361 = vadd.f32 0.0, %v4360
      %v4362 = vpop.f32.mrb[0].mxu0
      %4363 = vmatprep.mubr.bf16.mxu0 0
      %4364 = vmatmul.mubr.bf16.gmra.mrb[0].mxu0 %v4274
      %v4365 = vpop.f32.mrb[0].mxu0
      %v4366 = vadd.f32 0.0, %v4365
      %v4367 = vpop.f32.mrb[0].mxu0
      %v4368 = vpop.f32.mrb[0].mxu0
      %v4369 = vadd.f32 0.0, %v4368
      %v4370 = vpop.f32.mrb[0].mxu0
      %4371 = vmatprep.mubr.bf16.mxu0 0
      %4372 = vmatmul.mubr.bf16.gmra.mrb[0].mxu0 %v4277
      %v4373 = vpop.f32.mrb[0].mxu0
      %v4374 = vadd.f32 0.0, %v4373
      %v4375 = vpop.f32.mrb[0].mxu0
      %v4376 = vpop.f32.mrb[0].mxu0
      %v4377 = vadd.f32 0.0, %v4376
      %v4378 = vpop.f32.mrb[0].mxu0
      %4379 = vmatprep.mubr.bf16.mxu0 0
      %4380 = vmatmul.mubr.bf16.gmra.mrb[0].mxu0 %v4280
      %v4381 = vpop.f32.mrb[0].mxu0
      %v4382 = vadd.f32 0.0, %v4381
      %v4383 = vpop.f32.mrb[0].mxu0
      %v4384 = vpop.f32.mrb[0].mxu0
      %v4385 = vadd.f32 0.0, %v4384
      %v4386 = vpop.f32.mrb[0].mxu0
      %4387 = vmatprep.mubr.bf16.mxu0 0
      %4388 = vmatmul.mubr.bf16.gmra.mrb[0].mxu0 %v4283
      %v4389 = vpop.f32.mrb[0].mxu0
      %v4390 = vadd.f32 0.0, %v4389
      %v4391 = vpop.f32.mrb[0].mxu0
      %v4392 = vpop.f32.mrb[0].mxu0
      %v4393 = vadd.f32 0.0, %v4392
      %v4394 = vpop.f32.mrb[0].mxu0
      %4395 = vmatprep.mubr.bf16.mxu0 0
      %4396 = vmatmul.mubr.bf16.gmra.mrb[0].mxu0 %v4286
      %v4397 = vpop.f32.mrb[0].mxu0
      %v4398 = vadd.f32 0.0, %v4397
      %v4399 = vpop.f32.mrb[0].mxu0
      %v4400 = vpop.f32.mrb[0].mxu0
      %v4401 = vadd.f32 0.0, %v4400
      %v4402 = vpop.f32.mrb[0].mxu0
      %4403 = vmatprep.mubr.bf16.mxu0 0
      %4404 = vmatmul.mubr.bf16.gmra.mrb[0].mxu0 %v4289
      %v4405 = vpop.f32.mrb[0].mxu0
      %v4406 = vadd.f32 0.0, %v4405
      %v4407 = vpop.f32.mrb[0].mxu0
      %v4408 = vpop.f32.mrb[0].mxu0
      %v4409 = vadd.f32 0.0, %v4408
      %v4410 = vpop.f32.mrb[0].mxu0
      %4411 = vmatprep.mubr.bf16.mxu0 0
      %4412 = vmatmul.mubr.bf16.gmra.mrb[0].mxu0 %v4292
      %v4413 = vpop.f32.mrb[0].mxu0
      %v4414 = vadd.f32 0.0, %v4413
      %v4415 = vpop.f32.mrb[0].mxu0
      %v4416 = vpop.f32.mrb[0].mxu0
      %v4417 = vadd.f32 0.0, %v4416
      %v4418 = vpop.f32.mrb[0].mxu0
      %4419 = vmatprep.mubr.bf16.mxu0 0
      %4420 = vmatmul.mubr.bf16.gmra.mrb[0].mxu0 %v4295
      %v4421 = vpop.f32.mrb[0].mxu0
      %v4422 = vadd.f32 0.0, %v4421
      %v4423 = vpop.f32.mrb[0].mxu0
      %v4424 = vpop.f32.mrb[0].mxu0
      %v4425 = vadd.f32 0.0, %v4424
      %v4426 = vpop.f32.mrb[0].mxu0
      %4427 = vmatprep.mubr.bf16.mxu0 0
      %4428 = vmatmul.mubr.bf16.gmra.mrb[0].mxu0 %v4298
      %v4429 = vpop.f32.mrb[0].mxu0
      %v4430 = vadd.f32 0.0, %v4429
      %v4431 = vpop.f32.mrb[0].mxu0
      %v4432 = vpop.f32.mrb[0].mxu0
      %v4433 = vadd.f32 0.0, %v4432
      %v4434 = vpop.f32.mrb[0].mxu0
      %4435 = vmatprep.mubr.bf16.mxu0 0
      %4436 = vmatmul.mubr.bf16.gmra.mrb[0].mxu0 %v4301
      %v4437 = vpop.f32.mrb[0].mxu0
      %v4438 = vadd.f32 0.0, %v4437
      %v4439 = vpop.f32.mrb[0].mxu0
      %v4440 = vpop.f32.mrb[0].mxu0
      %v4441 = vadd.f32 0.0, %v4440
      %v4442 = vpop.f32.mrb[0].mxu0
      %4443 = vmatprep.mubr.bf16.mxu0 0
      %4444 = vmatmul.mubr.bf16.gmra.mrb[0].mxu0 %v4304
      %v4445 = vpop.f32.mrb[0].mxu0
      %v4446 = vadd.f32 0.0, %v4445
      %v4447 = vpop.f32.mrb[0].mxu0
      %v4448 = vpop.f32.mrb[0].mxu0
      %v4449 = vadd.f32 0.0, %v4448
      %v4450 = vpop.f32.mrb[0].mxu0
      %4451 = vmatprep.mubr.bf16.mxu0 0
      %4452 = vmatmul.mubr.bf16.gmra.mrb[0].mxu0 %v4307
      %v4453 = vpop.f32.mrb[0].mxu0
      %v4454 = vadd.f32 0.0, %v4453
      %v4455 = vpop.f32.mrb[0].mxu0
      %v4456 = vpop.f32.mrb[0].mxu0
      %v4457 = vadd.f32 0.0, %v4456
      %v4458 = vpop.f32.mrb[0].mxu0
      %4459 = vmatprep.mubr.bf16.mxu0 0
      %4460 = vmatmul.mubr.bf16.gmra.mrb[0].mxu0 %v4310
      %v4461 = vpop.f32.mrb[0].mxu0
      %v4462 = vadd.f32 0.0, %v4461
      %v4463 = vpop.f32.mrb[0].mxu0
      %v4464 = vpop.f32.mrb[0].mxu0
      %v4465 = vadd.f32 0.0, %v4464
      %v4466 = vpop.f32.mrb[0].mxu0
      %4467 = vdwg.mxu0
      %v4468 = vadd.f32 %v4025, %v4350
      %v4469 = vadd.f32 %v4026, %v4353
      %v4470 = vadd.f32 %v4027, %v4358
      %v4471 = vadd.f32 %v4028, %v4361
      %v4472 = vadd.f32 %v4029, %v4366
      %v4473 = vadd.f32 %v4030, %v4369
      %v4474 = vadd.f32 %v4031, %v4374
      %v4475 = vadd.f32 %v4032, %v4377
      %v4476 = vadd.f32 %v4033, %v4382
      %v4477 = vadd.f32 %v4034, %v4385
      %v4478 = vadd.f32 %v4035, %v4390
      %v4479 = vadd.f32 %v4036, %v4393
      %v4480 = vadd.f32 %v4037, %v4398
      %v4481 = vadd.f32 %v4038, %v4401
      %v4482 = vadd.f32 %v4039, %v4406
      %v4483 = vadd.f32 %v4040, %v4409
      %v4484 = vadd.f32 %v4041, %v4414
      %v4485 = vadd.f32 %v4042, %v4417
      %v4486 = vadd.f32 %v4043, %v4422
      %v4487 = vadd.f32 %v4044, %v4425
      %v4488 = vadd.f32 %v4045, %v4430
      %v4489 = vadd.f32 %v4046, %v4433
      %v4490 = vadd.f32 %v4047, %v4438
      %v4491 = vadd.f32 %v4048, %v4441
      %v4492 = vadd.f32 %v4049, %v4446
      %v4493 = vadd.f32 %v4050, %v4449
      %v4494 = vadd.f32 %v4051, %v4454
      %v4495 = vadd.f32 %v4052, %v4457
      %v4496 = vadd.f32 %v4053, %v4462
      %v4497 = vadd.f32 %v4054, %v4465
      %v4498 = vmax.f32 %v4468, %v4470
      %v4499 = vmax.f32 %v4498, %v4472
      %v4500 = vmax.f32 %v4469, %v4471
      %v4501 = vmax.f32 %v4500, %v4473
      %v4502 = vmax.f32 %v4474, %v4476
      %v4503 = vmax.f32 %v4502, %v4478
      %v4504 = vmax.f32 %v4475, %v4477
      %v4505 = vmax.f32 %v4504, %v4479
      %v4506 = vmax.f32 %v4480, %v4482
      %v4507 = vmax.f32 %v4506, %v4484
      %v4508 = vmax.f32 %v4481, %v4483
      %v4509 = vmax.f32 %v4508, %v4485
      %v4510 = vmax.f32 %v4486, %v4488
      %v4511 = vmax.f32 %v4510, %v4490
      %v4512 = vmax.f32 %v4487, %v4489
      %v4513 = vmax.f32 %v4512, %v4491
      %v4514 = vmax.f32 %v4492, %v4494
      %v4515 = vmax.f32 %v4514, %v4496
      %v4516 = vmax.f32 %v4493, %v4495
      %v4517 = vmax.f32 %v4516, %v4497
      %4518 = vst [vmem:[#allocation2] sm:$0xff] %v4499
      %4519 = vst [vmem:[#allocation2 + $0x8] sm:$0xff] %v4501
      %4520 = vst [vmem:[#allocation2 + $0x10] sm:$0xff] %v4503
      %4521 = vst [vmem:[#allocation2 + $0x18] sm:$0xff] %v4505
      %4522 = vst [vmem:[#allocation2 + $0x20] sm:$0xff] %v4507
      %4523 = vst [vmem:[#allocation2 + $0x28] sm:$0xff] %v4509
      %4524 = vst [vmem:[#allocation2 + $0x30] sm:$0xff] %v4511
      %4525 = vst [vmem:[#allocation2 + $0x38] sm:$0xff] %v4513
      %4526 = vst [vmem:[#allocation2 + $0x40] sm:$0xff] %v4515
      %4527 = vst [vmem:[#allocation2 + $0x48] sm:$0xff] %v4517
      %v4528 = vld [vmem:[#allocation2] ss:$3 sm:$0x1f]
      %s4529 = scalar_lea.vmem [#allocation2], 16
      %v4530 = vld [vmem:[%s4529] ss:$3 sm:$0x1f]
      %s4531 = scalar_lea.vmem [#allocation2], 32
      %v4532 = vld [vmem:[%s4531] ss:$3 sm:$0x1f]
      %s4533 = scalar_lea.vmem [#allocation2], 48
      %v4534 = vld [vmem:[%s4533] ss:$3 sm:$0x1f]
      %s4535 = scalar_lea.vmem [#allocation2], 64
      %v4536 = vld [vmem:[%s4535] ss:$3 sm:$0x1f]
      %s4537 = scalar_lea.vmem [#allocation2], 1
      %v4538 = vld [vmem:[%s4537] ss:$3 sm:$0x1f]
      %s4539 = scalar_lea.vmem [#allocation2], 17
      %v4540 = vld [vmem:[%s4539] ss:$3 sm:$0x1f]
      %s4541 = scalar_lea.vmem [#allocation2], 33
      %v4542 = vld [vmem:[%s4541] ss:$3 sm:$0x1f]
      %s4543 = scalar_lea.vmem [#allocation2], 49
      %v4544 = vld [vmem:[%s4543] ss:$3 sm:$0x1f]
      %s4545 = scalar_lea.vmem [#allocation2], 65
      %v4546 = vld [vmem:[%s4545] ss:$3 sm:$0x1f]
      %v4547 = vmax.f32 %v4528, %v4538
      %v4548 = vmax.f32 %v4530, %v4540
      %v4549 = vmax.f32 %v4532, %v4542
      %v4550 = vmax.f32 %v4534, %v4544
      %v4551 = vmax.f32 %v4536, %v4546
      %s4552 = scalar_lea.vmem [#allocation2], 2
      %v4553 = vld [vmem:[%s4552] ss:$3 sm:$0x1f]
      %s4554 = scalar_lea.vmem [#allocation2], 18
      %v4555 = vld [vmem:[%s4554] ss:$3 sm:$0x1f]
      %s4556 = scalar_lea.vmem [#allocation2], 34
      %v4557 = vld [vmem:[%s4556] ss:$3 sm:$0x1f]
      %s4558 = scalar_lea.vmem [#allocation2], 50
      %v4559 = vld [vmem:[%s4558] ss:$3 sm:$0x1f]
      %s4560 = scalar_lea.vmem [#allocation2], 66
      %v4561 = vld [vmem:[%s4560] ss:$3 sm:$0x1f]
      %v4562 = vmax.f32 %v4547, %v4553
      %v4563 = vmax.f32 %v4548, %v4555
      %v4564 = vmax.f32 %v4549, %v4557
      %v4565 = vmax.f32 %v4550, %v4559
      %v4566 = vmax.f32 %v4551, %v4561
      %v4567 = vld [vmem:[%s2] sm:$0x1]
      %v4569 = vlaneseq
      %v4570 = vshrl.u32 %v4569, 7
      %v4571 = vsub.s32 0, %v4570
      %v4572 = vrot.slane %v4567, %v4571
      %v4574 = vadd.f32 %v4562, %v4572
      %v4575 = vadd.f32 %v4563, %v4572
      %v4576 = vadd.f32 %v4564, %v4572
      %v4577 = vadd.f32 %v4565, %v4572
      %v4578 = vadd.f32 %v4566, %v4572
      %v4579 = vmax.f32 %v4574, 0.0
      %v4580 = vmax.f32 %v4575, 0.0
      %v4581 = vmax.f32 %v4576, 0.0
      %v4582 = vmax.f32 %v4577, 0.0
      %v4583 = vmax.f32 %v4578, 0.0
      %v4584 = vpack.c.bf16 %v4579, %v4579
      %v4585 = vpack.c.bf16 %v4580, %v4580
      %v4586 = vpack.c.bf16 %v4581, %v4581
      %v4587 = vpack.c.bf16 %v4582, %v4582
      %v4588 = vpack.c.bf16 %v4583, %v4583
      %vm4589 = vsmask.f32 2304
      %vm4590 = vmand %vm1182, %vm4589
      %v4591 = vld [vmem:[%s199] sm:$0x7]
      %v4592 = vsel %vm4590, %v4584, %v4591
      %4593 = vst [vmem:[%s199] sm:$0x7] %v4592
      %v4594 = vld [vmem:[%s199 + $0x4] sm:$0x7]
      %v4595 = vsel %vm4590, %v4585, %v4594
      %4596 = vst [vmem:[%s199 + $0x4] sm:$0x7] %v4595
      %v4597 = vld [vmem:[%s199 + $0x8] sm:$0x7]
      %v4598 = vsel %vm4590, %v4586, %v4597
      %4599 = vst [vmem:[%s199 + $0x8] sm:$0x7] %v4598
      %v4600 = vld [vmem:[%s199 + $0xc] sm:$0x7]
      %v4601 = vsel %vm4590, %v4587, %v4600
      %4602 = vst [vmem:[%s199 + $0xc] sm:$0x7] %v4601
      %v4603 = vld [vmem:[%s199 + $0x10] sm:$0x7]
      %v4604 = vsel %vm4590, %v4588, %v4603
      %4605 = vst [vmem:[%s199 + $0x10] sm:$0x7] %v4604
      %s4606 = smul.u32 5, %s18
      %p4607 = scmp.lt.s32.totalorder %s19, 1
      %s4608 = scalar_select %p4607, %s19, 1
      %p4609 = scmp.lt.s32.totalorder %s4606, 4
      %s4610 = scalar_select %p4609, %s4606, 4
      %s4611 = smul.addr %s4608, 5
      %s4612 = sadd.s32 %s4610, %s4611
      %s4613 = smul.addr %s4612, 4
      %s4614 = scalar_lea.vmem %s3, %s4613
      // Predicated region
      $region33: #{conv_block_forward.1} parent=31 // pred_check
        %p4615 = pneg %p116
      $region34: #{conv_block_forward.1} parent=31 // pred_check_branch
        %4617 = sbr.rel (%p4615) target = $region36
      $region35: #{conv_block_forward.1} parent=31 // pred_region
        %s4618 = smul.u32 5, %s18
      $region36: #{conv_block_forward.1} parent=31 // pred_fallthru
        _
    $region32: #{conv_block_forward.1} parent=5 // pred_fallthru
      _
    %p4619 = scmp.le.s32.totalorder 2, %s9
    // Predicated region
    $region37: #{conv_block_forward.1} parent=5 // pred_check
      %p4620 = pneg %p4619
    $region38: #{conv_block_forward.1} parent=5 // pred_check_branch
      %4622 = sbr.rel (%p4620) target = $region40
    $region39: #{conv_block_forward.1} parent=5 // pred_region
      %s4623 = ssub.s32 %s9, 2
      // Predicated region
      $region41: #{conv_block_forward.1} parent=39 // pred_check
        %p4624 = pneg %p122
      $region42: #{conv_block_forward.1} parent=39 // pred_check_branch
        %4626 = sbr.rel (%p4624) target = $region44
      $region43: #{conv_block_forward.1} parent=39 // pred_region
        %s4627 = smul.u32 5, %s20
        %p4628 = scmp.lt.s32.totalorder %s21, 1
        %s4629 = scalar_select %p4628, %s21, 1
        %p4630 = scmp.lt.s32.totalorder %s4627, 4
        %s4631 = scalar_select %p4630, %s4627, 4
        %s4632 = smul.addr %s4629, 5
        %s4633 = sadd.s32 %s4631, %s4632
        %s4634 = smul.addr %s4633, 4
        %s4635 = scalar_lea.vmem %s3, %s4634
      $region44: #{conv_block_forward.1} parent=39 // pred_fallthru
        _
    $region40: #{conv_block_forward.1} parent=5 // pred_fallthru
      _
  $region6: #{conv_block_forward.1} parent=0 // loop_footer
    %s13 = sadd.s32 1, %s9
  $region7: #{conv_block_forward.1} parent=0 // loop_footer_branch
    %8 = sbr.rel target = $region3
  $region8: #{conv_block_forward.1} parent=0 // loop_exit
    _

</llo_original>
